<compile_context>
chip_gen: v7x
topology: tpu7x:2x2x1
jax: 0.10.0
libtpu: 0.0.40
codegen_flags: <defaults>
</compile_context>

<pallas_src>
import functools

import jax
import jax.numpy as jnp
from jax.experimental import pallas as pl
from jax.experimental.pallas import tpu as pltpu


# ---------------------------------------------------------------------------
# Kernel
# ---------------------------------------------------------------------------
def _mlp_adain_kernel(x_ref,
                      w1_ref, b1_ref,
                      w2_ref, b2_ref,
                      w3_ref, b3_ref,
                      w4_ref, b4_ref,
                      o_ref):
    """Fused 4x (Linear + ReLU) on one (tm, hw_pad) activation tile.

    x arrives fp32 and is cast to bf16 in-kernel (VPU op, hidden under the
    MXU).  Weights are bf16, accumulation fp32 via preferred_element_type;
    bias-add + ReLU in fp32, activations re-cast to bf16 for the next matmul.
    """
    x = x_ref[...].astype(jnp.bfloat16)                       # (tm, hw_pad)

    h = jnp.dot(x, w1_ref[...], preferred_element_type=jnp.float32) + b1_ref[...]
    h = jnp.maximum(h, 0.0).astype(jnp.bfloat16)

    h = jnp.dot(h, w2_ref[...], preferred_element_type=jnp.float32) + b2_ref[...]
    h = jnp.maximum(h, 0.0).astype(jnp.bfloat16)

    h = jnp.dot(h, w3_ref[...], preferred_element_type=jnp.float32) + b3_ref[...]
    h = jnp.maximum(h, 0.0).astype(jnp.bfloat16)

    h = jnp.dot(h, w4_ref[...], preferred_element_type=jnp.float32) + b4_ref[...]
    o_ref[...] = jnp.maximum(h, 0.0).astype(o_ref.dtype)       # bf16 lane-dense store


# ---------------------------------------------------------------------------
# One-time parameter preparation (do NOT call per forward step)
# ---------------------------------------------------------------------------
def prepare_params(params, hw, output_ch):
    """Pad + cast the MLP weights once.

    Returns (weights_bf16, biases_f32) with:
      * w1 rows zero-padded up to hw_pad = next multiple of 128 (lane-dense K),
      * w4/b4 columns zero-padded up to out_pad = max(128, multiple of 128),
      * weights in bf16, biases in fp32.
    Zero padding is a mathematical no-op for the dot products.
    """
    (w1, b1), (w2, b2), (w3, b3), (w4, b4) = params
    hw_pad = pl.cdiv(hw, 128) * 128
    out_pad = max(128, pl.cdiv(output_ch, 128) * 128)

    if hw_pad != hw:
        w1 = jnp.zeros((hw_pad, w1.shape[1]), w1.dtype).at[:hw, :].set(w1)
    w4p = jnp.zeros((w4.shape[0], out_pad), w4.dtype).at[:, :output_ch].set(w4)
    b4p = jnp.zeros((1, out_pad), b4.dtype).at[:, :output_ch].set(b4)

    weights = tuple(a.astype(jnp.bfloat16) for a in (w1, w2, w3, w4p))
    biases = tuple(a.astype(jnp.float32) for a in (b1, b2, b3, b4p))
    return weights, biases


# ---------------------------------------------------------------------------
# Tiling helpers
# ---------------------------------------------------------------------------
def _default_tile_rows():
    """v5e is MXU-bound here -> bigger tiles amortize per-grid-step overhead."""
    try:
        kind = jax.devices()[0].device_kind.lower()
    except Exception:
        return 512
    if "v5 lite" in kind or "v5e" in kind or "v5litepod" in kind:
        return 1024
    return 512


def _select_tile_rows(m, tm_request):
    """Pick (m_pad, tm_eff).

    * m padded to a multiple of 16 (bf16 sublane packing; >= 16 always).
    * m_pad <= 256: single tile of m_pad rows.
    * m_pad  > 256: tiles are multiples of 256 (full MXU passes on v6e/v7x),
      capped at m_pad/2 so the grid has >= 2 steps (v7x megacore sharding).
    """
    m_pad16 = max(16, pl.cdiv(m, 16) * 16)
    if m_pad16 <= 256:
        return m_pad16, m_pad16
    tm = max(256, (tm_request // 256) * 256)
    m_pad = pl.cdiv(m, 256) * 256
    tm = min(tm, max(256, (m_pad // 2 // 256) * 256))
    m_pad = pl.cdiv(m_pad, tm) * tm
    return m_pad, tm


# ---------------------------------------------------------------------------
# Forward
# ---------------------------------------------------------------------------
@functools.partial(
    jax.jit, static_argnames=("output_ch", "tm", "single_buffer_weights"))
def _forward_impl(image, weights, biases, *, output_ch, tm, single_buffer_weights):
    n, c, h, w = image.shape
    hw = h * w
    m = n * c

    w1, w2, w3, w4 = weights
    b1, b2, b3, b4 = biases
    hw_pad = w1.shape[0]
    out_pad = w4.shape[1]

    # Flatten(2,-1) collapsed with the batch axis -> (M, hw) fp32 slab.
    x2d = image.reshape(m, hw).astype(jnp.float32)
    if hw_pad != hw:
        x2d = jnp.pad(x2d, ((0, 0), (0, hw_pad - hw)))

    m_pad, tm_eff = _select_tile_rows(m, tm)
    if m_pad != m:
        x2d = jnp.pad(x2d, ((0, m_pad - m), (0, 0)))
    grid = (m_pad // tm_eff,)

    # Weights/biases: same block every grid step -> VMEM-resident; single
    # buffer (constant index_map) so the pipeliner doesn't allocate 2 copies.
    if single_buffer_weights:
        def resident(shape):
            return pl.BlockSpec(shape, lambda i: (0, 0),
                                pipeline_mode=pl.Buffered(1))
    else:
        def resident(shape):
            return pl.BlockSpec(shape, lambda i: (0, 0))

    in_specs = [
        pl.BlockSpec((tm_eff, hw_pad), lambda i: (i, 0)),   # activation tile
        resident(w1.shape), resident(b1.shape),
        resident(w2.shape), resident(b2.shape),
        resident(w3.shape), resident(b3.shape),
        resident(w4.shape), resident(b4.shape),
    ]
    out_specs = pl.BlockSpec((tm_eff, out_pad), lambda i: (i, 0))

    dims = (hw_pad, w1.shape[1], w2.shape[1], w3.shape[1], out_pad)
    mm_terms = sum(dims[i] * dims[i + 1] for i in range(4))
    flops = 2 * m_pad * mm_terms
    bytes_accessed = (m_pad * hw_pad * 4          # fp32 input
                      + 2 * mm_terms              # bf16 weights
                      + 4 * sum(dims[1:])         # fp32 biases
                      + m_pad * out_pad * 2)      # bf16 output
    cost = pl.CostEstimate(flops=flops, transcendentals=0,
                           bytes_accessed=bytes_accessed)

    out = pl.pallas_call(
        _mlp_adain_kernel,
        out_shape=jax.ShapeDtypeStruct((m_pad, out_pad), jnp.bfloat16),
        grid=grid,
        in_specs=in_specs,
        out_specs=out_specs,
        compiler_params=pltpu.CompilerParams(
            dimension_semantics=("parallel",),   # megacore sharding on v7x
            vmem_limit_bytes=32 << 20,           # safe on v5e/v6e/v7x
        ),
        cost_estimate=cost,
    )(x2d, w1, b1, w2, b2, w3, b3, w4, b4)

    return out[:m, :output_ch].astype(jnp.float32).reshape(n, c, output_ch)


def mlp_adain_forward(image, prepared_params, output_ch, tm=None):
    """image: (N, C, H, W) float32; prepared_params from prepare_params().
    Returns (N, C, output_ch) float32."""
    weights, biases = prepared_params
    if tm is None:
        tm = _default_tile_rows()
    try:
        out = _forward_impl(image, weights, biases, output_ch=output_ch, tm=tm,
                            single_buffer_weights=True)
        return jax.block_until_ready(out)
    except Exception:
        # Fallback if this JAX build rejects pipeline_mode=pl.Buffered(1);
        # identical semantics, weights just get double-buffered.
        out = _forward_impl(image, weights, biases, output_ch=output_ch, tm=tm,
                            single_buffer_weights=False)
        return jax.block_until_ready(out)


# ---------------------------------------------------------------------------
# Params + reference
# ---------------------------------------------------------------------------
def init_params(key, in_features, output_ch):
    """Deterministic synthetic weights (PyTorch Linear: y = x @ W.T + b;
    W is stored already transposed to (in, out))."""
    inter = (1024, 512, 256)  # np.power(2, [10, 9, 8])
    dims = [in_features, inter[0], inter[1], inter[2], output_ch]
    params = []
    for i in range(4):
        key, kw, kb = jax.random.split(key, 3)
        scale = 1.0 / jnp.sqrt(jnp.float32(dims[i]))
        wt = jax.random.uniform(kw, (dims[i], dims[i + 1]), jnp.float32,
                                minval=-scale, maxval=scale)
        b = jax.random.uniform(kb, (1, dims[i + 1]), jnp.float32,
                               minval=-scale, maxval=scale)
        params.append((wt, b))
    return params


def reference_forward(image, params, output_ch):
    """Pure-JAX reference emulating the kernel's bf16-matmul / fp32-accum /
    bf16-activation path (uses the raw, unpadded fp32 params)."""
    n, c, h, w = image.shape
    x = image.reshape(n * c, h * w)
    for (wt, b) in params:
        y = jnp.dot(x.astype(jnp.bfloat16), wt.astype(jnp.bfloat16),
                    preferred_element_type=jnp.float32) + b
        x = jnp.maximum(y, 0.0).astype(jnp.bfloat16).astype(jnp.float32)
    return x.reshape(n, c, output_ch)


if __name__ == "__main__":
    # Small config consistent with the module: chans=4, nz=(16,16), mult_only=1
    N, C, H, W = 2, 4, 16, 16
    mult_only = 1
    output_ch = C if mult_only else 2 * C

    key = jax.random.PRNGKey(0)
    k_img, k_par = jax.random.split(key)
    image = jax.random.normal(k_img, (N, C, H, W), jnp.float32)
    params = init_params(k_par, H * W, output_ch)

    # One-time weight preparation (outside the per-step forward).
    prepared = prepare_params(params, H * W, output_ch)

    out = mlp_adain_forward(image, prepared, output_ch)
    out = jax.block_until_ready(out)

    ref = reference_forward(image, params, output_ch)
    assert out.shape == (N, C, output_ch), out.shape
    assert jnp.allclose(out, ref, atol=2e-2, rtol=2e-2), "mismatch vs JAX reference"

    print("KERNEL_OK")
</pallas_src>

<mosaic_0001>
module attributes {stable_mosaic.version = 11 : i64} {
  func.func @_mlp_adain_kernel(%arg0: i32, %arg1: memref<16x256xf32, #tpu.memory_space<vmem>>, %arg2: memref<256x1024xbf16, #tpu.memory_space<vmem>>, %arg3: memref<1x1024xf32, #tpu.memory_space<vmem>>, %arg4: memref<1024x512xbf16, #tpu.memory_space<vmem>>, %arg5: memref<1x512xf32, #tpu.memory_space<vmem>>, %arg6: memref<512x256xbf16, #tpu.memory_space<vmem>>, %arg7: memref<1x256xf32, #tpu.memory_space<vmem>>, %arg8: memref<256x128xbf16, #tpu.memory_space<vmem>>, %arg9: memref<1x128xf32, #tpu.memory_space<vmem>>, %arg10: memref<16x128xbf16, #tpu.memory_space<vmem>>) attributes {dimension_semantics = [#tpu.dimension_semantics<parallel>], iteration_bounds = array<i64: 1>, scalar_prefetch = 0 : i64, scratch_operands = 0 : i64, tpu.core_type = #tpu.core_type<tc>, window_params = [{transform_indices = @transform_0, window_bounds = array<i64: 16, 256>}, {pipeline_mode = #tpu.pipeline_mode<synchronous>, transform_indices = @transform_1, window_bounds = array<i64: 256, 1024>}, {pipeline_mode = #tpu.pipeline_mode<synchronous>, transform_indices = @transform_2, window_bounds = array<i64: 1, 1024>}, {pipeline_mode = #tpu.pipeline_mode<synchronous>, transform_indices = @transform_3, window_bounds = array<i64: 1024, 512>}, {pipeline_mode = #tpu.pipeline_mode<synchronous>, transform_indices = @transform_4, window_bounds = array<i64: 1, 512>}, {pipeline_mode = #tpu.pipeline_mode<synchronous>, transform_indices = @transform_5, window_bounds = array<i64: 512, 256>}, {pipeline_mode = #tpu.pipeline_mode<synchronous>, transform_indices = @transform_6, window_bounds = array<i64: 1, 256>}, {pipeline_mode = #tpu.pipeline_mode<synchronous>, transform_indices = @transform_7, window_bounds = array<i64: 256, 128>}, {pipeline_mode = #tpu.pipeline_mode<synchronous>, transform_indices = @transform_8, window_bounds = array<i64: 1, 128>}, {transform_indices = @transform_9, window_bounds = array<i64: 16, 128>}]} {
    %c0 = arith.constant 0 : index
    %c0_0 = arith.constant 0 : index
    %0 = vector.load %arg1[%c0, %c0_0] : memref<16x256xf32, #tpu.memory_space<vmem>>, vector<16x256xf32>
    %1 = arith.truncf %0 : vector<16x256xf32> to vector<16x256xbf16>
    %c0_1 = arith.constant 0 : index
    %c0_2 = arith.constant 0 : index
    %2 = vector.load %arg2[%c0_1, %c0_2] : memref<256x1024xbf16, #tpu.memory_space<vmem>>, vector<256x1024xbf16>
    %cst = arith.constant dense<0.000000e+00> : vector<16x1024xf32>
    %3 = tpu.matmul %1, %2, %cst {dimension_numbers = #tpu.dot_dimension_numbers<[1], [0], [0], [1], [0, 0, 1, 1], [], []>} : vector<16x256xbf16>, vector<256x1024xbf16>, vector<16x1024xf32> -> vector<16x1024xf32>
    %c0_3 = arith.constant 0 : index
    %c0_4 = arith.constant 0 : index
    %4 = vector.load %arg3[%c0_3, %c0_4] : memref<1x1024xf32, #tpu.memory_space<vmem>>, vector<1x1024xf32>
    %5 = vector.broadcast %4 : vector<1x1024xf32> to vector<16x1024xf32>
    %6 = arith.addf %3, %5 : vector<16x1024xf32>
    %cst_5 = arith.constant 0.000000e+00 : f32
    %7 = vector.broadcast %cst_5 : f32 to vector<16x1024xf32>
    %8 = arith.maximumf %6, %7 : vector<16x1024xf32>
    %9 = arith.truncf %8 : vector<16x1024xf32> to vector<16x1024xbf16>
    %c0_6 = arith.constant 0 : index
    %c0_7 = arith.constant 0 : index
    %10 = vector.load %arg4[%c0_6, %c0_7] : memref<1024x512xbf16, #tpu.memory_space<vmem>>, vector<1024x512xbf16>
    %cst_8 = arith.constant dense<0.000000e+00> : vector<16x512xf32>
    %11 = tpu.matmul %9, %10, %cst_8 {dimension_numbers = #tpu.dot_dimension_numbers<[1], [0], [0], [1], [0, 0, 1, 1], [], []>} : vector<16x1024xbf16>, vector<1024x512xbf16>, vector<16x512xf32> -> vector<16x512xf32>
    %c0_9 = arith.constant 0 : index
    %c0_10 = arith.constant 0 : index
    %12 = vector.load %arg5[%c0_9, %c0_10] : memref<1x512xf32, #tpu.memory_space<vmem>>, vector<1x512xf32>
    %13 = vector.broadcast %12 : vector<1x512xf32> to vector<16x512xf32>
    %14 = arith.addf %11, %13 : vector<16x512xf32>
    %cst_11 = arith.constant 0.000000e+00 : f32
    %15 = vector.broadcast %cst_11 : f32 to vector<16x512xf32>
    %16 = arith.maximumf %14, %15 : vector<16x512xf32>
    %17 = arith.truncf %16 : vector<16x512xf32> to vector<16x512xbf16>
    %c0_12 = arith.constant 0 : index
    %c0_13 = arith.constant 0 : index
    %18 = vector.load %arg6[%c0_12, %c0_13] : memref<512x256xbf16, #tpu.memory_space<vmem>>, vector<512x256xbf16>
    %cst_14 = arith.constant dense<0.000000e+00> : vector<16x256xf32>
    %19 = tpu.matmul %17, %18, %cst_14 {dimension_numbers = #tpu.dot_dimension_numbers<[1], [0], [0], [1], [0, 0, 1, 1], [], []>} : vector<16x512xbf16>, vector<512x256xbf16>, vector<16x256xf32> -> vector<16x256xf32>
    %c0_15 = arith.constant 0 : index
    %c0_16 = arith.constant 0 : index
    %20 = vector.load %arg7[%c0_15, %c0_16] : memref<1x256xf32, #tpu.memory_space<vmem>>, vector<1x256xf32>
    %21 = vector.broadcast %20 : vector<1x256xf32> to vector<16x256xf32>
    %22 = arith.addf %19, %21 : vector<16x256xf32>
    %cst_17 = arith.constant 0.000000e+00 : f32
    %23 = vector.broadcast %cst_17 : f32 to vector<16x256xf32>
    %24 = arith.maximumf %22, %23 : vector<16x256xf32>
    %25 = arith.truncf %24 : vector<16x256xf32> to vector<16x256xbf16>
    %c0_18 = arith.constant 0 : index
    %c0_19 = arith.constant 0 : index
    %26 = vector.load %arg8[%c0_18, %c0_19] : memref<256x128xbf16, #tpu.memory_space<vmem>>, vector<256x128xbf16>
    %cst_20 = arith.constant dense<0.000000e+00> : vector<16x128xf32>
    %27 = tpu.matmul %25, %26, %cst_20 {dimension_numbers = #tpu.dot_dimension_numbers<[1], [0], [0], [1], [0, 0, 1, 1], [], []>} : vector<16x256xbf16>, vector<256x128xbf16>, vector<16x128xf32> -> vector<16x128xf32>
    %c0_21 = arith.constant 0 : index
    %c0_22 = arith.constant 0 : index
    %28 = vector.load %arg9[%c0_21, %c0_22] : memref<1x128xf32, #tpu.memory_space<vmem>>, vector<1x128xf32>
    %29 = vector.broadcast %28 : vector<1x128xf32> to vector<16x128xf32>
    %30 = arith.addf %27, %29 : vector<16x128xf32>
    %cst_23 = arith.constant 0.000000e+00 : f32
    %31 = vector.broadcast %cst_23 : f32 to vector<16x128xf32>
    %32 = arith.maximumf %30, %31 : vector<16x128xf32>
    %33 = arith.truncf %32 : vector<16x128xf32> to vector<16x128xbf16>
    %c0_24 = arith.constant 0 : index
    %c0_25 = arith.constant 0 : index
    %34 = vector.load %arg10[%c0_24, %c0_25] : memref<16x128xbf16, #tpu.memory_space<vmem>>, vector<16x128xbf16>
    tpu.vector_store %arg10[%c0_24, %c0_25], %33 {strides = array<i32>} : memref<16x128xbf16, #tpu.memory_space<vmem>>, vector<16x128xbf16>,
    return
  }
  func.func @transform_0(%arg0: i32) -> (i32, i32) {
    %c0_i32 = arith.constant 0 : i32
    %c0_i32_0 = arith.constant 0 : i32
    return %arg0, %c0_i32 : i32, i32
  }
  func.func @transform_1(%arg0: i32) -> (i32, i32) {
    %c0_i32 = arith.constant 0 : i32
    %c0_i32_0 = arith.constant 0 : i32
    %c0_i32_1 = arith.constant 0 : i32
    return %c0_i32, %c0_i32_0 : i32, i32
  }
  func.func @transform_2(%arg0: i32) -> (i32, i32) {
    %c0_i32 = arith.constant 0 : i32
    %c0_i32_0 = arith.constant 0 : i32
    %c0_i32_1 = arith.constant 0 : i32
    return %c0_i32, %c0_i32_0 : i32, i32
  }
  func.func @transform_3(%arg0: i32) -> (i32, i32) {
    %c0_i32 = arith.constant 0 : i32
    %c0_i32_0 = arith.constant 0 : i32
    %c0_i32_1 = arith.constant 0 : i32
    return %c0_i32, %c0_i32_0 : i32, i32
  }
  func.func @transform_4(%arg0: i32) -> (i32, i32) {
    %c0_i32 = arith.constant 0 : i32
    %c0_i32_0 = arith.constant 0 : i32
    %c0_i32_1 = arith.constant 0 : i32
    return %c0_i32, %c0_i32_0 : i32, i32
  }
  func.func @transform_5(%arg0: i32) -> (i32, i32) {
    %c0_i32 = arith.constant 0 : i32
    %c0_i32_0 = arith.constant 0 : i32
    %c0_i32_1 = arith.constant 0 : i32
    return %c0_i32, %c0_i32_0 : i32, i32
  }
  func.func @transform_6(%arg0: i32) -> (i32, i32) {
    %c0_i32 = arith.constant 0 : i32
    %c0_i32_0 = arith.constant 0 : i32
    %c0_i32_1 = arith.constant 0 : i32
    return %c0_i32, %c0_i32_0 : i32, i32
  }
  func.func @transform_7(%arg0: i32) -> (i32, i32) {
    %c0_i32 = arith.constant 0 : i32
    %c0_i32_0 = arith.constant 0 : i32
    %c0_i32_1 = arith.constant 0 : i32
    return %c0_i32, %c0_i32_0 : i32, i32
  }
  func.func @transform_8(%arg0: i32) -> (i32, i32) {
    %c0_i32 = arith.constant 0 : i32
    %c0_i32_0 = arith.constant 0 : i32
    %c0_i32_1 = arith.constant 0 : i32
    return %c0_i32, %c0_i32_0 : i32, i32
  }
  func.func @transform_9(%arg0: i32) -> (i32, i32) {
    %c0_i32 = arith.constant 0 : i32
    %c0_i32_0 = arith.constant 0 : i32
    return %arg0, %c0_i32 : i32, i32
  }
}

module attributes {stable_mosaic.version = 11 : i64} {
  func.func @_mlp_adain_kernel(%arg0: i32, %arg1: memref<16x256xf32, #tpu.memory_space<vmem>>, %arg2: memref<256x1024xbf16, #tpu.memory_space<vmem>>, %arg3: memref<1x1024xf32, #tpu.memory_space<vmem>>, %arg4: memref<1024x512xbf16, #tpu.memory_space<vmem>>, %arg5: memref<1x512xf32, #tpu.memory_space<vmem>>, %arg6: memref<512x256xbf16, #tpu.memory_space<vmem>>, %arg7: memref<1x256xf32, #tpu.memory_space<vmem>>, %arg8: memref<256x128xbf16, #tpu.memory_space<vmem>>, %arg9: memref<1x128xf32, #tpu.memory_space<vmem>>, %arg10: memref<16x128xbf16, #tpu.memory_space<vmem>>) attributes {dimension_semantics = [#tpu.dimension_semantics<parallel>], iteration_bounds = array<i64: 1>, scalar_prefetch = 0 : i64, scratch_operands = 0 : i64, tpu.core_type = #tpu.core_type<tc>, window_params = [{transform_indices = @transform_0, window_bounds = array<i64: 16, 256>}, {pipeline_mode = #tpu.pipeline_mode<synchronous>, transform_indices = @transform_1, window_bounds = array<i64: 256, 1024>}, {pipeline_mode = #tpu.pipeline_mode<synchronous>, transform_indices = @transform_2, window_bounds = array<i64: 1, 1024>}, {pipeline_mode = #tpu.pipeline_mode<synchronous>, transform_indices = @transform_3, window_bounds = array<i64: 1024, 512>}, {pipeline_mode = #tpu.pipeline_mode<synchronous>, transform_indices = @transform_4, window_bounds = array<i64: 1, 512>}, {pipeline_mode = #tpu.pipeline_mode<synchronous>, transform_indices = @transform_5, window_bounds = array<i64: 512, 256>}, {pipeline_mode = #tpu.pipeline_mode<synchronous>, transform_indices = @transform_6, window_bounds = array<i64: 1, 256>}, {pipeline_mode = #tpu.pipeline_mode<synchronous>, transform_indices = @transform_7, window_bounds = array<i64: 256, 128>}, {pipeline_mode = #tpu.pipeline_mode<synchronous>, transform_indices = @transform_8, window_bounds = array<i64: 1, 128>}, {transform_indices = @transform_9, window_bounds = array<i64: 16, 128>}]} {
    %c0 = arith.constant 0 : index
    %c0_0 = arith.constant 0 : index
    %0 = vector.load %arg1[%c0, %c0_0] : memref<16x256xf32, #tpu.memory_space<vmem>>, vector<16x256xf32>
    %1 = arith.truncf %0 : vector<16x256xf32> to vector<16x256xbf16>
    %c0_1 = arith.constant 0 : index
    %c0_2 = arith.constant 0 : index
    %2 = vector.load %arg2[%c0_1, %c0_2] : memref<256x1024xbf16, #tpu.memory_space<vmem>>, vector<256x1024xbf16>
    %cst = arith.constant dense<0.000000e+00> : vector<16x1024xf32>
    %3 = tpu.matmul %1, %2, %cst {dimension_numbers = #tpu.dot_dimension_numbers<[1], [0], [0], [1], [0, 0, 1, 1], [], []>} : vector<16x256xbf16>, vector<256x1024xbf16>, vector<16x1024xf32> -> vector<16x1024xf32>
    %c0_3 = arith.constant 0 : index
    %c0_4 = arith.constant 0 : index
    %4 = vector.load %arg3[%c0_3, %c0_4] : memref<1x1024xf32, #tpu.memory_space<vmem>>, vector<1x1024xf32>
    %5 = vector.broadcast %4 : vector<1x1024xf32> to vector<16x1024xf32>
    %6 = arith.addf %3, %5 : vector<16x1024xf32>
    %cst_5 = arith.constant 0.000000e+00 : f32
    %7 = vector.broadcast %cst_5 : f32 to vector<16x1024xf32>
    %8 = arith.maximumf %6, %7 : vector<16x1024xf32>
    %9 = arith.truncf %8 : vector<16x1024xf32> to vector<16x1024xbf16>
    %c0_6 = arith.constant 0 : index
    %c0_7 = arith.constant 0 : index
    %10 = vector.load %arg4[%c0_6, %c0_7] : memref<1024x512xbf16, #tpu.memory_space<vmem>>, vector<1024x512xbf16>
    %cst_8 = arith.constant dense<0.000000e+00> : vector<16x512xf32>
    %11 = tpu.matmul %9, %10, %cst_8 {dimension_numbers = #tpu.dot_dimension_numbers<[1], [0], [0], [1], [0, 0, 1, 1], [], []>} : vector<16x1024xbf16>, vector<1024x512xbf16>, vector<16x512xf32> -> vector<16x512xf32>
    %c0_9 = arith.constant 0 : index
    %c0_10 = arith.constant 0 : index
    %12 = vector.load %arg5[%c0_9, %c0_10] : memref<1x512xf32, #tpu.memory_space<vmem>>, vector<1x512xf32>
    %13 = vector.broadcast %12 : vector<1x512xf32> to vector<16x512xf32>
    %14 = arith.addf %11, %13 : vector<16x512xf32>
    %cst_11 = arith.constant 0.000000e+00 : f32
    %15 = vector.broadcast %cst_11 : f32 to vector<16x512xf32>
    %16 = arith.maximumf %14, %15 : vector<16x512xf32>
    %17 = arith.truncf %16 : vector<16x512xf32> to vector<16x512xbf16>
    %c0_12 = arith.constant 0 : index
    %c0_13 = arith.constant 0 : index
    %18 = vector.load %arg6[%c0_12, %c0_13] : memref<512x256xbf16, #tpu.memory_space<vmem>>, vector<512x256xbf16>
    %cst_14 = arith.constant dense<0.000000e+00> : vector<16x256xf32>
    %19 = tpu.matmul %17, %18, %cst_14 {dimension_numbers = #tpu.dot_dimension_numbers<[1], [0], [0], [1], [0, 0, 1, 1], [], []>} : vector<16x512xbf16>, vector<512x256xbf16>, vector<16x256xf32> -> vector<16x256xf32>
    %c0_15 = arith.constant 0 : index
    %c0_16 = arith.constant 0 : index
    %20 = vector.load %arg7[%c0_15, %c0_16] : memref<1x256xf32, #tpu.memory_space<vmem>>, vector<1x256xf32>
    %21 = vector.broadcast %20 : vector<1x256xf32> to vector<16x256xf32>
    %22 = arith.addf %19, %21 : vector<16x256xf32>
    %cst_17 = arith.constant 0.000000e+00 : f32
    %23 = vector.broadcast %cst_17 : f32 to vector<16x256xf32>
    %24 = arith.maximumf %22, %23 : vector<16x256xf32>
    %25 = arith.truncf %24 : vector<16x256xf32> to vector<16x256xbf16>
    %c0_18 = arith.constant 0 : index
    %c0_19 = arith.constant 0 : index
    %26 = vector.load %arg8[%c0_18, %c0_19] : memref<256x128xbf16, #tpu.memory_space<vmem>>, vector<256x128xbf16>
    %cst_20 = arith.constant dense<0.000000e+00> : vector<16x128xf32>
    %27 = tpu.matmul %25, %26, %cst_20 {dimension_numbers = #tpu.dot_dimension_numbers<[1], [0], [0], [1], [0, 0, 1, 1], [], []>} : vector<16x256xbf16>, vector<256x128xbf16>, vector<16x128xf32> -> vector<16x128xf32>
    %c0_21 = arith.constant 0 : index
    %c0_22 = arith.constant 0 : index
    %28 = vector.load %arg9[%c0_21, %c0_22] : memref<1x128xf32, #tpu.memory_space<vmem>>, vector<1x128xf32>
    %29 = vector.broadcast %28 : vector<1x128xf32> to vector<16x128xf32>
    %30 = arith.addf %27, %29 : vector<16x128xf32>
    %cst_23 = arith.constant 0.000000e+00 : f32
    %31 = vector.broadcast %cst_23 : f32 to vector<16x128xf32>
    %32 = arith.maximumf %30, %31 : vector<16x128xf32>
    %33 = arith.truncf %32 : vector<16x128xf32> to vector<16x128xbf16>
    %c0_24 = arith.constant 0 : index
    %c0_25 = arith.constant 0 : index
    %34 = vector.load %arg10[%c0_24, %c0_25] : memref<16x128xbf16, #tpu.memory_space<vmem>>, vector<16x128xbf16>
    tpu.vector_store %arg10[%c0_24, %c0_25], %33 {strides = array<i32>} : memref<16x128xbf16, #tpu.memory_space<vmem>>, vector<16x128xbf16>,
    return
  }
  func.func @transform_0(%arg0: i32) -> (i32, i32) {
    %c0_i32 = arith.constant 0 : i32
    %c0_i32_0 = arith.constant 0 : i32
    return %arg0, %c0_i32 : i32, i32
  }
  func.func @transform_1(%arg0: i32) -> (i32, i32) {
    %c0_i32 = arith.constant 0 : i32
    %c0_i32_0 = arith.constant 0 : i32
    %c0_i32_1 = arith.constant 0 : i32
    return %c0_i32, %c0_i32_0 : i32, i32
  }
  func.func @transform_2(%arg0: i32) -> (i32, i32) {
    %c0_i32 = arith.constant 0 : i32
    %c0_i32_0 = arith.constant 0 : i32
    %c0_i32_1 = arith.constant 0 : i32
    return %c0_i32, %c0_i32_0 : i32, i32
  }
  func.func @transform_3(%arg0: i32) -> (i32, i32) {
    %c0_i32 = arith.constant 0 : i32
    %c0_i32_0 = arith.constant 0 : i32
    %c0_i32_1 = arith.constant 0 : i32
    return %c0_i32, %c0_i32_0 : i32, i32
  }
  func.func @transform_4(%arg0: i32) -> (i32, i32) {
    %c0_i32 = arith.constant 0 : i32
    %c0_i32_0 = arith.constant 0 : i32
    %c0_i32_1 = arith.constant 0 : i32
    return %c0_i32, %c0_i32_0 : i32, i32
  }
  func.func @transform_5(%arg0: i32) -> (i32, i32) {
    %c0_i32 = arith.constant 0 : i32
    %c0_i32_0 = arith.constant 0 : i32
    %c0_i32_1 = arith.constant 0 : i32
    return %c0_i32, %c0_i32_0 : i32, i32
  }
  func.func @transform_6(%arg0: i32) -> (i32, i32) {
    %c0_i32 = arith.constant 0 : i32
    %c0_i32_0 = arith.constant 0 : i32
    %c0_i32_1 = arith.constant 0 : i32
    return %c0_i32, %c0_i32_0 : i32, i32
  }
  func.func @transform_7(%arg0: i32) -> (i32, i32) {
    %c0_i32 = arith.constant 0 : i32
    %c0_i32_0 = arith.constant 0 : i32
    %c0_i32_1 = arith.constant 0 : i32
    return %c0_i32, %c0_i32_0 : i32, i32
  }
  func.func @transform_8(%arg0: i32) -> (i32, i32) {
    %c0_i32 = arith.constant 0 : i32
    %c0_i32_0 = arith.constant 0 : i32
    %c0_i32_1 = arith.constant 0 : i32
    return %c0_i32, %c0_i32_0 : i32, i32
  }
  func.func @transform_9(%arg0: i32) -> (i32, i32) {
    %c0_i32 = arith.constant 0 : i32
    %c0_i32_0 = arith.constant 0 : i32
    return %arg0, %c0_i32 : i32, i32
  }
}

</mosaic_0001>

<llo_original>
// kernel: _forward_impl.1
$region0: #{_forward_impl.1}
  #allocation0 [shape = 'u32[]', space=smem, size = 0x4, offset = 0x4, fixed_abs, tag = 'smem constant byte address 0x4 - core index']
  #allocation1 [shape = 'u32[144,128]{1,0:T(1,128)}', space=vmem, size = 0x12000, scoped, tag = 'internal scratch']
  %s0 = inlined_call_operand.vmem [shape: f32[16,256], index: 0, kind: input, shape index: {}]
  %s1 = inlined_call_operand.hbm [shape: bf16[256,1024], index: 1, kind: input, shape index: {}]
  %s2 = inlined_call_operand.vmem [shape: f32[1,1024], index: 2, kind: input, shape index: {}]
  %s3 = inlined_call_operand.hbm [shape: bf16[1024,512], index: 3, kind: input, shape index: {}]
  %s4 = inlined_call_operand.vmem [shape: f32[1,512], index: 4, kind: input, shape index: {}]
  %s5 = inlined_call_operand.hbm [shape: bf16[512,256], index: 5, kind: input, shape index: {}]
  %s6 = inlined_call_operand.vmem [shape: f32[1,256], index: 6, kind: input, shape index: {}]
  %s7 = inlined_call_operand.vmem [shape: bf16[256,128], index: 7, kind: input, shape index: {}]
  %s8 = inlined_call_operand.vmem [shape: f32[1,128], index: 8, kind: input, shape index: {}]
  %s9 = inlined_call_operand.vmem [shape: bf16[16,128], index: 9, kind: output, shape index: {}]
  %s10 = sld [smem:[#allocation0]]
  $region58: #{_forward_impl.1} parent=0
    _
  %s12 = ssub.s32 1, %s10
  %s13 = scalar_select 0, %s12, %s10
  $region1: #{_forward_impl.1} parent=0
    #allocation2 [shape = 'u8[524288]{0}', space=vmem, size = 0x80000, scoped, tag = 'input window, operand 1, single buffered']
    #allocation3 [shape = 's32[1]{0}', space=sflag, size = 0x4, scoped, tag = 'scoped memory for _forward_impl.1']
    #allocation4 [shape = 'u8[1048576]{0}', space=vmem, size = 0x100000, scoped, tag = 'input window, operand 3, single buffered']
    #allocation5 [shape = 's32[1]{0}', space=sflag, size = 0x4, scoped, tag = 'scoped memory for _forward_impl.1']
    #allocation6 [shape = 'u8[262144]{0}', space=vmem, size = 0x40000, scoped, tag = 'input window, operand 5, single buffered']
    %14 = vsyncpa [#allocation3], 0
    %15 = vsyncpa [#allocation5], 0
    // Predicated region
    $region2: #{_forward_impl.1} parent=1 // pred_check
      _
    $region3: #{_forward_impl.1} parent=1 // pred_check_branch
      %17 = sbr.rel (0) target = $region5
    $region4: #{_forward_impl.1} parent=1 // pred_region
      _
    $region5: #{_forward_impl.1} parent=1 // pred_fallthru
      _
    // Predicated region
    $region6: #{_forward_impl.1} parent=1 // pred_check
      _
    $region7: #{_forward_impl.1} parent=1 // pred_check_branch
      %19 = sbr.rel (0) target = $region9
    $region8: #{_forward_impl.1} parent=1 // pred_region
      %s21 = ssub.s32 16384, 16384
      %22 = vsyncadd [#allocation3], %s21
      %s23 = sshll.u32 [#allocation2], 4
      %s24 = int_to_ptr.vmem [resolvable:$true] %s23
      %29 = dma.hbm_to_vmem [thread:$0]  %s1, 16384, %s24, [#allocation3], 512, 512, 32
    $region9: #{_forward_impl.1} parent=1 // pred_fallthru
      _
    // Predicated region
    $region10: #{_forward_impl.1} parent=1 // pred_check
      _
    $region11: #{_forward_impl.1} parent=1 // pred_check_branch
      %31 = sbr.rel (0) target = $region13
    $region12: #{_forward_impl.1} parent=1 // pred_region
      _
    $region13: #{_forward_impl.1} parent=1 // pred_fallthru
      _
    // Predicated region
    $region14: #{_forward_impl.1} parent=1 // pred_check
      _
    $region15: #{_forward_impl.1} parent=1 // pred_check_branch
      %33 = sbr.rel (0) target = $region17
    $region16: #{_forward_impl.1} parent=1 // pred_region
      %s35 = ssub.s32 32768, 32768
      %36 = vsyncadd [#allocation5], %s35
      %s37 = sshll.u32 [#allocation4], 4
      %s38 = int_to_ptr.vmem [resolvable:$true] %s37
      %43 = dma.hbm_to_vmem [thread:$0]  %s3, 32768, %s38, [#allocation5], 256, 256, 16
    $region17: #{_forward_impl.1} parent=1 // pred_fallthru
      _
    // Predicated region
    $region18: #{_forward_impl.1} parent=1 // pred_check
      _
    $region19: #{_forward_impl.1} parent=1 // pred_check_branch
      %45 = sbr.rel (0) target = $region21
    $region20: #{_forward_impl.1} parent=1 // pred_region
      _
    $region21: #{_forward_impl.1} parent=1 // pred_fallthru
      _
    // Predicated region
    $region22: #{_forward_impl.1} parent=1 // pred_check
      _
    $region23: #{_forward_impl.1} parent=1 // pred_check_branch
      %47 = sbr.rel (0) target = $region25
    $region24: #{_forward_impl.1} parent=1 // pred_region
      %s49 = ssub.s32 8192, 8192
      %50 = vsyncadd [#allocation5], %s49
      %s51 = sshll.u32 [#allocation6], 4
      %s52 = int_to_ptr.vmem [resolvable:$true] %s51
      %57 = dma.hbm_to_vmem [thread:$0]  %s5, 8192, %s52, [#allocation5], 128, 128, 8
    $region25: #{_forward_impl.1} parent=1 // pred_fallthru
      _
    // Predicated region
    $region26: #{_forward_impl.1} parent=1 // pred_check
      _
    $region27: #{_forward_impl.1} parent=1 // pred_check_branch
      %59 = sbr.rel (0) target = $region29
    $region28: #{_forward_impl.1} parent=1 // pred_region
      _
    $region29: #{_forward_impl.1} parent=1 // pred_fallthru
      _
    // Predicated region
    $region30: #{_forward_impl.1} parent=1 // pred_check
      _
    $region31: #{_forward_impl.1} parent=1 // pred_check_branch
      %61 = sbr.rel (0) target = $region33
    $region32: #{_forward_impl.1} parent=1 // pred_region
      _
    $region33: #{_forward_impl.1} parent=1 // pred_fallthru
      _
    // Predicated region
    $region34: #{_forward_impl.1} parent=1 // pred_check
      _
    $region35: #{_forward_impl.1} parent=1 // pred_check_branch
      %63 = sbr.rel (0) target = $region37
    $region36: #{_forward_impl.1} parent=1 // pred_region
      _
    $region37: #{_forward_impl.1} parent=1 // pred_fallthru
      _
    // Predicated region
    $region38: #{_forward_impl.1} parent=1 // pred_check
      _
    $region39: #{_forward_impl.1} parent=1 // pred_check_branch
      %65 = sbr.rel (0) target = $region41
    $region40: #{_forward_impl.1} parent=1 // pred_region
      %66 = dma.done [#allocation3], 16384
    $region41: #{_forward_impl.1} parent=1 // pred_fallthru
      _
    // Predicated region
    $region42: #{_forward_impl.1} parent=1 // pred_check
      _
    $region43: #{_forward_impl.1} parent=1 // pred_check_branch
      %68 = sbr.rel (0) target = $region45
    $region44: #{_forward_impl.1} parent=1 // pred_region
      %69 = dma.done [#allocation5], 32768
    $region45: #{_forward_impl.1} parent=1 // pred_fallthru
      _
    // Predicated region
    $region46: #{_forward_impl.1} parent=1 // pred_check
      _
    $region47: #{_forward_impl.1} parent=1 // pred_check_branch
      %71 = sbr.rel (0) target = $region49
    $region48: #{_forward_impl.1} parent=1 // pred_region
      %72 = dma.done [#allocation5], 8192
    $region49: #{_forward_impl.1} parent=1 // pred_fallthru
      _
    %v74 = vld [vmem:[%s0] sm:$0xff]
    %v75 = vld [vmem:[%s0 + $0x8] sm:$0xff]
    %v76 = vld [vmem:[%s0 + $0x10] sm:$0xff]
    %v77 = vld [vmem:[%s0 + $0x18] sm:$0xff]
    %v78 = vpack.c.bf16 %v76, %v74
    %v79 = vpack.c.bf16 %v77, %v75
    %v80 = vld [vmem:[#allocation2] sm:$0xff]
    %v81 = vld [vmem:[#allocation2 + $0x8] sm:$0xff]
    %v82 = vld [vmem:[#allocation2 + $0x10] sm:$0xff]
    %v83 = vld [vmem:[#allocation2 + $0x18] sm:$0xff]
    %v84 = vld [vmem:[#allocation2 + $0x20] sm:$0xff]
    %v85 = vld [vmem:[#allocation2 + $0x28] sm:$0xff]
    %v86 = vld [vmem:[#allocation2 + $0x30] sm:$0xff]
    %v87 = vld [vmem:[#allocation2 + $0x38] sm:$0xff]
    %v88 = vld [vmem:[#allocation2 + $0x40] sm:$0xff]
    %v89 = vld [vmem:[#allocation2 + $0x48] sm:$0xff]
    %v90 = vld [vmem:[#allocation2 + $0x50] sm:$0xff]
    %v91 = vld [vmem:[#allocation2 + $0x58] sm:$0xff]
    %v92 = vld [vmem:[#allocation2 + $0x60] sm:$0xff]
    %v93 = vld [vmem:[#allocation2 + $0x68] sm:$0xff]
    %v94 = vld [vmem:[#allocation2 + $0x70] sm:$0xff]
    %v95 = vld [vmem:[#allocation2 + $0x78] sm:$0xff]
    %v96 = vld [vmem:[#allocation2 + $0x80] sm:$0xff]
    %v97 = vld [vmem:[#allocation2 + $0x88] sm:$0xff]
    %v98 = vld [vmem:[#allocation2 + $0x90] sm:$0xff]
    %v99 = vld [vmem:[#allocation2 + $0x98] sm:$0xff]
    %v100 = vld [vmem:[#allocation2 + $0xa0] sm:$0xff]
    %v101 = vld [vmem:[#allocation2 + $0xa8] sm:$0xff]
    %v102 = vld [vmem:[#allocation2 + $0xb0] sm:$0xff]
    %v103 = vld [vmem:[#allocation2 + $0xb8] sm:$0xff]
    %v104 = vld [vmem:[#allocation2 + $0xc0] sm:$0xff]
    %v105 = vld [vmem:[#allocation2 + $0xc8] sm:$0xff]
    %v106 = vld [vmem:[#allocation2 + $0xd0] sm:$0xff]
    %v107 = vld [vmem:[#allocation2 + $0xd8] sm:$0xff]
    %v108 = vld [vmem:[#allocation2 + $0xe0] sm:$0xff]
    %v109 = vld [vmem:[#allocation2 + $0xe8] sm:$0xff]
    %v110 = vld [vmem:[#allocation2 + $0xf0] sm:$0xff]
    %v111 = vld [vmem:[#allocation2 + $0xf8] sm:$0xff]
    %v112 = vld [vmem:[#allocation2 + $0x100] sm:$0xff]
    %v113 = vld [vmem:[#allocation2 + $0x108] sm:$0xff]
    %v114 = vld [vmem:[#allocation2 + $0x110] sm:$0xff]
    %v115 = vld [vmem:[#allocation2 + $0x118] sm:$0xff]
    %v116 = vld [vmem:[#allocation2 + $0x120] sm:$0xff]
    %v117 = vld [vmem:[#allocation2 + $0x128] sm:$0xff]
    %v118 = vld [vmem:[#allocation2 + $0x130] sm:$0xff]
    %v119 = vld [vmem:[#allocation2 + $0x138] sm:$0xff]
    %v120 = vld [vmem:[#allocation2 + $0x140] sm:$0xff]
    %v121 = vld [vmem:[#allocation2 + $0x148] sm:$0xff]
    %v122 = vld [vmem:[#allocation2 + $0x150] sm:$0xff]
    %v123 = vld [vmem:[#allocation2 + $0x158] sm:$0xff]
    %v124 = vld [vmem:[#allocation2 + $0x160] sm:$0xff]
    %v125 = vld [vmem:[#allocation2 + $0x168] sm:$0xff]
    %v126 = vld [vmem:[#allocation2 + $0x170] sm:$0xff]
    %v127 = vld [vmem:[#allocation2 + $0x178] sm:$0xff]
    %v128 = vld [vmem:[#allocation2 + $0x180] sm:$0xff]
    %v129 = vld [vmem:[#allocation2 + $0x188] sm:$0xff]
    %v130 = vld [vmem:[#allocation2 + $0x190] sm:$0xff]
    %v131 = vld [vmem:[#allocation2 + $0x198] sm:$0xff]
    %v132 = vld [vmem:[#allocation2 + $0x1a0] sm:$0xff]
    %v133 = vld [vmem:[#allocation2 + $0x1a8] sm:$0xff]
    %v134 = vld [vmem:[#allocation2 + $0x1b0] sm:$0xff]
    %v135 = vld [vmem:[#allocation2 + $0x1b8] sm:$0xff]
    %v136 = vld [vmem:[#allocation2 + $0x1c0] sm:$0xff]
    %v137 = vld [vmem:[#allocation2 + $0x1c8] sm:$0xff]
    %v138 = vld [vmem:[#allocation2 + $0x1d0] sm:$0xff]
    %v139 = vld [vmem:[#allocation2 + $0x1d8] sm:$0xff]
    %v140 = vld [vmem:[#allocation2 + $0x1e0] sm:$0xff]
    %v141 = vld [vmem:[#allocation2 + $0x1e8] sm:$0xff]
    %v142 = vld [vmem:[#allocation2 + $0x1f0] sm:$0xff]
    %v143 = vld [vmem:[#allocation2 + $0x1f8] sm:$0xff]
    %v144 = vld [vmem:[#allocation2 + $0x200] sm:$0xff]
    %v145 = vld [vmem:[#allocation2 + $0x208] sm:$0xff]
    %v146 = vld [vmem:[#allocation2 + $0x210] sm:$0xff]
    %v147 = vld [vmem:[#allocation2 + $0x218] sm:$0xff]
    %v148 = vld [vmem:[#allocation2 + $0x220] sm:$0xff]
    %v149 = vld [vmem:[#allocation2 + $0x228] sm:$0xff]
    %v150 = vld [vmem:[#allocation2 + $0x230] sm:$0xff]
    %v151 = vld [vmem:[#allocation2 + $0x238] sm:$0xff]
    %v152 = vld [vmem:[#allocation2 + $0x240] sm:$0xff]
    %v153 = vld [vmem:[#allocation2 + $0x248] sm:$0xff]
    %v154 = vld [vmem:[#allocation2 + $0x250] sm:$0xff]
    %v155 = vld [vmem:[#allocation2 + $0x258] sm:$0xff]
    %v156 = vld [vmem:[#allocation2 + $0x260] sm:$0xff]
    %v157 = vld [vmem:[#allocation2 + $0x268] sm:$0xff]
    %v158 = vld [vmem:[#allocation2 + $0x270] sm:$0xff]
    %v159 = vld [vmem:[#allocation2 + $0x278] sm:$0xff]
    %v160 = vld [vmem:[#allocation2 + $0x280] sm:$0xff]
    %v161 = vld [vmem:[#allocation2 + $0x288] sm:$0xff]
    %v162 = vld [vmem:[#allocation2 + $0x290] sm:$0xff]
    %v163 = vld [vmem:[#allocation2 + $0x298] sm:$0xff]
    %v164 = vld [vmem:[#allocation2 + $0x2a0] sm:$0xff]
    %v165 = vld [vmem:[#allocation2 + $0x2a8] sm:$0xff]
    %v166 = vld [vmem:[#allocation2 + $0x2b0] sm:$0xff]
    %v167 = vld [vmem:[#allocation2 + $0x2b8] sm:$0xff]
    %v168 = vld [vmem:[#allocation2 + $0x2c0] sm:$0xff]
    %v169 = vld [vmem:[#allocation2 + $0x2c8] sm:$0xff]
    %v170 = vld [vmem:[#allocation2 + $0x2d0] sm:$0xff]
    %v171 = vld [vmem:[#allocation2 + $0x2d8] sm:$0xff]
    %v172 = vld [vmem:[#allocation2 + $0x2e0] sm:$0xff]
    %v173 = vld [vmem:[#allocation2 + $0x2e8] sm:$0xff]
    %v174 = vld [vmem:[#allocation2 + $0x2f0] sm:$0xff]
    %v175 = vld [vmem:[#allocation2 + $0x2f8] sm:$0xff]
    %v176 = vld [vmem:[#allocation2 + $0x300] sm:$0xff]
    %v177 = vld [vmem:[#allocation2 + $0x308] sm:$0xff]
    %v178 = vld [vmem:[#allocation2 + $0x310] sm:$0xff]
    %v179 = vld [vmem:[#allocation2 + $0x318] sm:$0xff]
    %v180 = vld [vmem:[#allocation2 + $0x320] sm:$0xff]
    %v181 = vld [vmem:[#allocation2 + $0x328] sm:$0xff]
    %v182 = vld [vmem:[#allocation2 + $0x330] sm:$0xff]
    %v183 = vld [vmem:[#allocation2 + $0x338] sm:$0xff]
    %v184 = vld [vmem:[#allocation2 + $0x340] sm:$0xff]
    %v185 = vld [vmem:[#allocation2 + $0x348] sm:$0xff]
    %v186 = vld [vmem:[#allocation2 + $0x350] sm:$0xff]
    %v187 = vld [vmem:[#allocation2 + $0x358] sm:$0xff]
    %v188 = vld [vmem:[#allocation2 + $0x360] sm:$0xff]
    %v189 = vld [vmem:[#allocation2 + $0x368] sm:$0xff]
    %v190 = vld [vmem:[#allocation2 + $0x370] sm:$0xff]
    %v191 = vld [vmem:[#allocation2 + $0x378] sm:$0xff]
    %v192 = vld [vmem:[#allocation2 + $0x380] sm:$0xff]
    %v193 = vld [vmem:[#allocation2 + $0x388] sm:$0xff]
    %v194 = vld [vmem:[#allocation2 + $0x390] sm:$0xff]
    %v195 = vld [vmem:[#allocation2 + $0x398] sm:$0xff]
    %v196 = vld [vmem:[#allocation2 + $0x3a0] sm:$0xff]
    %v197 = vld [vmem:[#allocation2 + $0x3a8] sm:$0xff]
    %v198 = vld [vmem:[#allocation2 + $0x3b0] sm:$0xff]
    %v199 = vld [vmem:[#allocation2 + $0x3b8] sm:$0xff]
    %v200 = vld [vmem:[#allocation2 + $0x3c0] sm:$0xff]
    %v201 = vld [vmem:[#allocation2 + $0x3c8] sm:$0xff]
    %v202 = vld [vmem:[#allocation2 + $0x3d0] sm:$0xff]
    %v203 = vld [vmem:[#allocation2 + $0x3d8] sm:$0xff]
    %v204 = vld [vmem:[#allocation2 + $0x3e0] sm:$0xff]
    %v205 = vld [vmem:[#allocation2 + $0x3e8] sm:$0xff]
    %v206 = vld [vmem:[#allocation2 + $0x3f0] sm:$0xff]
    %v207 = vld [vmem:[#allocation2 + $0x3f8] sm:$0xff]
    %v208 = vld [vmem:[%s2] sm:$0xff]
    %v210 = vlaneseq
    %v211 = vshrl.u32 %v210, 7
    %v212 = vsub.s32 0, %v211
    %v213 = vrot.slane %v208, %v212
    %v214 = vlaneseq
    %v215 = vshrl.u32 %v214, 7
    %v216 = vsub.s32 1, %v215
    %v217 = vrot.slane %v208, %v216
    %v218 = vlaneseq
    %v219 = vshrl.u32 %v218, 7
    %v220 = vsub.s32 2, %v219
    %v221 = vrot.slane %v208, %v220
    %v222 = vlaneseq
    %v223 = vshrl.u32 %v222, 7
    %v224 = vsub.s32 3, %v223
    %v225 = vrot.slane %v208, %v224
    %v226 = vlaneseq
    %v227 = vshrl.u32 %v226, 7
    %v228 = vsub.s32 4, %v227
    %v229 = vrot.slane %v208, %v228
    %v230 = vlaneseq
    %v231 = vshrl.u32 %v230, 7
    %v232 = vsub.s32 5, %v231
    %v233 = vrot.slane %v208, %v232
    %v234 = vlaneseq
    %v235 = vshrl.u32 %v234, 7
    %v236 = vsub.s32 6, %v235
    %v237 = vrot.slane %v208, %v236
    %v238 = vlaneseq
    %v239 = vshrl.u32 %v238, 7
    %v240 = vsub.s32 7, %v239
    %v241 = vrot.slane %v208, %v240
    %v378 = vunpack.c.l.b16 %v80
    %v379 = vunpack.c.h.b16 %v80
    %v380 = vunpack.c.l.b16 %v81
    %v381 = vunpack.c.h.b16 %v81
    %v382 = vunpack.c.l.b16 %v82
    %v383 = vunpack.c.h.b16 %v82
    %v384 = vunpack.c.l.b16 %v83
    %v385 = vunpack.c.h.b16 %v83
    %v386 = vunpack.c.l.b16 %v84
    %v387 = vunpack.c.h.b16 %v84
    %v388 = vunpack.c.l.b16 %v85
    %v389 = vunpack.c.h.b16 %v85
    %v390 = vunpack.c.l.b16 %v86
    %v391 = vunpack.c.h.b16 %v86
    %v392 = vunpack.c.l.b16 %v87
    %v393 = vunpack.c.h.b16 %v87
    %v394 = vunpack.c.l.b16 %v88
    %v395 = vunpack.c.h.b16 %v88
    %v396 = vunpack.c.l.b16 %v89
    %v397 = vunpack.c.h.b16 %v89
    %v398 = vunpack.c.l.b16 %v90
    %v399 = vunpack.c.h.b16 %v90
    %v400 = vunpack.c.l.b16 %v91
    %v401 = vunpack.c.h.b16 %v91
    %v402 = vunpack.c.l.b16 %v92
    %v403 = vunpack.c.h.b16 %v92
    %v404 = vunpack.c.l.b16 %v93
    %v405 = vunpack.c.h.b16 %v93
    %v406 = vunpack.c.l.b16 %v94
    %v407 = vunpack.c.h.b16 %v94
    %v408 = vunpack.c.l.b16 %v95
    %v409 = vunpack.c.h.b16 %v95
    %v410 = vunpack.c.l.b16 %v96
    %v411 = vunpack.c.h.b16 %v96
    %v412 = vunpack.c.l.b16 %v97
    %v413 = vunpack.c.h.b16 %v97
    %v414 = vunpack.c.l.b16 %v98
    %v415 = vunpack.c.h.b16 %v98
    %v416 = vunpack.c.l.b16 %v99
    %v417 = vunpack.c.h.b16 %v99
    %v418 = vunpack.c.l.b16 %v100
    %v419 = vunpack.c.h.b16 %v100
    %v420 = vunpack.c.l.b16 %v101
    %v421 = vunpack.c.h.b16 %v101
    %v422 = vunpack.c.l.b16 %v102
    %v423 = vunpack.c.h.b16 %v102
    %v424 = vunpack.c.l.b16 %v103
    %v425 = vunpack.c.h.b16 %v103
    %v426 = vunpack.c.l.b16 %v104
    %v427 = vunpack.c.h.b16 %v104
    %v428 = vunpack.c.l.b16 %v105
    %v429 = vunpack.c.h.b16 %v105
    %v430 = vunpack.c.l.b16 %v106
    %v431 = vunpack.c.h.b16 %v106
    %v432 = vunpack.c.l.b16 %v107
    %v433 = vunpack.c.h.b16 %v107
    %v434 = vunpack.c.l.b16 %v108
    %v435 = vunpack.c.h.b16 %v108
    %v436 = vunpack.c.l.b16 %v109
    %v437 = vunpack.c.h.b16 %v109
    %v438 = vunpack.c.l.b16 %v110
    %v439 = vunpack.c.h.b16 %v110
    %v440 = vunpack.c.l.b16 %v111
    %v441 = vunpack.c.h.b16 %v111
    %v442 = vunpack.c.l.b16 %v112
    %v443 = vunpack.c.h.b16 %v112
    %v444 = vunpack.c.l.b16 %v113
    %v445 = vunpack.c.h.b16 %v113
    %v446 = vunpack.c.l.b16 %v114
    %v447 = vunpack.c.h.b16 %v114
    %v448 = vunpack.c.l.b16 %v115
    %v449 = vunpack.c.h.b16 %v115
    %v450 = vunpack.c.l.b16 %v116
    %v451 = vunpack.c.h.b16 %v116
    %v452 = vunpack.c.l.b16 %v117
    %v453 = vunpack.c.h.b16 %v117
    %v454 = vunpack.c.l.b16 %v118
    %v455 = vunpack.c.h.b16 %v118
    %v456 = vunpack.c.l.b16 %v119
    %v457 = vunpack.c.h.b16 %v119
    %v458 = vunpack.c.l.b16 %v120
    %v459 = vunpack.c.h.b16 %v120
    %v460 = vunpack.c.l.b16 %v121
    %v461 = vunpack.c.h.b16 %v121
    %v462 = vunpack.c.l.b16 %v122
    %v463 = vunpack.c.h.b16 %v122
    %v464 = vunpack.c.l.b16 %v123
    %v465 = vunpack.c.h.b16 %v123
    %v466 = vunpack.c.l.b16 %v124
    %v467 = vunpack.c.h.b16 %v124
    %v468 = vunpack.c.l.b16 %v125
    %v469 = vunpack.c.h.b16 %v125
    %v470 = vunpack.c.l.b16 %v126
    %v471 = vunpack.c.h.b16 %v126
    %v472 = vunpack.c.l.b16 %v127
    %v473 = vunpack.c.h.b16 %v127
    %v474 = vunpack.c.l.b16 %v128
    %v475 = vunpack.c.h.b16 %v128
    %v476 = vunpack.c.l.b16 %v129
    %v477 = vunpack.c.h.b16 %v129
    %v478 = vunpack.c.l.b16 %v130
    %v479 = vunpack.c.h.b16 %v130
    %v480 = vunpack.c.l.b16 %v131
    %v481 = vunpack.c.h.b16 %v131
    %v482 = vunpack.c.l.b16 %v132
    %v483 = vunpack.c.h.b16 %v132
    %v484 = vunpack.c.l.b16 %v133
    %v485 = vunpack.c.h.b16 %v133
    %v486 = vunpack.c.l.b16 %v134
    %v487 = vunpack.c.h.b16 %v134
    %v488 = vunpack.c.l.b16 %v135
    %v489 = vunpack.c.h.b16 %v135
    %v490 = vunpack.c.l.b16 %v136
    %v491 = vunpack.c.h.b16 %v136
    %v492 = vunpack.c.l.b16 %v137
    %v493 = vunpack.c.h.b16 %v137
    %v494 = vunpack.c.l.b16 %v138
    %v495 = vunpack.c.h.b16 %v138
    %v496 = vunpack.c.l.b16 %v139
    %v497 = vunpack.c.h.b16 %v139
    %v498 = vunpack.c.l.b16 %v140
    %v499 = vunpack.c.h.b16 %v140
    %v500 = vunpack.c.l.b16 %v141
    %v501 = vunpack.c.h.b16 %v141
    %v502 = vunpack.c.l.b16 %v142
    %v503 = vunpack.c.h.b16 %v142
    %v504 = vunpack.c.l.b16 %v143
    %v505 = vunpack.c.h.b16 %v143
    %v506 = vunpack.c.l.b16 %v144
    %v507 = vunpack.c.h.b16 %v144
    %v508 = vunpack.c.l.b16 %v145
    %v509 = vunpack.c.h.b16 %v145
    %v510 = vunpack.c.l.b16 %v146
    %v511 = vunpack.c.h.b16 %v146
    %v512 = vunpack.c.l.b16 %v147
    %v513 = vunpack.c.h.b16 %v147
    %v514 = vunpack.c.l.b16 %v148
    %v515 = vunpack.c.h.b16 %v148
    %v516 = vunpack.c.l.b16 %v149
    %v517 = vunpack.c.h.b16 %v149
    %v518 = vunpack.c.l.b16 %v150
    %v519 = vunpack.c.h.b16 %v150
    %v520 = vunpack.c.l.b16 %v151
    %v521 = vunpack.c.h.b16 %v151
    %v522 = vunpack.c.l.b16 %v152
    %v523 = vunpack.c.h.b16 %v152
    %v524 = vunpack.c.l.b16 %v153
    %v525 = vunpack.c.h.b16 %v153
    %v526 = vunpack.c.l.b16 %v154
    %v527 = vunpack.c.h.b16 %v154
    %v528 = vunpack.c.l.b16 %v155
    %v529 = vunpack.c.h.b16 %v155
    %v530 = vunpack.c.l.b16 %v156
    %v531 = vunpack.c.h.b16 %v156
    %v532 = vunpack.c.l.b16 %v157
    %v533 = vunpack.c.h.b16 %v157
    %v534 = vunpack.c.l.b16 %v158
    %v535 = vunpack.c.h.b16 %v158
    %v536 = vunpack.c.l.b16 %v159
    %v537 = vunpack.c.h.b16 %v159
    %v538 = vunpack.c.l.b16 %v160
    %v539 = vunpack.c.h.b16 %v160
    %v540 = vunpack.c.l.b16 %v161
    %v541 = vunpack.c.h.b16 %v161
    %v542 = vunpack.c.l.b16 %v162
    %v543 = vunpack.c.h.b16 %v162
    %v544 = vunpack.c.l.b16 %v163
    %v545 = vunpack.c.h.b16 %v163
    %v546 = vunpack.c.l.b16 %v164
    %v547 = vunpack.c.h.b16 %v164
    %v548 = vunpack.c.l.b16 %v165
    %v549 = vunpack.c.h.b16 %v165
    %v550 = vunpack.c.l.b16 %v166
    %v551 = vunpack.c.h.b16 %v166
    %v552 = vunpack.c.l.b16 %v167
    %v553 = vunpack.c.h.b16 %v167
    %v554 = vunpack.c.l.b16 %v168
    %v555 = vunpack.c.h.b16 %v168
    %v556 = vunpack.c.l.b16 %v169
    %v557 = vunpack.c.h.b16 %v169
    %v558 = vunpack.c.l.b16 %v170
    %v559 = vunpack.c.h.b16 %v170
    %v560 = vunpack.c.l.b16 %v171
    %v561 = vunpack.c.h.b16 %v171
    %v562 = vunpack.c.l.b16 %v172
    %v563 = vunpack.c.h.b16 %v172
    %v564 = vunpack.c.l.b16 %v173
    %v565 = vunpack.c.h.b16 %v173
    %v566 = vunpack.c.l.b16 %v174
    %v567 = vunpack.c.h.b16 %v174
    %v568 = vunpack.c.l.b16 %v175
    %v569 = vunpack.c.h.b16 %v175
    %v570 = vunpack.c.l.b16 %v176
    %v571 = vunpack.c.h.b16 %v176
    %v572 = vunpack.c.l.b16 %v177
    %v573 = vunpack.c.h.b16 %v177
    %v574 = vunpack.c.l.b16 %v178
    %v575 = vunpack.c.h.b16 %v178
    %v576 = vunpack.c.l.b16 %v179
    %v577 = vunpack.c.h.b16 %v179
    %v578 = vunpack.c.l.b16 %v180
    %v579 = vunpack.c.h.b16 %v180
    %v580 = vunpack.c.l.b16 %v181
    %v581 = vunpack.c.h.b16 %v181
    %v582 = vunpack.c.l.b16 %v182
    %v583 = vunpack.c.h.b16 %v182
    %v584 = vunpack.c.l.b16 %v183
    %v585 = vunpack.c.h.b16 %v183
    %v586 = vunpack.c.l.b16 %v184
    %v587 = vunpack.c.h.b16 %v184
    %v588 = vunpack.c.l.b16 %v185
    %v589 = vunpack.c.h.b16 %v185
    %v590 = vunpack.c.l.b16 %v186
    %v591 = vunpack.c.h.b16 %v186
    %v592 = vunpack.c.l.b16 %v187
    %v593 = vunpack.c.h.b16 %v187
    %v594 = vunpack.c.l.b16 %v188
    %v595 = vunpack.c.h.b16 %v188
    %v596 = vunpack.c.l.b16 %v189
    %v597 = vunpack.c.h.b16 %v189
    %v598 = vunpack.c.l.b16 %v190
    %v599 = vunpack.c.h.b16 %v190
    %v600 = vunpack.c.l.b16 %v191
    %v601 = vunpack.c.h.b16 %v191
    %v602 = vunpack.c.l.b16 %v192
    %v603 = vunpack.c.h.b16 %v192
    %v604 = vunpack.c.l.b16 %v193
    %v605 = vunpack.c.h.b16 %v193
    %v606 = vunpack.c.l.b16 %v194
    %v607 = vunpack.c.h.b16 %v194
    %v608 = vunpack.c.l.b16 %v195
    %v609 = vunpack.c.h.b16 %v195
    %v610 = vunpack.c.l.b16 %v196
    %v611 = vunpack.c.h.b16 %v196
    %v612 = vunpack.c.l.b16 %v197
    %v613 = vunpack.c.h.b16 %v197
    %v614 = vunpack.c.l.b16 %v198
    %v615 = vunpack.c.h.b16 %v198
    %v616 = vunpack.c.l.b16 %v199
    %v617 = vunpack.c.h.b16 %v199
    %v618 = vunpack.c.l.b16 %v200
    %v619 = vunpack.c.h.b16 %v200
    %v620 = vunpack.c.l.b16 %v201
    %v621 = vunpack.c.h.b16 %v201
    %v622 = vunpack.c.l.b16 %v202
    %v623 = vunpack.c.h.b16 %v202
    %v624 = vunpack.c.l.b16 %v203
    %v625 = vunpack.c.h.b16 %v203
    %v626 = vunpack.c.l.b16 %v204
    %v627 = vunpack.c.h.b16 %v204
    %v628 = vunpack.c.l.b16 %v205
    %v629 = vunpack.c.h.b16 %v205
    %v630 = vunpack.c.l.b16 %v206
    %v631 = vunpack.c.h.b16 %v206
    %v632 = vunpack.c.l.b16 %v207
    %v633 = vunpack.c.h.b16 %v207
    %v634 = vpack.c.b16 %v386, %v378
    %v635 = vpack.c.b16 %v387, %v379
    %v636 = vpack.c.b16 %v388, %v380
    %v637 = vpack.c.b16 %v389, %v381
    %v638 = vpack.c.b16 %v390, %v382
    %v639 = vpack.c.b16 %v391, %v383
    %v640 = vpack.c.b16 %v392, %v384
    %v641 = vpack.c.b16 %v393, %v385
    %v642 = vpack.c.b16 %v402, %v394
    %v643 = vpack.c.b16 %v403, %v395
    %v644 = vpack.c.b16 %v404, %v396
    %v645 = vpack.c.b16 %v405, %v397
    %v646 = vpack.c.b16 %v406, %v398
    %v647 = vpack.c.b16 %v407, %v399
    %v648 = vpack.c.b16 %v408, %v400
    %v649 = vpack.c.b16 %v409, %v401
    %v650 = vpack.c.b16 %v418, %v410
    %v651 = vpack.c.b16 %v419, %v411
    %v652 = vpack.c.b16 %v420, %v412
    %v653 = vpack.c.b16 %v421, %v413
    %v654 = vpack.c.b16 %v422, %v414
    %v655 = vpack.c.b16 %v423, %v415
    %v656 = vpack.c.b16 %v424, %v416
    %v657 = vpack.c.b16 %v425, %v417
    %v658 = vpack.c.b16 %v434, %v426
    %v659 = vpack.c.b16 %v435, %v427
    %v660 = vpack.c.b16 %v436, %v428
    %v661 = vpack.c.b16 %v437, %v429
    %v662 = vpack.c.b16 %v438, %v430
    %v663 = vpack.c.b16 %v439, %v431
    %v664 = vpack.c.b16 %v440, %v432
    %v665 = vpack.c.b16 %v441, %v433
    %v666 = vpack.c.b16 %v450, %v442
    %v667 = vpack.c.b16 %v451, %v443
    %v668 = vpack.c.b16 %v452, %v444
    %v669 = vpack.c.b16 %v453, %v445
    %v670 = vpack.c.b16 %v454, %v446
    %v671 = vpack.c.b16 %v455, %v447
    %v672 = vpack.c.b16 %v456, %v448
    %v673 = vpack.c.b16 %v457, %v449
    %v674 = vpack.c.b16 %v466, %v458
    %v675 = vpack.c.b16 %v467, %v459
    %v676 = vpack.c.b16 %v468, %v460
    %v677 = vpack.c.b16 %v469, %v461
    %v678 = vpack.c.b16 %v470, %v462
    %v679 = vpack.c.b16 %v471, %v463
    %v680 = vpack.c.b16 %v472, %v464
    %v681 = vpack.c.b16 %v473, %v465
    %v682 = vpack.c.b16 %v482, %v474
    %v683 = vpack.c.b16 %v483, %v475
    %v684 = vpack.c.b16 %v484, %v476
    %v685 = vpack.c.b16 %v485, %v477
    %v686 = vpack.c.b16 %v486, %v478
    %v687 = vpack.c.b16 %v487, %v479
    %v688 = vpack.c.b16 %v488, %v480
    %v689 = vpack.c.b16 %v489, %v481
    %v690 = vpack.c.b16 %v498, %v490
    %v691 = vpack.c.b16 %v499, %v491
    %v692 = vpack.c.b16 %v500, %v492
    %v693 = vpack.c.b16 %v501, %v493
    %v694 = vpack.c.b16 %v502, %v494
    %v695 = vpack.c.b16 %v503, %v495
    %v696 = vpack.c.b16 %v504, %v496
    %v697 = vpack.c.b16 %v505, %v497
    %v698 = vpack.c.b16 %v514, %v506
    %v699 = vpack.c.b16 %v515, %v507
    %v700 = vpack.c.b16 %v516, %v508
    %v701 = vpack.c.b16 %v517, %v509
    %v702 = vpack.c.b16 %v518, %v510
    %v703 = vpack.c.b16 %v519, %v511
    %v704 = vpack.c.b16 %v520, %v512
    %v705 = vpack.c.b16 %v521, %v513
    %v706 = vpack.c.b16 %v530, %v522
    %v707 = vpack.c.b16 %v531, %v523
    %v708 = vpack.c.b16 %v532, %v524
    %v709 = vpack.c.b16 %v533, %v525
    %v710 = vpack.c.b16 %v534, %v526
    %v711 = vpack.c.b16 %v535, %v527
    %v712 = vpack.c.b16 %v536, %v528
    %v713 = vpack.c.b16 %v537, %v529
    %v714 = vpack.c.b16 %v546, %v538
    %v715 = vpack.c.b16 %v547, %v539
    %v716 = vpack.c.b16 %v548, %v540
    %v717 = vpack.c.b16 %v549, %v541
    %v718 = vpack.c.b16 %v550, %v542
    %v719 = vpack.c.b16 %v551, %v543
    %v720 = vpack.c.b16 %v552, %v544
    %v721 = vpack.c.b16 %v553, %v545
    %v722 = vpack.c.b16 %v562, %v554
    %v723 = vpack.c.b16 %v563, %v555
    %v724 = vpack.c.b16 %v564, %v556
    %v725 = vpack.c.b16 %v565, %v557
    %v726 = vpack.c.b16 %v566, %v558
    %v727 = vpack.c.b16 %v567, %v559
    %v728 = vpack.c.b16 %v568, %v560
    %v729 = vpack.c.b16 %v569, %v561
    %v730 = vpack.c.b16 %v578, %v570
    %v731 = vpack.c.b16 %v579, %v571
    %v732 = vpack.c.b16 %v580, %v572
    %v733 = vpack.c.b16 %v581, %v573
    %v734 = vpack.c.b16 %v582, %v574
    %v735 = vpack.c.b16 %v583, %v575
    %v736 = vpack.c.b16 %v584, %v576
    %v737 = vpack.c.b16 %v585, %v577
    %v738 = vpack.c.b16 %v594, %v586
    %v739 = vpack.c.b16 %v595, %v587
    %v740 = vpack.c.b16 %v596, %v588
    %v741 = vpack.c.b16 %v597, %v589
    %v742 = vpack.c.b16 %v598, %v590
    %v743 = vpack.c.b16 %v599, %v591
    %v744 = vpack.c.b16 %v600, %v592
    %v745 = vpack.c.b16 %v601, %v593
    %v746 = vpack.c.b16 %v610, %v602
    %v747 = vpack.c.b16 %v611, %v603
    %v748 = vpack.c.b16 %v612, %v604
    %v749 = vpack.c.b16 %v613, %v605
    %v750 = vpack.c.b16 %v614, %v606
    %v751 = vpack.c.b16 %v615, %v607
    %v752 = vpack.c.b16 %v616, %v608
    %v753 = vpack.c.b16 %v617, %v609
    %v754 = vpack.c.b16 %v626, %v618
    %v755 = vpack.c.b16 %v627, %v619
    %v756 = vpack.c.b16 %v628, %v620
    %v757 = vpack.c.b16 %v629, %v621
    %v758 = vpack.c.b16 %v630, %v622
    %v759 = vpack.c.b16 %v631, %v623
    %v760 = vpack.c.b16 %v632, %v624
    %v761 = vpack.c.b16 %v633, %v625
    %890 = vmatprep.subr.bf16.mxu0 %v635
    %891 = vmatpush1.bf16.msra.mxu0 %v634
    %892 = vmatprep.subr.bf16.mxu0 %v643
    %893 = vmatpush1.bf16.msra.mxu0 %v642
    %894 = vmatprep.subr.bf16.mxu0 %v651
    %895 = vmatpush1.bf16.msra.mxu0 %v650
    %896 = vmatprep.subr.bf16.mxu0 %v659
    %897 = vmatpush1.bf16.msra.mxu0 %v658
    %898 = vmatprep.subr.bf16.mxu0 %v667
    %899 = vmatpush1.bf16.msra.mxu0 %v666
    %900 = vmatprep.subr.bf16.mxu0 %v675
    %901 = vmatpush1.bf16.msra.mxu0 %v674
    %902 = vmatprep.subr.bf16.mxu0 %v683
    %903 = vmatpush1.bf16.msra.mxu0 %v682
    %904 = vmatprep.subr.bf16.mxu0 %v691
    %905 = vmatpush1.bf16.msra.mxu0 %v690
    %906 = vmatprep.subr.bf16.mxu0 %v699
    %907 = vmatpush1.bf16.msra.mxu0 %v698
    %908 = vmatprep.subr.bf16.mxu0 %v707
    %909 = vmatpush1.bf16.msra.mxu0 %v706
    %910 = vmatprep.subr.bf16.mxu0 %v715
    %911 = vmatpush1.bf16.msra.mxu0 %v714
    %912 = vmatprep.subr.bf16.mxu0 %v723
    %913 = vmatpush1.bf16.msra.mxu0 %v722
    %914 = vmatprep.subr.bf16.mxu0 %v731
    %915 = vmatpush1.bf16.msra.mxu0 %v730
    %916 = vmatprep.subr.bf16.mxu0 %v739
    %917 = vmatpush1.bf16.msra.mxu0 %v738
    %918 = vmatprep.subr.bf16.mxu0 %v747
    %919 = vmatpush1.bf16.msra.mxu0 %v746
    %920 = vmatprep.subr.bf16.mxu0 %v755
    %921 = vmatpush1.bf16.msra.mxu0 %v754
    %922 = vmatprep.mubr.bf16.mxu0 %v79
    %923 = vmatmul.mubr.bf16.gmra.mrb[0].mxu0 %v78
    %v924 = vpop.f32.mrb[0].mxu0
    %v925 = vadd.f32 %v213, %v924
    %v926 = vpop.f32.mrb[0].mxu0
    %v927 = vadd.f32 %v217, %v926
    %v928 = vpop.f32.mrb[0].mxu0
    %v929 = vadd.f32 %v213, %v928
    %v930 = vpop.f32.mrb[0].mxu0
    %v931 = vadd.f32 %v217, %v930
    %932 = vdwg.mxu0
    %933 = vmatprep.subr.bf16.mxu0 %v637
    %934 = vmatpush1.bf16.msra.mxu0 %v636
    %935 = vmatprep.subr.bf16.mxu0 %v645
    %936 = vmatpush1.bf16.msra.mxu0 %v644
    %937 = vmatprep.subr.bf16.mxu0 %v653
    %938 = vmatpush1.bf16.msra.mxu0 %v652
    %939 = vmatprep.subr.bf16.mxu0 %v661
    %940 = vmatpush1.bf16.msra.mxu0 %v660
    %941 = vmatprep.subr.bf16.mxu0 %v669
    %942 = vmatpush1.bf16.msra.mxu0 %v668
    %943 = vmatprep.subr.bf16.mxu0 %v677
    %944 = vmatpush1.bf16.msra.mxu0 %v676
    %945 = vmatprep.subr.bf16.mxu0 %v685
    %946 = vmatpush1.bf16.msra.mxu0 %v684
    %947 = vmatprep.subr.bf16.mxu0 %v693
    %948 = vmatpush1.bf16.msra.mxu0 %v692
    %949 = vmatprep.subr.bf16.mxu0 %v701
    %950 = vmatpush1.bf16.msra.mxu0 %v700
    %951 = vmatprep.subr.bf16.mxu0 %v709
    %952 = vmatpush1.bf16.msra.mxu0 %v708
    %953 = vmatprep.subr.bf16.mxu0 %v717
    %954 = vmatpush1.bf16.msra.mxu0 %v716
    %955 = vmatprep.subr.bf16.mxu0 %v725
    %956 = vmatpush1.bf16.msra.mxu0 %v724
    %957 = vmatprep.subr.bf16.mxu0 %v733
    %958 = vmatpush1.bf16.msra.mxu0 %v732
    %959 = vmatprep.subr.bf16.mxu0 %v741
    %960 = vmatpush1.bf16.msra.mxu0 %v740
    %961 = vmatprep.subr.bf16.mxu0 %v749
    %962 = vmatpush1.bf16.msra.mxu0 %v748
    %963 = vmatprep.subr.bf16.mxu0 %v757
    %964 = vmatpush1.bf16.msra.mxu0 %v756
    %965 = vmatprep.mubr.bf16.mxu0 %v79
    %966 = vmatmul.mubr.bf16.gmra.mrb[0].mxu0 %v78
    %v967 = vpop.f32.mrb[0].mxu0
    %v968 = vadd.f32 %v221, %v967
    %v969 = vpop.f32.mrb[0].mxu0
    %v970 = vadd.f32 %v225, %v969
    %v971 = vpop.f32.mrb[0].mxu0
    %v972 = vadd.f32 %v221, %v971
    %v973 = vpop.f32.mrb[0].mxu0
    %v974 = vadd.f32 %v225, %v973
    %975 = vdwg.mxu0
    %976 = vmatprep.subr.bf16.mxu0 %v639
    %977 = vmatpush1.bf16.msra.mxu0 %v638
    %978 = vmatprep.subr.bf16.mxu0 %v647
    %979 = vmatpush1.bf16.msra.mxu0 %v646
    %980 = vmatprep.subr.bf16.mxu0 %v655
    %981 = vmatpush1.bf16.msra.mxu0 %v654
    %982 = vmatprep.subr.bf16.mxu0 %v663
    %983 = vmatpush1.bf16.msra.mxu0 %v662
    %984 = vmatprep.subr.bf16.mxu0 %v671
    %985 = vmatpush1.bf16.msra.mxu0 %v670
    %986 = vmatprep.subr.bf16.mxu0 %v679
    %987 = vmatpush1.bf16.msra.mxu0 %v678
    %988 = vmatprep.subr.bf16.mxu0 %v687
    %989 = vmatpush1.bf16.msra.mxu0 %v686
    %990 = vmatprep.subr.bf16.mxu0 %v695
    %991 = vmatpush1.bf16.msra.mxu0 %v694
    %992 = vmatprep.subr.bf16.mxu0 %v703
    %993 = vmatpush1.bf16.msra.mxu0 %v702
    %994 = vmatprep.subr.bf16.mxu0 %v711
    %995 = vmatpush1.bf16.msra.mxu0 %v710
    %996 = vmatprep.subr.bf16.mxu0 %v719
    %997 = vmatpush1.bf16.msra.mxu0 %v718
    %998 = vmatprep.subr.bf16.mxu0 %v727
    %999 = vmatpush1.bf16.msra.mxu0 %v726
    %1000 = vmatprep.subr.bf16.mxu0 %v735
    %1001 = vmatpush1.bf16.msra.mxu0 %v734
    %1002 = vmatprep.subr.bf16.mxu0 %v743
    %1003 = vmatpush1.bf16.msra.mxu0 %v742
    %1004 = vmatprep.subr.bf16.mxu0 %v751
    %1005 = vmatpush1.bf16.msra.mxu0 %v750
    %1006 = vmatprep.subr.bf16.mxu0 %v759
    %1007 = vmatpush1.bf16.msra.mxu0 %v758
    %1008 = vmatprep.mubr.bf16.mxu0 %v79
    %1009 = vmatmul.mubr.bf16.gmra.mrb[0].mxu0 %v78
    %v1010 = vpop.f32.mrb[0].mxu0
    %v1011 = vadd.f32 %v229, %v1010
    %v1012 = vpop.f32.mrb[0].mxu0
    %v1013 = vadd.f32 %v233, %v1012
    %v1014 = vpop.f32.mrb[0].mxu0
    %v1015 = vadd.f32 %v229, %v1014
    %v1016 = vpop.f32.mrb[0].mxu0
    %v1017 = vadd.f32 %v233, %v1016
    %1018 = vdwg.mxu0
    %1019 = vmatprep.subr.bf16.mxu0 %v641
    %1020 = vmatpush1.bf16.msra.mxu0 %v640
    %1021 = vmatprep.subr.bf16.mxu0 %v649
    %1022 = vmatpush1.bf16.msra.mxu0 %v648
    %1023 = vmatprep.subr.bf16.mxu0 %v657
    %1024 = vmatpush1.bf16.msra.mxu0 %v656
    %1025 = vmatprep.subr.bf16.mxu0 %v665
    %1026 = vmatpush1.bf16.msra.mxu0 %v664
    %1027 = vmatprep.subr.bf16.mxu0 %v673
    %1028 = vmatpush1.bf16.msra.mxu0 %v672
    %1029 = vmatprep.subr.bf16.mxu0 %v681
    %1030 = vmatpush1.bf16.msra.mxu0 %v680
    %1031 = vmatprep.subr.bf16.mxu0 %v689
    %1032 = vmatpush1.bf16.msra.mxu0 %v688
    %1033 = vmatprep.subr.bf16.mxu0 %v697
    %1034 = vmatpush1.bf16.msra.mxu0 %v696
    %1035 = vmatprep.subr.bf16.mxu0 %v705
    %1036 = vmatpush1.bf16.msra.mxu0 %v704
    %1037 = vmatprep.subr.bf16.mxu0 %v713
    %1038 = vmatpush1.bf16.msra.mxu0 %v712
    %1039 = vmatprep.subr.bf16.mxu0 %v721
    %1040 = vmatpush1.bf16.msra.mxu0 %v720
    %1041 = vmatprep.subr.bf16.mxu0 %v729
    %1042 = vmatpush1.bf16.msra.mxu0 %v728
    %1043 = vmatprep.subr.bf16.mxu0 %v737
    %1044 = vmatpush1.bf16.msra.mxu0 %v736
    %1045 = vmatprep.subr.bf16.mxu0 %v745
    %1046 = vmatpush1.bf16.msra.mxu0 %v744
    %1047 = vmatprep.subr.bf16.mxu0 %v753
    %1048 = vmatpush1.bf16.msra.mxu0 %v752
    %1049 = vmatprep.subr.bf16.mxu0 %v761
    %1050 = vmatpush1.bf16.msra.mxu0 %v760
    %1051 = vmatprep.mubr.bf16.mxu0 %v79
    %1052 = vmatmul.mubr.bf16.gmra.mrb[0].mxu0 %v78
    %v1053 = vpop.f32.mrb[0].mxu0
    %v1054 = vadd.f32 %v237, %v1053
    %v1055 = vpop.f32.mrb[0].mxu0
    %v1056 = vadd.f32 %v241, %v1055
    %v1057 = vpop.f32.mrb[0].mxu0
    %v1058 = vadd.f32 %v237, %v1057
    %v1059 = vpop.f32.mrb[0].mxu0
    %v1060 = vadd.f32 %v241, %v1059
    %1061 = vdwg.mxu0
    %v1062 = vmax.f32 %v925, 0.0
    %v1063 = vmax.f32 %v927, 0.0
    %v1064 = vmax.f32 %v968, 0.0
    %v1065 = vmax.f32 %v970, 0.0
    %v1066 = vmax.f32 %v1011, 0.0
    %v1067 = vmax.f32 %v1013, 0.0
    %v1068 = vmax.f32 %v1054, 0.0
    %v1069 = vmax.f32 %v1056, 0.0
    %v1070 = vmax.f32 %v929, 0.0
    %v1071 = vmax.f32 %v931, 0.0
    %v1072 = vmax.f32 %v972, 0.0
    %v1073 = vmax.f32 %v974, 0.0
    %v1074 = vmax.f32 %v1015, 0.0
    %v1075 = vmax.f32 %v1017, 0.0
    %v1076 = vmax.f32 %v1058, 0.0
    %v1077 = vmax.f32 %v1060, 0.0
    %v1078 = vpack.c.bf16 %v1070, %v1062
    %v1079 = vpack.c.bf16 %v1071, %v1063
    %v1080 = vpack.c.bf16 %v1072, %v1064
    %v1081 = vpack.c.bf16 %v1073, %v1065
    %v1082 = vpack.c.bf16 %v1074, %v1066
    %v1083 = vpack.c.bf16 %v1075, %v1067
    %v1084 = vpack.c.bf16 %v1076, %v1068
    %v1085 = vpack.c.bf16 %v1077, %v1069
    %v1086 = vld [vmem:[#allocation4] sm:$0xff]
    %v1087 = vld [vmem:[#allocation4 + $0x8] sm:$0xff]
    %v1088 = vld [vmem:[#allocation4 + $0x10] sm:$0xff]
    %v1089 = vld [vmem:[#allocation4 + $0x18] sm:$0xff]
    %v1090 = vld [vmem:[#allocation4 + $0x20] sm:$0xff]
    %v1091 = vld [vmem:[#allocation4 + $0x28] sm:$0xff]
    %v1092 = vld [vmem:[#allocation4 + $0x30] sm:$0xff]
    %v1093 = vld [vmem:[#allocation4 + $0x38] sm:$0xff]
    %v1094 = vld [vmem:[#allocation4 + $0x40] sm:$0xff]
    %v1095 = vld [vmem:[#allocation4 + $0x48] sm:$0xff]
    %v1096 = vld [vmem:[#allocation4 + $0x50] sm:$0xff]
    %v1097 = vld [vmem:[#allocation4 + $0x58] sm:$0xff]
    %v1098 = vld [vmem:[#allocation4 + $0x60] sm:$0xff]
    %v1099 = vld [vmem:[#allocation4 + $0x68] sm:$0xff]
    %v1100 = vld [vmem:[#allocation4 + $0x70] sm:$0xff]
    %v1101 = vld [vmem:[#allocation4 + $0x78] sm:$0xff]
    %v1102 = vld [vmem:[#allocation4 + $0x80] sm:$0xff]
    %v1103 = vld [vmem:[#allocation4 + $0x88] sm:$0xff]
    %v1104 = vld [vmem:[#allocation4 + $0x90] sm:$0xff]
    %v1105 = vld [vmem:[#allocation4 + $0x98] sm:$0xff]
    %v1106 = vld [vmem:[#allocation4 + $0xa0] sm:$0xff]
    %v1107 = vld [vmem:[#allocation4 + $0xa8] sm:$0xff]
    %v1108 = vld [vmem:[#allocation4 + $0xb0] sm:$0xff]
    %v1109 = vld [vmem:[#allocation4 + $0xb8] sm:$0xff]
    %v1110 = vld [vmem:[#allocation4 + $0xc0] sm:$0xff]
    %v1111 = vld [vmem:[#allocation4 + $0xc8] sm:$0xff]
    %v1112 = vld [vmem:[#allocation4 + $0xd0] sm:$0xff]
    %v1113 = vld [vmem:[#allocation4 + $0xd8] sm:$0xff]
    %v1114 = vld [vmem:[#allocation4 + $0xe0] sm:$0xff]
    %v1115 = vld [vmem:[#allocation4 + $0xe8] sm:$0xff]
    %v1116 = vld [vmem:[#allocation4 + $0xf0] sm:$0xff]
    %v1117 = vld [vmem:[#allocation4 + $0xf8] sm:$0xff]
    %v1118 = vld [vmem:[#allocation4 + $0x100] sm:$0xff]
    %v1119 = vld [vmem:[#allocation4 + $0x108] sm:$0xff]
    %v1120 = vld [vmem:[#allocation4 + $0x110] sm:$0xff]
    %v1121 = vld [vmem:[#allocation4 + $0x118] sm:$0xff]
    %v1122 = vld [vmem:[#allocation4 + $0x120] sm:$0xff]
    %v1123 = vld [vmem:[#allocation4 + $0x128] sm:$0xff]
    %v1124 = vld [vmem:[#allocation4 + $0x130] sm:$0xff]
    %v1125 = vld [vmem:[#allocation4 + $0x138] sm:$0xff]
    %v1126 = vld [vmem:[#allocation4 + $0x140] sm:$0xff]
    %v1127 = vld [vmem:[#allocation4 + $0x148] sm:$0xff]
    %v1128 = vld [vmem:[#allocation4 + $0x150] sm:$0xff]
    %v1129 = vld [vmem:[#allocation4 + $0x158] sm:$0xff]
    %v1130 = vld [vmem:[#allocation4 + $0x160] sm:$0xff]
    %v1131 = vld [vmem:[#allocation4 + $0x168] sm:$0xff]
    %v1132 = vld [vmem:[#allocation4 + $0x170] sm:$0xff]
    %v1133 = vld [vmem:[#allocation4 + $0x178] sm:$0xff]
    %v1134 = vld [vmem:[#allocation4 + $0x180] sm:$0xff]
    %v1135 = vld [vmem:[#allocation4 + $0x188] sm:$0xff]
    %v1136 = vld [vmem:[#allocation4 + $0x190] sm:$0xff]
    %v1137 = vld [vmem:[#allocation4 + $0x198] sm:$0xff]
    %v1138 = vld [vmem:[#allocation4 + $0x1a0] sm:$0xff]
    %v1139 = vld [vmem:[#allocation4 + $0x1a8] sm:$0xff]
    %v1140 = vld [vmem:[#allocation4 + $0x1b0] sm:$0xff]
    %v1141 = vld [vmem:[#allocation4 + $0x1b8] sm:$0xff]
    %v1142 = vld [vmem:[#allocation4 + $0x1c0] sm:$0xff]
    %v1143 = vld [vmem:[#allocation4 + $0x1c8] sm:$0xff]
    %v1144 = vld [vmem:[#allocation4 + $0x1d0] sm:$0xff]
    %v1145 = vld [vmem:[#allocation4 + $0x1d8] sm:$0xff]
    %v1146 = vld [vmem:[#allocation4 + $0x1e0] sm:$0xff]
    %v1147 = vld [vmem:[#allocation4 + $0x1e8] sm:$0xff]
    %v1148 = vld [vmem:[#allocation4 + $0x1f0] sm:$0xff]
    %v1149 = vld [vmem:[#allocation4 + $0x1f8] sm:$0xff]
    %v1150 = vld [vmem:[#allocation4 + $0x200] sm:$0xff]
    %v1151 = vld [vmem:[#allocation4 + $0x208] sm:$0xff]
    %v1152 = vld [vmem:[#allocation4 + $0x210] sm:$0xff]
    %v1153 = vld [vmem:[#allocation4 + $0x218] sm:$0xff]
    %v1154 = vld [vmem:[#allocation4 + $0x220] sm:$0xff]
    %v1155 = vld [vmem:[#allocation4 + $0x228] sm:$0xff]
    %v1156 = vld [vmem:[#allocation4 + $0x230] sm:$0xff]
    %v1157 = vld [vmem:[#allocation4 + $0x238] sm:$0xff]
    %v1158 = vld [vmem:[#allocation4 + $0x240] sm:$0xff]
    %v1159 = vld [vmem:[#allocation4 + $0x248] sm:$0xff]
    %v1160 = vld [vmem:[#allocation4 + $0x250] sm:$0xff]
    %v1161 = vld [vmem:[#allocation4 + $0x258] sm:$0xff]
    %v1162 = vld [vmem:[#allocation4 + $0x260] sm:$0xff]
    %v1163 = vld [vmem:[#allocation4 + $0x268] sm:$0xff]
    %v1164 = vld [vmem:[#allocation4 + $0x270] sm:$0xff]
    %v1165 = vld [vmem:[#allocation4 + $0x278] sm:$0xff]
    %v1166 = vld [vmem:[#allocation4 + $0x280] sm:$0xff]
    %v1167 = vld [vmem:[#allocation4 + $0x288] sm:$0xff]
    %v1168 = vld [vmem:[#allocation4 + $0x290] sm:$0xff]
    %v1169 = vld [vmem:[#allocation4 + $0x298] sm:$0xff]
    %v1170 = vld [vmem:[#allocation4 + $0x2a0] sm:$0xff]
    %v1171 = vld [vmem:[#allocation4 + $0x2a8] sm:$0xff]
    %v1172 = vld [vmem:[#allocation4 + $0x2b0] sm:$0xff]
    %v1173 = vld [vmem:[#allocation4 + $0x2b8] sm:$0xff]
    %v1174 = vld [vmem:[#allocation4 + $0x2c0] sm:$0xff]
    %v1175 = vld [vmem:[#allocation4 + $0x2c8] sm:$0xff]
    %v1176 = vld [vmem:[#allocation4 + $0x2d0] sm:$0xff]
    %v1177 = vld [vmem:[#allocation4 + $0x2d8] sm:$0xff]
    %v1178 = vld [vmem:[#allocation4 + $0x2e0] sm:$0xff]
    %v1179 = vld [vmem:[#allocation4 + $0x2e8] sm:$0xff]
    %v1180 = vld [vmem:[#allocation4 + $0x2f0] sm:$0xff]
    %v1181 = vld [vmem:[#allocation4 + $0x2f8] sm:$0xff]
    %v1182 = vld [vmem:[#allocation4 + $0x300] sm:$0xff]
    %v1183 = vld [vmem:[#allocation4 + $0x308] sm:$0xff]
    %v1184 = vld [vmem:[#allocation4 + $0x310] sm:$0xff]
    %v1185 = vld [vmem:[#allocation4 + $0x318] sm:$0xff]
    %v1186 = vld [vmem:[#allocation4 + $0x320] sm:$0xff]
    %v1187 = vld [vmem:[#allocation4 + $0x328] sm:$0xff]
    %v1188 = vld [vmem:[#allocation4 + $0x330] sm:$0xff]
    %v1189 = vld [vmem:[#allocation4 + $0x338] sm:$0xff]
    %v1190 = vld [vmem:[#allocation4 + $0x340] sm:$0xff]
    %v1191 = vld [vmem:[#allocation4 + $0x348] sm:$0xff]
    %v1192 = vld [vmem:[#allocation4 + $0x350] sm:$0xff]
    %v1193 = vld [vmem:[#allocation4 + $0x358] sm:$0xff]
    %v1194 = vld [vmem:[#allocation4 + $0x360] sm:$0xff]
    %v1195 = vld [vmem:[#allocation4 + $0x368] sm:$0xff]
    %v1196 = vld [vmem:[#allocation4 + $0x370] sm:$0xff]
    %v1197 = vld [vmem:[#allocation4 + $0x378] sm:$0xff]
    %v1198 = vld [vmem:[#allocation4 + $0x380] sm:$0xff]
    %v1199 = vld [vmem:[#allocation4 + $0x388] sm:$0xff]
    %v1200 = vld [vmem:[#allocation4 + $0x390] sm:$0xff]
    %v1201 = vld [vmem:[#allocation4 + $0x398] sm:$0xff]
    %v1202 = vld [vmem:[#allocation4 + $0x3a0] sm:$0xff]
    %v1203 = vld [vmem:[#allocation4 + $0x3a8] sm:$0xff]
    %v1204 = vld [vmem:[#allocation4 + $0x3b0] sm:$0xff]
    %v1205 = vld [vmem:[#allocation4 + $0x3b8] sm:$0xff]
    %v1206 = vld [vmem:[#allocation4 + $0x3c0] sm:$0xff]
    %v1207 = vld [vmem:[#allocation4 + $0x3c8] sm:$0xff]
    %v1208 = vld [vmem:[#allocation4 + $0x3d0] sm:$0xff]
    %v1209 = vld [vmem:[#allocation4 + $0x3d8] sm:$0xff]
    %v1210 = vld [vmem:[#allocation4 + $0x3e0] sm:$0xff]
    %v1211 = vld [vmem:[#allocation4 + $0x3e8] sm:$0xff]
    %v1212 = vld [vmem:[#allocation4 + $0x3f0] sm:$0xff]
    %v1213 = vld [vmem:[#allocation4 + $0x3f8] sm:$0xff]
    %v1214 = vld [vmem:[#allocation4 + $0x400] sm:$0xff]
    %v1215 = vld [vmem:[#allocation4 + $0x408] sm:$0xff]
    %v1216 = vld [vmem:[#allocation4 + $0x410] sm:$0xff]
    %v1217 = vld [vmem:[#allocation4 + $0x418] sm:$0xff]
    %v1218 = vld [vmem:[#allocation4 + $0x420] sm:$0xff]
    %v1219 = vld [vmem:[#allocation4 + $0x428] sm:$0xff]
    %v1220 = vld [vmem:[#allocation4 + $0x430] sm:$0xff]
    %v1221 = vld [vmem:[#allocation4 + $0x438] sm:$0xff]
    %v1222 = vld [vmem:[#allocation4 + $0x440] sm:$0xff]
    %v1223 = vld [vmem:[#allocation4 + $0x448] sm:$0xff]
    %v1224 = vld [vmem:[#allocation4 + $0x450] sm:$0xff]
    %v1225 = vld [vmem:[#allocation4 + $0x458] sm:$0xff]
    %v1226 = vld [vmem:[#allocation4 + $0x460] sm:$0xff]
    %v1227 = vld [vmem:[#allocation4 + $0x468] sm:$0xff]
    %v1228 = vld [vmem:[#allocation4 + $0x470] sm:$0xff]
    %v1229 = vld [vmem:[#allocation4 + $0x478] sm:$0xff]
    %v1230 = vld [vmem:[#allocation4 + $0x480] sm:$0xff]
    %v1231 = vld [vmem:[#allocation4 + $0x488] sm:$0xff]
    %v1232 = vld [vmem:[#allocation4 + $0x490] sm:$0xff]
    %v1233 = vld [vmem:[#allocation4 + $0x498] sm:$0xff]
    %v1234 = vld [vmem:[#allocation4 + $0x4a0] sm:$0xff]
    %v1235 = vld [vmem:[#allocation4 + $0x4a8] sm:$0xff]
    %v1236 = vld [vmem:[#allocation4 + $0x4b0] sm:$0xff]
    %v1237 = vld [vmem:[#allocation4 + $0x4b8] sm:$0xff]
    %v1238 = vld [vmem:[#allocation4 + $0x4c0] sm:$0xff]
    %v1239 = vld [vmem:[#allocation4 + $0x4c8] sm:$0xff]
    %v1240 = vld [vmem:[#allocation4 + $0x4d0] sm:$0xff]
    %v1241 = vld [vmem:[#allocation4 + $0x4d8] sm:$0xff]
    %v1242 = vld [vmem:[#allocation4 + $0x4e0] sm:$0xff]
    %v1243 = vld [vmem:[#allocation4 + $0x4e8] sm:$0xff]
    %v1244 = vld [vmem:[#allocation4 + $0x4f0] sm:$0xff]
    %v1245 = vld [vmem:[#allocation4 + $0x4f8] sm:$0xff]
    %v1246 = vld [vmem:[#allocation4 + $0x500] sm:$0xff]
    %v1247 = vld [vmem:[#allocation4 + $0x508] sm:$0xff]
    %v1248 = vld [vmem:[#allocation4 + $0x510] sm:$0xff]
    %v1249 = vld [vmem:[#allocation4 + $0x518] sm:$0xff]
    %v1250 = vld [vmem:[#allocation4 + $0x520] sm:$0xff]
    %v1251 = vld [vmem:[#allocation4 + $0x528] sm:$0xff]
    %v1252 = vld [vmem:[#allocation4 + $0x530] sm:$0xff]
    %v1253 = vld [vmem:[#allocation4 + $0x538] sm:$0xff]
    %v1254 = vld [vmem:[#allocation4 + $0x540] sm:$0xff]
    %v1255 = vld [vmem:[#allocation4 + $0x548] sm:$0xff]
    %v1256 = vld [vmem:[#allocation4 + $0x550] sm:$0xff]
    %v1257 = vld [vmem:[#allocation4 + $0x558] sm:$0xff]
    %v1258 = vld [vmem:[#allocation4 + $0x560] sm:$0xff]
    %v1259 = vld [vmem:[#allocation4 + $0x568] sm:$0xff]
    %v1260 = vld [vmem:[#allocation4 + $0x570] sm:$0xff]
    %v1261 = vld [vmem:[#allocation4 + $0x578] sm:$0xff]
    %v1262 = vld [vmem:[#allocation4 + $0x580] sm:$0xff]
    %v1263 = vld [vmem:[#allocation4 + $0x588] sm:$0xff]
    %v1264 = vld [vmem:[#allocation4 + $0x590] sm:$0xff]
    %v1265 = vld [vmem:[#allocation4 + $0x598] sm:$0xff]
    %v1266 = vld [vmem:[#allocation4 + $0x5a0] sm:$0xff]
    %v1267 = vld [vmem:[#allocation4 + $0x5a8] sm:$0xff]
    %v1268 = vld [vmem:[#allocation4 + $0x5b0] sm:$0xff]
    %v1269 = vld [vmem:[#allocation4 + $0x5b8] sm:$0xff]
    %v1270 = vld [vmem:[#allocation4 + $0x5c0] sm:$0xff]
    %v1271 = vld [vmem:[#allocation4 + $0x5c8] sm:$0xff]
    %v1272 = vld [vmem:[#allocation4 + $0x5d0] sm:$0xff]
    %v1273 = vld [vmem:[#allocation4 + $0x5d8] sm:$0xff]
    %v1274 = vld [vmem:[#allocation4 + $0x5e0] sm:$0xff]
    %v1275 = vld [vmem:[#allocation4 + $0x5e8] sm:$0xff]
    %v1276 = vld [vmem:[#allocation4 + $0x5f0] sm:$0xff]
    %v1277 = vld [vmem:[#allocation4 + $0x5f8] sm:$0xff]
    %v1278 = vld [vmem:[#allocation4 + $0x600] sm:$0xff]
    %v1279 = vld [vmem:[#allocation4 + $0x608] sm:$0xff]
    %v1280 = vld [vmem:[#allocation4 + $0x610] sm:$0xff]
    %v1281 = vld [vmem:[#allocation4 + $0x618] sm:$0xff]
    %v1282 = vld [vmem:[#allocation4 + $0x620] sm:$0xff]
    %v1283 = vld [vmem:[#allocation4 + $0x628] sm:$0xff]
    %v1284 = vld [vmem:[#allocation4 + $0x630] sm:$0xff]
    %v1285 = vld [vmem:[#allocation4 + $0x638] sm:$0xff]
    %v1286 = vld [vmem:[#allocation4 + $0x640] sm:$0xff]
    %v1287 = vld [vmem:[#allocation4 + $0x648] sm:$0xff]
    %v1288 = vld [vmem:[#allocation4 + $0x650] sm:$0xff]
    %v1289 = vld [vmem:[#allocation4 + $0x658] sm:$0xff]
    %v1290 = vld [vmem:[#allocation4 + $0x660] sm:$0xff]
    %v1291 = vld [vmem:[#allocation4 + $0x668] sm:$0xff]
    %v1292 = vld [vmem:[#allocation4 + $0x670] sm:$0xff]
    %v1293 = vld [vmem:[#allocation4 + $0x678] sm:$0xff]
    %v1294 = vld [vmem:[#allocation4 + $0x680] sm:$0xff]
    %v1295 = vld [vmem:[#allocation4 + $0x688] sm:$0xff]
    %v1296 = vld [vmem:[#allocation4 + $0x690] sm:$0xff]
    %v1297 = vld [vmem:[#allocation4 + $0x698] sm:$0xff]
    %v1298 = vld [vmem:[#allocation4 + $0x6a0] sm:$0xff]
    %v1299 = vld [vmem:[#allocation4 + $0x6a8] sm:$0xff]
    %v1300 = vld [vmem:[#allocation4 + $0x6b0] sm:$0xff]
    %v1301 = vld [vmem:[#allocation4 + $0x6b8] sm:$0xff]
    %v1302 = vld [vmem:[#allocation4 + $0x6c0] sm:$0xff]
    %v1303 = vld [vmem:[#allocation4 + $0x6c8] sm:$0xff]
    %v1304 = vld [vmem:[#allocation4 + $0x6d0] sm:$0xff]
    %v1305 = vld [vmem:[#allocation4 + $0x6d8] sm:$0xff]
    %v1306 = vld [vmem:[#allocation4 + $0x6e0] sm:$0xff]
    %v1307 = vld [vmem:[#allocation4 + $0x6e8] sm:$0xff]
    %v1308 = vld [vmem:[#allocation4 + $0x6f0] sm:$0xff]
    %v1309 = vld [vmem:[#allocation4 + $0x6f8] sm:$0xff]
    %v1310 = vld [vmem:[#allocation4 + $0x700] sm:$0xff]
    %v1311 = vld [vmem:[#allocation4 + $0x708] sm:$0xff]
    %v1312 = vld [vmem:[#allocation4 + $0x710] sm:$0xff]
    %v1313 = vld [vmem:[#allocation4 + $0x718] sm:$0xff]
    %v1314 = vld [vmem:[#allocation4 + $0x720] sm:$0xff]
    %v1315 = vld [vmem:[#allocation4 + $0x728] sm:$0xff]
    %v1316 = vld [vmem:[#allocation4 + $0x730] sm:$0xff]
    %v1317 = vld [vmem:[#allocation4 + $0x738] sm:$0xff]
    %v1318 = vld [vmem:[#allocation4 + $0x740] sm:$0xff]
    %v1319 = vld [vmem:[#allocation4 + $0x748] sm:$0xff]
    %v1320 = vld [vmem:[#allocation4 + $0x750] sm:$0xff]
    %v1321 = vld [vmem:[#allocation4 + $0x758] sm:$0xff]
    %v1322 = vld [vmem:[#allocation4 + $0x760] sm:$0xff]
    %v1323 = vld [vmem:[#allocation4 + $0x768] sm:$0xff]
    %v1324 = vld [vmem:[#allocation4 + $0x770] sm:$0xff]
    %v1325 = vld [vmem:[#allocation4 + $0x778] sm:$0xff]
    %v1326 = vld [vmem:[#allocation4 + $0x780] sm:$0xff]
    %v1327 = vld [vmem:[#allocation4 + $0x788] sm:$0xff]
    %v1328 = vld [vmem:[#allocation4 + $0x790] sm:$0xff]
    %v1329 = vld [vmem:[#allocation4 + $0x798] sm:$0xff]
    %v1330 = vld [vmem:[#allocation4 + $0x7a0] sm:$0xff]
    %v1331 = vld [vmem:[#allocation4 + $0x7a8] sm:$0xff]
    %v1332 = vld [vmem:[#allocation4 + $0x7b0] sm:$0xff]
    %v1333 = vld [vmem:[#allocation4 + $0x7b8] sm:$0xff]
    %v1334 = vld [vmem:[#allocation4 + $0x7c0] sm:$0xff]
    %v1335 = vld [vmem:[#allocation4 + $0x7c8] sm:$0xff]
    %v1336 = vld [vmem:[#allocation4 + $0x7d0] sm:$0xff]
    %v1337 = vld [vmem:[#allocation4 + $0x7d8] sm:$0xff]
    %v1338 = vld [vmem:[#allocation4 + $0x7e0] sm:$0xff]
    %v1339 = vld [vmem:[#allocation4 + $0x7e8] sm:$0xff]
    %v1340 = vld [vmem:[#allocation4 + $0x7f0] sm:$0xff]
    %v1341 = vld [vmem:[#allocation4 + $0x7f8] sm:$0xff]
    %v1342 = vld [vmem:[%s4] sm:$0xf]
    %v1344 = vlaneseq
    %v1345 = vshrl.u32 %v1344, 7
    %v1346 = vsub.s32 0, %v1345
    %v1347 = vrot.slane %v1342, %v1346
    %v1348 = vlaneseq
    %v1349 = vshrl.u32 %v1348, 7
    %v1350 = vsub.s32 1, %v1349
    %v1351 = vrot.slane %v1342, %v1350
    %v1352 = vlaneseq
    %v1353 = vshrl.u32 %v1352, 7
    %v1354 = vsub.s32 2, %v1353
    %v1355 = vrot.slane %v1342, %v1354
    %v1356 = vlaneseq
    %v1357 = vshrl.u32 %v1356, 7
    %v1358 = vsub.s32 3, %v1357
    %v1359 = vrot.slane %v1342, %v1358
    %v1620 = vunpack.c.l.b16 %v1086
    %v1621 = vunpack.c.h.b16 %v1086
    %v1622 = vunpack.c.l.b16 %v1087
    %v1623 = vunpack.c.h.b16 %v1087
    %v1624 = vunpack.c.l.b16 %v1088
    %v1625 = vunpack.c.h.b16 %v1088
    %v1626 = vunpack.c.l.b16 %v1089
    %v1627 = vunpack.c.h.b16 %v1089
    %v1628 = vunpack.c.l.b16 %v1090
    %v1629 = vunpack.c.h.b16 %v1090
    %v1630 = vunpack.c.l.b16 %v1091
    %v1631 = vunpack.c.h.b16 %v1091
    %v1632 = vunpack.c.l.b16 %v1092
    %v1633 = vunpack.c.h.b16 %v1092
    %v1634 = vunpack.c.l.b16 %v1093
    %v1635 = vunpack.c.h.b16 %v1093
    %v1636 = vunpack.c.l.b16 %v1094
    %v1637 = vunpack.c.h.b16 %v1094
    %v1638 = vunpack.c.l.b16 %v1095
    %v1639 = vunpack.c.h.b16 %v1095
    %v1640 = vunpack.c.l.b16 %v1096
    %v1641 = vunpack.c.h.b16 %v1096
    %v1642 = vunpack.c.l.b16 %v1097
    %v1643 = vunpack.c.h.b16 %v1097
    %v1644 = vunpack.c.l.b16 %v1098
    %v1645 = vunpack.c.h.b16 %v1098
    %v1646 = vunpack.c.l.b16 %v1099
    %v1647 = vunpack.c.h.b16 %v1099
    %v1648 = vunpack.c.l.b16 %v1100
    %v1649 = vunpack.c.h.b16 %v1100
    %v1650 = vunpack.c.l.b16 %v1101
    %v1651 = vunpack.c.h.b16 %v1101
    %v1652 = vunpack.c.l.b16 %v1102
    %v1653 = vunpack.c.h.b16 %v1102
    %v1654 = vunpack.c.l.b16 %v1103
    %v1655 = vunpack.c.h.b16 %v1103
    %v1656 = vunpack.c.l.b16 %v1104
    %v1657 = vunpack.c.h.b16 %v1104
    %v1658 = vunpack.c.l.b16 %v1105
    %v1659 = vunpack.c.h.b16 %v1105
    %v1660 = vunpack.c.l.b16 %v1106
    %v1661 = vunpack.c.h.b16 %v1106
    %v1662 = vunpack.c.l.b16 %v1107
    %v1663 = vunpack.c.h.b16 %v1107
    %v1664 = vunpack.c.l.b16 %v1108
    %v1665 = vunpack.c.h.b16 %v1108
    %v1666 = vunpack.c.l.b16 %v1109
    %v1667 = vunpack.c.h.b16 %v1109
    %v1668 = vunpack.c.l.b16 %v1110
    %v1669 = vunpack.c.h.b16 %v1110
    %v1670 = vunpack.c.l.b16 %v1111
    %v1671 = vunpack.c.h.b16 %v1111
    %v1672 = vunpack.c.l.b16 %v1112
    %v1673 = vunpack.c.h.b16 %v1112
    %v1674 = vunpack.c.l.b16 %v1113
    %v1675 = vunpack.c.h.b16 %v1113
    %v1676 = vunpack.c.l.b16 %v1114
    %v1677 = vunpack.c.h.b16 %v1114
    %v1678 = vunpack.c.l.b16 %v1115
    %v1679 = vunpack.c.h.b16 %v1115
    %v1680 = vunpack.c.l.b16 %v1116
    %v1681 = vunpack.c.h.b16 %v1116
    %v1682 = vunpack.c.l.b16 %v1117
    %v1683 = vunpack.c.h.b16 %v1117
    %v1684 = vunpack.c.l.b16 %v1118
    %v1685 = vunpack.c.h.b16 %v1118
    %v1686 = vunpack.c.l.b16 %v1119
    %v1687 = vunpack.c.h.b16 %v1119
    %v1688 = vunpack.c.l.b16 %v1120
    %v1689 = vunpack.c.h.b16 %v1120
    %v1690 = vunpack.c.l.b16 %v1121
    %v1691 = vunpack.c.h.b16 %v1121
    %v1692 = vunpack.c.l.b16 %v1122
    %v1693 = vunpack.c.h.b16 %v1122
    %v1694 = vunpack.c.l.b16 %v1123
    %v1695 = vunpack.c.h.b16 %v1123
    %v1696 = vunpack.c.l.b16 %v1124
    %v1697 = vunpack.c.h.b16 %v1124
    %v1698 = vunpack.c.l.b16 %v1125
    %v1699 = vunpack.c.h.b16 %v1125
    %v1700 = vunpack.c.l.b16 %v1126
    %v1701 = vunpack.c.h.b16 %v1126
    %v1702 = vunpack.c.l.b16 %v1127
    %v1703 = vunpack.c.h.b16 %v1127
    %v1704 = vunpack.c.l.b16 %v1128
    %v1705 = vunpack.c.h.b16 %v1128
    %v1706 = vunpack.c.l.b16 %v1129
    %v1707 = vunpack.c.h.b16 %v1129
    %v1708 = vunpack.c.l.b16 %v1130
    %v1709 = vunpack.c.h.b16 %v1130
    %v1710 = vunpack.c.l.b16 %v1131
    %v1711 = vunpack.c.h.b16 %v1131
    %v1712 = vunpack.c.l.b16 %v1132
    %v1713 = vunpack.c.h.b16 %v1132
    %v1714 = vunpack.c.l.b16 %v1133
    %v1715 = vunpack.c.h.b16 %v1133
    %v1716 = vunpack.c.l.b16 %v1134
    %v1717 = vunpack.c.h.b16 %v1134
    %v1718 = vunpack.c.l.b16 %v1135
    %v1719 = vunpack.c.h.b16 %v1135
    %v1720 = vunpack.c.l.b16 %v1136
    %v1721 = vunpack.c.h.b16 %v1136
    %v1722 = vunpack.c.l.b16 %v1137
    %v1723 = vunpack.c.h.b16 %v1137
    %v1724 = vunpack.c.l.b16 %v1138
    %v1725 = vunpack.c.h.b16 %v1138
    %v1726 = vunpack.c.l.b16 %v1139
    %v1727 = vunpack.c.h.b16 %v1139
    %v1728 = vunpack.c.l.b16 %v1140
    %v1729 = vunpack.c.h.b16 %v1140
    %v1730 = vunpack.c.l.b16 %v1141
    %v1731 = vunpack.c.h.b16 %v1141
    %v1732 = vunpack.c.l.b16 %v1142
    %v1733 = vunpack.c.h.b16 %v1142
    %v1734 = vunpack.c.l.b16 %v1143
    %v1735 = vunpack.c.h.b16 %v1143
    %v1736 = vunpack.c.l.b16 %v1144
    %v1737 = vunpack.c.h.b16 %v1144
    %v1738 = vunpack.c.l.b16 %v1145
    %v1739 = vunpack.c.h.b16 %v1145
    %v1740 = vunpack.c.l.b16 %v1146
    %v1741 = vunpack.c.h.b16 %v1146
    %v1742 = vunpack.c.l.b16 %v1147
    %v1743 = vunpack.c.h.b16 %v1147
    %v1744 = vunpack.c.l.b16 %v1148
    %v1745 = vunpack.c.h.b16 %v1148
    %v1746 = vunpack.c.l.b16 %v1149
    %v1747 = vunpack.c.h.b16 %v1149
    %v1748 = vunpack.c.l.b16 %v1150
    %v1749 = vunpack.c.h.b16 %v1150
    %v1750 = vunpack.c.l.b16 %v1151
    %v1751 = vunpack.c.h.b16 %v1151
    %v1752 = vunpack.c.l.b16 %v1152
    %v1753 = vunpack.c.h.b16 %v1152
    %v1754 = vunpack.c.l.b16 %v1153
    %v1755 = vunpack.c.h.b16 %v1153
    %v1756 = vunpack.c.l.b16 %v1154
    %v1757 = vunpack.c.h.b16 %v1154
    %v1758 = vunpack.c.l.b16 %v1155
    %v1759 = vunpack.c.h.b16 %v1155
    %v1760 = vunpack.c.l.b16 %v1156
    %v1761 = vunpack.c.h.b16 %v1156
    %v1762 = vunpack.c.l.b16 %v1157
    %v1763 = vunpack.c.h.b16 %v1157
    %v1764 = vunpack.c.l.b16 %v1158
    %v1765 = vunpack.c.h.b16 %v1158
    %v1766 = vunpack.c.l.b16 %v1159
    %v1767 = vunpack.c.h.b16 %v1159
    %v1768 = vunpack.c.l.b16 %v1160
    %v1769 = vunpack.c.h.b16 %v1160
    %v1770 = vunpack.c.l.b16 %v1161
    %v1771 = vunpack.c.h.b16 %v1161
    %v1772 = vunpack.c.l.b16 %v1162
    %v1773 = vunpack.c.h.b16 %v1162
    %v1774 = vunpack.c.l.b16 %v1163
    %v1775 = vunpack.c.h.b16 %v1163
    %v1776 = vunpack.c.l.b16 %v1164
    %v1777 = vunpack.c.h.b16 %v1164
    %v1778 = vunpack.c.l.b16 %v1165
    %v1779 = vunpack.c.h.b16 %v1165
    %v1780 = vunpack.c.l.b16 %v1166
    %v1781 = vunpack.c.h.b16 %v1166
    %v1782 = vunpack.c.l.b16 %v1167
    %v1783 = vunpack.c.h.b16 %v1167
    %v1784 = vunpack.c.l.b16 %v1168
    %v1785 = vunpack.c.h.b16 %v1168
    %v1786 = vunpack.c.l.b16 %v1169
    %v1787 = vunpack.c.h.b16 %v1169
    %v1788 = vunpack.c.l.b16 %v1170
    %v1789 = vunpack.c.h.b16 %v1170
    %v1790 = vunpack.c.l.b16 %v1171
    %v1791 = vunpack.c.h.b16 %v1171
    %v1792 = vunpack.c.l.b16 %v1172
    %v1793 = vunpack.c.h.b16 %v1172
    %v1794 = vunpack.c.l.b16 %v1173
    %v1795 = vunpack.c.h.b16 %v1173
    %v1796 = vunpack.c.l.b16 %v1174
    %v1797 = vunpack.c.h.b16 %v1174
    %v1798 = vunpack.c.l.b16 %v1175
    %v1799 = vunpack.c.h.b16 %v1175
    %v1800 = vunpack.c.l.b16 %v1176
    %v1801 = vunpack.c.h.b16 %v1176
    %v1802 = vunpack.c.l.b16 %v1177
    %v1803 = vunpack.c.h.b16 %v1177
    %v1804 = vunpack.c.l.b16 %v1178
    %v1805 = vunpack.c.h.b16 %v1178
    %v1806 = vunpack.c.l.b16 %v1179
    %v1807 = vunpack.c.h.b16 %v1179
    %v1808 = vunpack.c.l.b16 %v1180
    %v1809 = vunpack.c.h.b16 %v1180
    %v1810 = vunpack.c.l.b16 %v1181
    %v1811 = vunpack.c.h.b16 %v1181
    %v1812 = vunpack.c.l.b16 %v1182
    %v1813 = vunpack.c.h.b16 %v1182
    %v1814 = vunpack.c.l.b16 %v1183
    %v1815 = vunpack.c.h.b16 %v1183
    %v1816 = vunpack.c.l.b16 %v1184
    %v1817 = vunpack.c.h.b16 %v1184
    %v1818 = vunpack.c.l.b16 %v1185
    %v1819 = vunpack.c.h.b16 %v1185
    %v1820 = vunpack.c.l.b16 %v1186
    %v1821 = vunpack.c.h.b16 %v1186
    %v1822 = vunpack.c.l.b16 %v1187
    %v1823 = vunpack.c.h.b16 %v1187
    %v1824 = vunpack.c.l.b16 %v1188
    %v1825 = vunpack.c.h.b16 %v1188
    %v1826 = vunpack.c.l.b16 %v1189
    %v1827 = vunpack.c.h.b16 %v1189
    %v1828 = vunpack.c.l.b16 %v1190
    %v1829 = vunpack.c.h.b16 %v1190
    %v1830 = vunpack.c.l.b16 %v1191
    %v1831 = vunpack.c.h.b16 %v1191
    %v1832 = vunpack.c.l.b16 %v1192
    %v1833 = vunpack.c.h.b16 %v1192
    %v1834 = vunpack.c.l.b16 %v1193
    %v1835 = vunpack.c.h.b16 %v1193
    %v1836 = vunpack.c.l.b16 %v1194
    %v1837 = vunpack.c.h.b16 %v1194
    %v1838 = vunpack.c.l.b16 %v1195
    %v1839 = vunpack.c.h.b16 %v1195
    %v1840 = vunpack.c.l.b16 %v1196
    %v1841 = vunpack.c.h.b16 %v1196
    %v1842 = vunpack.c.l.b16 %v1197
    %v1843 = vunpack.c.h.b16 %v1197
    %v1844 = vunpack.c.l.b16 %v1198
    %v1845 = vunpack.c.h.b16 %v1198
    %v1846 = vunpack.c.l.b16 %v1199
    %v1847 = vunpack.c.h.b16 %v1199
    %v1848 = vunpack.c.l.b16 %v1200
    %v1849 = vunpack.c.h.b16 %v1200
    %v1850 = vunpack.c.l.b16 %v1201
    %v1851 = vunpack.c.h.b16 %v1201
    %v1852 = vunpack.c.l.b16 %v1202
    %v1853 = vunpack.c.h.b16 %v1202
    %v1854 = vunpack.c.l.b16 %v1203
    %v1855 = vunpack.c.h.b16 %v1203
    %v1856 = vunpack.c.l.b16 %v1204
    %v1857 = vunpack.c.h.b16 %v1204
    %v1858 = vunpack.c.l.b16 %v1205
    %v1859 = vunpack.c.h.b16 %v1205
    %v1860 = vunpack.c.l.b16 %v1206
    %v1861 = vunpack.c.h.b16 %v1206
    %v1862 = vunpack.c.l.b16 %v1207
    %v1863 = vunpack.c.h.b16 %v1207
    %v1864 = vunpack.c.l.b16 %v1208
    %v1865 = vunpack.c.h.b16 %v1208
    %v1866 = vunpack.c.l.b16 %v1209
    %v1867 = vunpack.c.h.b16 %v1209
    %v1868 = vunpack.c.l.b16 %v1210
    %v1869 = vunpack.c.h.b16 %v1210
    %v1870 = vunpack.c.l.b16 %v1211
    %v1871 = vunpack.c.h.b16 %v1211
    %v1872 = vunpack.c.l.b16 %v1212
    %v1873 = vunpack.c.h.b16 %v1212
    %v1874 = vunpack.c.l.b16 %v1213
    %v1875 = vunpack.c.h.b16 %v1213
    %v1876 = vunpack.c.l.b16 %v1214
    %v1877 = vunpack.c.h.b16 %v1214
    %v1878 = vunpack.c.l.b16 %v1215
    %v1879 = vunpack.c.h.b16 %v1215
    %v1880 = vunpack.c.l.b16 %v1216
    %v1881 = vunpack.c.h.b16 %v1216
    %v1882 = vunpack.c.l.b16 %v1217
    %v1883 = vunpack.c.h.b16 %v1217
    %v1884 = vunpack.c.l.b16 %v1218
    %v1885 = vunpack.c.h.b16 %v1218
    %v1886 = vunpack.c.l.b16 %v1219
    %v1887 = vunpack.c.h.b16 %v1219
    %v1888 = vunpack.c.l.b16 %v1220
    %v1889 = vunpack.c.h.b16 %v1220
    %v1890 = vunpack.c.l.b16 %v1221
    %v1891 = vunpack.c.h.b16 %v1221
    %v1892 = vunpack.c.l.b16 %v1222
    %v1893 = vunpack.c.h.b16 %v1222
    %v1894 = vunpack.c.l.b16 %v1223
    %v1895 = vunpack.c.h.b16 %v1223
    %v1896 = vunpack.c.l.b16 %v1224
    %v1897 = vunpack.c.h.b16 %v1224
    %v1898 = vunpack.c.l.b16 %v1225
    %v1899 = vunpack.c.h.b16 %v1225
    %v1900 = vunpack.c.l.b16 %v1226
    %v1901 = vunpack.c.h.b16 %v1226
    %v1902 = vunpack.c.l.b16 %v1227
    %v1903 = vunpack.c.h.b16 %v1227
    %v1904 = vunpack.c.l.b16 %v1228
    %v1905 = vunpack.c.h.b16 %v1228
    %v1906 = vunpack.c.l.b16 %v1229
    %v1907 = vunpack.c.h.b16 %v1229
    %v1908 = vunpack.c.l.b16 %v1230
    %v1909 = vunpack.c.h.b16 %v1230
    %v1910 = vunpack.c.l.b16 %v1231
    %v1911 = vunpack.c.h.b16 %v1231
    %v1912 = vunpack.c.l.b16 %v1232
    %v1913 = vunpack.c.h.b16 %v1232
    %v1914 = vunpack.c.l.b16 %v1233
    %v1915 = vunpack.c.h.b16 %v1233
    %v1916 = vunpack.c.l.b16 %v1234
    %v1917 = vunpack.c.h.b16 %v1234
    %v1918 = vunpack.c.l.b16 %v1235
    %v1919 = vunpack.c.h.b16 %v1235
    %v1920 = vunpack.c.l.b16 %v1236
    %v1921 = vunpack.c.h.b16 %v1236
    %v1922 = vunpack.c.l.b16 %v1237
    %v1923 = vunpack.c.h.b16 %v1237
    %v1924 = vunpack.c.l.b16 %v1238
    %v1925 = vunpack.c.h.b16 %v1238
    %v1926 = vunpack.c.l.b16 %v1239
    %v1927 = vunpack.c.h.b16 %v1239
    %v1928 = vunpack.c.l.b16 %v1240
    %v1929 = vunpack.c.h.b16 %v1240
    %v1930 = vunpack.c.l.b16 %v1241
    %v1931 = vunpack.c.h.b16 %v1241
    %v1932 = vunpack.c.l.b16 %v1242
    %v1933 = vunpack.c.h.b16 %v1242
    %v1934 = vunpack.c.l.b16 %v1243
    %v1935 = vunpack.c.h.b16 %v1243
    %v1936 = vunpack.c.l.b16 %v1244
    %v1937 = vunpack.c.h.b16 %v1244
    %v1938 = vunpack.c.l.b16 %v1245
    %v1939 = vunpack.c.h.b16 %v1245
    %v1940 = vunpack.c.l.b16 %v1246
    %v1941 = vunpack.c.h.b16 %v1246
    %v1942 = vunpack.c.l.b16 %v1247
    %v1943 = vunpack.c.h.b16 %v1247
    %v1944 = vunpack.c.l.b16 %v1248
    %v1945 = vunpack.c.h.b16 %v1248
    %v1946 = vunpack.c.l.b16 %v1249
    %v1947 = vunpack.c.h.b16 %v1249
    %v1948 = vunpack.c.l.b16 %v1250
    %v1949 = vunpack.c.h.b16 %v1250
    %v1950 = vunpack.c.l.b16 %v1251
    %v1951 = vunpack.c.h.b16 %v1251
    %v1952 = vunpack.c.l.b16 %v1252
    %v1953 = vunpack.c.h.b16 %v1252
    %v1954 = vunpack.c.l.b16 %v1253
    %v1955 = vunpack.c.h.b16 %v1253
    %v1956 = vunpack.c.l.b16 %v1254
    %v1957 = vunpack.c.h.b16 %v1254
    %v1958 = vunpack.c.l.b16 %v1255
    %v1959 = vunpack.c.h.b16 %v1255
    %v1960 = vunpack.c.l.b16 %v1256
    %v1961 = vunpack.c.h.b16 %v1256
    %v1962 = vunpack.c.l.b16 %v1257
    %v1963 = vunpack.c.h.b16 %v1257
    %v1964 = vunpack.c.l.b16 %v1258
    %v1965 = vunpack.c.h.b16 %v1258
    %v1966 = vunpack.c.l.b16 %v1259
    %v1967 = vunpack.c.h.b16 %v1259
    %v1968 = vunpack.c.l.b16 %v1260
    %v1969 = vunpack.c.h.b16 %v1260
    %v1970 = vunpack.c.l.b16 %v1261
    %v1971 = vunpack.c.h.b16 %v1261
    %v1972 = vunpack.c.l.b16 %v1262
    %v1973 = vunpack.c.h.b16 %v1262
    %v1974 = vunpack.c.l.b16 %v1263
    %v1975 = vunpack.c.h.b16 %v1263
    %v1976 = vunpack.c.l.b16 %v1264
    %v1977 = vunpack.c.h.b16 %v1264
    %v1978 = vunpack.c.l.b16 %v1265
    %v1979 = vunpack.c.h.b16 %v1265
    %v1980 = vunpack.c.l.b16 %v1266
    %v1981 = vunpack.c.h.b16 %v1266
    %v1982 = vunpack.c.l.b16 %v1267
    %v1983 = vunpack.c.h.b16 %v1267
    %v1984 = vunpack.c.l.b16 %v1268
    %v1985 = vunpack.c.h.b16 %v1268
    %v1986 = vunpack.c.l.b16 %v1269
    %v1987 = vunpack.c.h.b16 %v1269
    %v1988 = vunpack.c.l.b16 %v1270
    %v1989 = vunpack.c.h.b16 %v1270
    %v1990 = vunpack.c.l.b16 %v1271
    %v1991 = vunpack.c.h.b16 %v1271
    %v1992 = vunpack.c.l.b16 %v1272
    %v1993 = vunpack.c.h.b16 %v1272
    %v1994 = vunpack.c.l.b16 %v1273
    %v1995 = vunpack.c.h.b16 %v1273
    %v1996 = vunpack.c.l.b16 %v1274
    %v1997 = vunpack.c.h.b16 %v1274
    %v1998 = vunpack.c.l.b16 %v1275
    %v1999 = vunpack.c.h.b16 %v1275
    %v2000 = vunpack.c.l.b16 %v1276
    %v2001 = vunpack.c.h.b16 %v1276
    %v2002 = vunpack.c.l.b16 %v1277
    %v2003 = vunpack.c.h.b16 %v1277
    %v2004 = vunpack.c.l.b16 %v1278
    %v2005 = vunpack.c.h.b16 %v1278
    %v2006 = vunpack.c.l.b16 %v1279
    %v2007 = vunpack.c.h.b16 %v1279
    %v2008 = vunpack.c.l.b16 %v1280
    %v2009 = vunpack.c.h.b16 %v1280
    %v2010 = vunpack.c.l.b16 %v1281
    %v2011 = vunpack.c.h.b16 %v1281
    %v2012 = vunpack.c.l.b16 %v1282
    %v2013 = vunpack.c.h.b16 %v1282
    %v2014 = vunpack.c.l.b16 %v1283
    %v2015 = vunpack.c.h.b16 %v1283
    %v2016 = vunpack.c.l.b16 %v1284
    %v2017 = vunpack.c.h.b16 %v1284
    %v2018 = vunpack.c.l.b16 %v1285
    %v2019 = vunpack.c.h.b16 %v1285
    %v2020 = vunpack.c.l.b16 %v1286
    %v2021 = vunpack.c.h.b16 %v1286
    %v2022 = vunpack.c.l.b16 %v1287
    %v2023 = vunpack.c.h.b16 %v1287
    %v2024 = vunpack.c.l.b16 %v1288
    %v2025 = vunpack.c.h.b16 %v1288
    %v2026 = vunpack.c.l.b16 %v1289
    %v2027 = vunpack.c.h.b16 %v1289
    %v2028 = vunpack.c.l.b16 %v1290
    %v2029 = vunpack.c.h.b16 %v1290
    %v2030 = vunpack.c.l.b16 %v1291
    %v2031 = vunpack.c.h.b16 %v1291
    %v2032 = vunpack.c.l.b16 %v1292
    %v2033 = vunpack.c.h.b16 %v1292
    %v2034 = vunpack.c.l.b16 %v1293
    %v2035 = vunpack.c.h.b16 %v1293
    %v2036 = vunpack.c.l.b16 %v1294
    %v2037 = vunpack.c.h.b16 %v1294
    %v2038 = vunpack.c.l.b16 %v1295
    %v2039 = vunpack.c.h.b16 %v1295
    %v2040 = vunpack.c.l.b16 %v1296
    %v2041 = vunpack.c.h.b16 %v1296
    %v2042 = vunpack.c.l.b16 %v1297
    %v2043 = vunpack.c.h.b16 %v1297
    %v2044 = vunpack.c.l.b16 %v1298
    %v2045 = vunpack.c.h.b16 %v1298
    %v2046 = vunpack.c.l.b16 %v1299
    %v2047 = vunpack.c.h.b16 %v1299
    %v2048 = vunpack.c.l.b16 %v1300
    %v2049 = vunpack.c.h.b16 %v1300
    %v2050 = vunpack.c.l.b16 %v1301
    %v2051 = vunpack.c.h.b16 %v1301
    %v2052 = vunpack.c.l.b16 %v1302
    %v2053 = vunpack.c.h.b16 %v1302
    %v2054 = vunpack.c.l.b16 %v1303
    %v2055 = vunpack.c.h.b16 %v1303
    %v2056 = vunpack.c.l.b16 %v1304
    %v2057 = vunpack.c.h.b16 %v1304
    %v2058 = vunpack.c.l.b16 %v1305
    %v2059 = vunpack.c.h.b16 %v1305
    %v2060 = vunpack.c.l.b16 %v1306
    %v2061 = vunpack.c.h.b16 %v1306
    %v2062 = vunpack.c.l.b16 %v1307
    %v2063 = vunpack.c.h.b16 %v1307
    %v2064 = vunpack.c.l.b16 %v1308
    %v2065 = vunpack.c.h.b16 %v1308
    %v2066 = vunpack.c.l.b16 %v1309
    %v2067 = vunpack.c.h.b16 %v1309
    %v2068 = vunpack.c.l.b16 %v1310
    %v2069 = vunpack.c.h.b16 %v1310
    %v2070 = vunpack.c.l.b16 %v1311
    %v2071 = vunpack.c.h.b16 %v1311
    %v2072 = vunpack.c.l.b16 %v1312
    %v2073 = vunpack.c.h.b16 %v1312
    %v2074 = vunpack.c.l.b16 %v1313
    %v2075 = vunpack.c.h.b16 %v1313
    %v2076 = vunpack.c.l.b16 %v1314
    %v2077 = vunpack.c.h.b16 %v1314
    %v2078 = vunpack.c.l.b16 %v1315
    %v2079 = vunpack.c.h.b16 %v1315
    %v2080 = vunpack.c.l.b16 %v1316
    %v2081 = vunpack.c.h.b16 %v1316
    %v2082 = vunpack.c.l.b16 %v1317
    %v2083 = vunpack.c.h.b16 %v1317
    %v2084 = vunpack.c.l.b16 %v1318
    %v2085 = vunpack.c.h.b16 %v1318
    %v2086 = vunpack.c.l.b16 %v1319
    %v2087 = vunpack.c.h.b16 %v1319
    %v2088 = vunpack.c.l.b16 %v1320
    %v2089 = vunpack.c.h.b16 %v1320
    %v2090 = vunpack.c.l.b16 %v1321
    %v2091 = vunpack.c.h.b16 %v1321
    %v2092 = vunpack.c.l.b16 %v1322
    %v2093 = vunpack.c.h.b16 %v1322
    %v2094 = vunpack.c.l.b16 %v1323
    %v2095 = vunpack.c.h.b16 %v1323
    %v2096 = vunpack.c.l.b16 %v1324
    %v2097 = vunpack.c.h.b16 %v1324
    %v2098 = vunpack.c.l.b16 %v1325
    %v2099 = vunpack.c.h.b16 %v1325
    %v2100 = vunpack.c.l.b16 %v1326
    %v2101 = vunpack.c.h.b16 %v1326
    %v2102 = vunpack.c.l.b16 %v1327
    %v2103 = vunpack.c.h.b16 %v1327
    %v2104 = vunpack.c.l.b16 %v1328
    %v2105 = vunpack.c.h.b16 %v1328
    %v2106 = vunpack.c.l.b16 %v1329
    %v2107 = vunpack.c.h.b16 %v1329
    %v2108 = vunpack.c.l.b16 %v1330
    %v2109 = vunpack.c.h.b16 %v1330
    %v2110 = vunpack.c.l.b16 %v1331
    %v2111 = vunpack.c.h.b16 %v1331
    %v2112 = vunpack.c.l.b16 %v1332
    %v2113 = vunpack.c.h.b16 %v1332
    %v2114 = vunpack.c.l.b16 %v1333
    %v2115 = vunpack.c.h.b16 %v1333
    %v2116 = vunpack.c.l.b16 %v1334
    %v2117 = vunpack.c.h.b16 %v1334
    %v2118 = vunpack.c.l.b16 %v1335
    %v2119 = vunpack.c.h.b16 %v1335
    %v2120 = vunpack.c.l.b16 %v1336
    %v2121 = vunpack.c.h.b16 %v1336
    %v2122 = vunpack.c.l.b16 %v1337
    %v2123 = vunpack.c.h.b16 %v1337
    %v2124 = vunpack.c.l.b16 %v1338
    %v2125 = vunpack.c.h.b16 %v1338
    %v2126 = vunpack.c.l.b16 %v1339
    %v2127 = vunpack.c.h.b16 %v1339
    %v2128 = vunpack.c.l.b16 %v1340
    %v2129 = vunpack.c.h.b16 %v1340
    %v2130 = vunpack.c.l.b16 %v1341
    %v2131 = vunpack.c.h.b16 %v1341
    %v2132 = vpack.c.b16 %v1624, %v1620
    %v2133 = vpack.c.b16 %v1625, %v1621
    %v2134 = vpack.c.b16 %v1626, %v1622
    %v2135 = vpack.c.b16 %v1627, %v1623
    %v2136 = vpack.c.b16 %v1632, %v1628
    %v2137 = vpack.c.b16 %v1633, %v1629
    %v2138 = vpack.c.b16 %v1634, %v1630
    %v2139 = vpack.c.b16 %v1635, %v1631
    %v2140 = vpack.c.b16 %v1640, %v1636
    %v2141 = vpack.c.b16 %v1641, %v1637
    %v2142 = vpack.c.b16 %v1642, %v1638
    %v2143 = vpack.c.b16 %v1643, %v1639
    %v2144 = vpack.c.b16 %v1648, %v1644
    %v2145 = vpack.c.b16 %v1649, %v1645
    %v2146 = vpack.c.b16 %v1650, %v1646
    %v2147 = vpack.c.b16 %v1651, %v1647
    %v2148 = vpack.c.b16 %v1656, %v1652
    %v2149 = vpack.c.b16 %v1657, %v1653
    %v2150 = vpack.c.b16 %v1658, %v1654
    %v2151 = vpack.c.b16 %v1659, %v1655
    %v2152 = vpack.c.b16 %v1664, %v1660
    %v2153 = vpack.c.b16 %v1665, %v1661
    %v2154 = vpack.c.b16 %v1666, %v1662
    %v2155 = vpack.c.b16 %v1667, %v1663
    %v2156 = vpack.c.b16 %v1672, %v1668
    %v2157 = vpack.c.b16 %v1673, %v1669
    %v2158 = vpack.c.b16 %v1674, %v1670
    %v2159 = vpack.c.b16 %v1675, %v1671
    %v2160 = vpack.c.b16 %v1680, %v1676
    %v2161 = vpack.c.b16 %v1681, %v1677
    %v2162 = vpack.c.b16 %v1682, %v1678
    %v2163 = vpack.c.b16 %v1683, %v1679
    %v2164 = vpack.c.b16 %v1688, %v1684
    %v2165 = vpack.c.b16 %v1689, %v1685
    %v2166 = vpack.c.b16 %v1690, %v1686
    %v2167 = vpack.c.b16 %v1691, %v1687
    %v2168 = vpack.c.b16 %v1696, %v1692
    %v2169 = vpack.c.b16 %v1697, %v1693
    %v2170 = vpack.c.b16 %v1698, %v1694
    %v2171 = vpack.c.b16 %v1699, %v1695
    %v2172 = vpack.c.b16 %v1704, %v1700
    %v2173 = vpack.c.b16 %v1705, %v1701
    %v2174 = vpack.c.b16 %v1706, %v1702
    %v2175 = vpack.c.b16 %v1707, %v1703
    %v2176 = vpack.c.b16 %v1712, %v1708
    %v2177 = vpack.c.b16 %v1713, %v1709
    %v2178 = vpack.c.b16 %v1714, %v1710
    %v2179 = vpack.c.b16 %v1715, %v1711
    %v2180 = vpack.c.b16 %v1720, %v1716
    %v2181 = vpack.c.b16 %v1721, %v1717
    %v2182 = vpack.c.b16 %v1722, %v1718
    %v2183 = vpack.c.b16 %v1723, %v1719
    %v2184 = vpack.c.b16 %v1728, %v1724
    %v2185 = vpack.c.b16 %v1729, %v1725
    %v2186 = vpack.c.b16 %v1730, %v1726
    %v2187 = vpack.c.b16 %v1731, %v1727
    %v2188 = vpack.c.b16 %v1736, %v1732
    %v2189 = vpack.c.b16 %v1737, %v1733
    %v2190 = vpack.c.b16 %v1738, %v1734
    %v2191 = vpack.c.b16 %v1739, %v1735
    %v2192 = vpack.c.b16 %v1744, %v1740
    %v2193 = vpack.c.b16 %v1745, %v1741
    %v2194 = vpack.c.b16 %v1746, %v1742
    %v2195 = vpack.c.b16 %v1747, %v1743
    %v2196 = vpack.c.b16 %v1752, %v1748
    %v2197 = vpack.c.b16 %v1753, %v1749
    %v2198 = vpack.c.b16 %v1754, %v1750
    %v2199 = vpack.c.b16 %v1755, %v1751
    %v2200 = vpack.c.b16 %v1760, %v1756
    %v2201 = vpack.c.b16 %v1761, %v1757
    %v2202 = vpack.c.b16 %v1762, %v1758
    %v2203 = vpack.c.b16 %v1763, %v1759
    %v2204 = vpack.c.b16 %v1768, %v1764
    %v2205 = vpack.c.b16 %v1769, %v1765
    %v2206 = vpack.c.b16 %v1770, %v1766
    %v2207 = vpack.c.b16 %v1771, %v1767
    %v2208 = vpack.c.b16 %v1776, %v1772
    %v2209 = vpack.c.b16 %v1777, %v1773
    %v2210 = vpack.c.b16 %v1778, %v1774
    %v2211 = vpack.c.b16 %v1779, %v1775
    %v2212 = vpack.c.b16 %v1784, %v1780
    %v2213 = vpack.c.b16 %v1785, %v1781
    %v2214 = vpack.c.b16 %v1786, %v1782
    %v2215 = vpack.c.b16 %v1787, %v1783
    %v2216 = vpack.c.b16 %v1792, %v1788
    %v2217 = vpack.c.b16 %v1793, %v1789
    %v2218 = vpack.c.b16 %v1794, %v1790
    %v2219 = vpack.c.b16 %v1795, %v1791
    %v2220 = vpack.c.b16 %v1800, %v1796
    %v2221 = vpack.c.b16 %v1801, %v1797
    %v2222 = vpack.c.b16 %v1802, %v1798
    %v2223 = vpack.c.b16 %v1803, %v1799
    %v2224 = vpack.c.b16 %v1808, %v1804
    %v2225 = vpack.c.b16 %v1809, %v1805
    %v2226 = vpack.c.b16 %v1810, %v1806
    %v2227 = vpack.c.b16 %v1811, %v1807
    %v2228 = vpack.c.b16 %v1816, %v1812
    %v2229 = vpack.c.b16 %v1817, %v1813
    %v2230 = vpack.c.b16 %v1818, %v1814
    %v2231 = vpack.c.b16 %v1819, %v1815
    %v2232 = vpack.c.b16 %v1824, %v1820
    %v2233 = vpack.c.b16 %v1825, %v1821
    %v2234 = vpack.c.b16 %v1826, %v1822
    %v2235 = vpack.c.b16 %v1827, %v1823
    %v2236 = vpack.c.b16 %v1832, %v1828
    %v2237 = vpack.c.b16 %v1833, %v1829
    %v2238 = vpack.c.b16 %v1834, %v1830
    %v2239 = vpack.c.b16 %v1835, %v1831
    %v2240 = vpack.c.b16 %v1840, %v1836
    %v2241 = vpack.c.b16 %v1841, %v1837
    %v2242 = vpack.c.b16 %v1842, %v1838
    %v2243 = vpack.c.b16 %v1843, %v1839
    %v2244 = vpack.c.b16 %v1848, %v1844
    %v2245 = vpack.c.b16 %v1849, %v1845
    %v2246 = vpack.c.b16 %v1850, %v1846
    %v2247 = vpack.c.b16 %v1851, %v1847
    %v2248 = vpack.c.b16 %v1856, %v1852
    %v2249 = vpack.c.b16 %v1857, %v1853
    %v2250 = vpack.c.b16 %v1858, %v1854
    %v2251 = vpack.c.b16 %v1859, %v1855
    %v2252 = vpack.c.b16 %v1864, %v1860
    %v2253 = vpack.c.b16 %v1865, %v1861
    %v2254 = vpack.c.b16 %v1866, %v1862
    %v2255 = vpack.c.b16 %v1867, %v1863
    %v2256 = vpack.c.b16 %v1872, %v1868
    %v2257 = vpack.c.b16 %v1873, %v1869
    %v2258 = vpack.c.b16 %v1874, %v1870
    %v2259 = vpack.c.b16 %v1875, %v1871
    %v2260 = vpack.c.b16 %v1880, %v1876
    %v2261 = vpack.c.b16 %v1881, %v1877
    %v2262 = vpack.c.b16 %v1882, %v1878
    %v2263 = vpack.c.b16 %v1883, %v1879
    %v2264 = vpack.c.b16 %v1888, %v1884
    %v2265 = vpack.c.b16 %v1889, %v1885
    %v2266 = vpack.c.b16 %v1890, %v1886
    %v2267 = vpack.c.b16 %v1891, %v1887
    %v2268 = vpack.c.b16 %v1896, %v1892
    %v2269 = vpack.c.b16 %v1897, %v1893
    %v2270 = vpack.c.b16 %v1898, %v1894
    %v2271 = vpack.c.b16 %v1899, %v1895
    %v2272 = vpack.c.b16 %v1904, %v1900
    %v2273 = vpack.c.b16 %v1905, %v1901
    %v2274 = vpack.c.b16 %v1906, %v1902
    %v2275 = vpack.c.b16 %v1907, %v1903
    %v2276 = vpack.c.b16 %v1912, %v1908
    %v2277 = vpack.c.b16 %v1913, %v1909
    %v2278 = vpack.c.b16 %v1914, %v1910
    %v2279 = vpack.c.b16 %v1915, %v1911
    %v2280 = vpack.c.b16 %v1920, %v1916
    %v2281 = vpack.c.b16 %v1921, %v1917
    %v2282 = vpack.c.b16 %v1922, %v1918
    %v2283 = vpack.c.b16 %v1923, %v1919
    %v2284 = vpack.c.b16 %v1928, %v1924
    %v2285 = vpack.c.b16 %v1929, %v1925
    %v2286 = vpack.c.b16 %v1930, %v1926
    %v2287 = vpack.c.b16 %v1931, %v1927
    %v2288 = vpack.c.b16 %v1936, %v1932
    %v2289 = vpack.c.b16 %v1937, %v1933
    %v2290 = vpack.c.b16 %v1938, %v1934
    %v2291 = vpack.c.b16 %v1939, %v1935
    %v2292 = vpack.c.b16 %v1944, %v1940
    %v2293 = vpack.c.b16 %v1945, %v1941
    %v2294 = vpack.c.b16 %v1946, %v1942
    %v2295 = vpack.c.b16 %v1947, %v1943
    %v2296 = vpack.c.b16 %v1952, %v1948
    %v2297 = vpack.c.b16 %v1953, %v1949
    %v2298 = vpack.c.b16 %v1954, %v1950
    %v2299 = vpack.c.b16 %v1955, %v1951
    %v2300 = vpack.c.b16 %v1960, %v1956
    %v2301 = vpack.c.b16 %v1961, %v1957
    %v2302 = vpack.c.b16 %v1962, %v1958
    %v2303 = vpack.c.b16 %v1963, %v1959
    %v2304 = vpack.c.b16 %v1968, %v1964
    %v2305 = vpack.c.b16 %v1969, %v1965
    %v2306 = vpack.c.b16 %v1970, %v1966
    %v2307 = vpack.c.b16 %v1971, %v1967
    %v2308 = vpack.c.b16 %v1976, %v1972
    %v2309 = vpack.c.b16 %v1977, %v1973
    %v2310 = vpack.c.b16 %v1978, %v1974
    %v2311 = vpack.c.b16 %v1979, %v1975
    %v2312 = vpack.c.b16 %v1984, %v1980
    %v2313 = vpack.c.b16 %v1985, %v1981
    %v2314 = vpack.c.b16 %v1986, %v1982
    %v2315 = vpack.c.b16 %v1987, %v1983
    %v2316 = vpack.c.b16 %v1992, %v1988
    %v2317 = vpack.c.b16 %v1993, %v1989
    %v2318 = vpack.c.b16 %v1994, %v1990
    %v2319 = vpack.c.b16 %v1995, %v1991
    %v2320 = vpack.c.b16 %v2000, %v1996
    %v2321 = vpack.c.b16 %v2001, %v1997
    %v2322 = vpack.c.b16 %v2002, %v1998
    %v2323 = vpack.c.b16 %v2003, %v1999
    %v2324 = vpack.c.b16 %v2008, %v2004
    %v2325 = vpack.c.b16 %v2009, %v2005
    %v2326 = vpack.c.b16 %v2010, %v2006
    %v2327 = vpack.c.b16 %v2011, %v2007
    %v2328 = vpack.c.b16 %v2016, %v2012
    %v2329 = vpack.c.b16 %v2017, %v2013
    %v2330 = vpack.c.b16 %v2018, %v2014
    %v2331 = vpack.c.b16 %v2019, %v2015
    %v2332 = vpack.c.b16 %v2024, %v2020
    %v2333 = vpack.c.b16 %v2025, %v2021
    %v2334 = vpack.c.b16 %v2026, %v2022
    %v2335 = vpack.c.b16 %v2027, %v2023
    %v2336 = vpack.c.b16 %v2032, %v2028
    %v2337 = vpack.c.b16 %v2033, %v2029
    %v2338 = vpack.c.b16 %v2034, %v2030
    %v2339 = vpack.c.b16 %v2035, %v2031
    %v2340 = vpack.c.b16 %v2040, %v2036
    %v2341 = vpack.c.b16 %v2041, %v2037
    %v2342 = vpack.c.b16 %v2042, %v2038
    %v2343 = vpack.c.b16 %v2043, %v2039
    %v2344 = vpack.c.b16 %v2048, %v2044
    %v2345 = vpack.c.b16 %v2049, %v2045
    %v2346 = vpack.c.b16 %v2050, %v2046
    %v2347 = vpack.c.b16 %v2051, %v2047
    %v2348 = vpack.c.b16 %v2056, %v2052
    %v2349 = vpack.c.b16 %v2057, %v2053
    %v2350 = vpack.c.b16 %v2058, %v2054
    %v2351 = vpack.c.b16 %v2059, %v2055
    %v2352 = vpack.c.b16 %v2064, %v2060
    %v2353 = vpack.c.b16 %v2065, %v2061
    %v2354 = vpack.c.b16 %v2066, %v2062
    %v2355 = vpack.c.b16 %v2067, %v2063
    %v2356 = vpack.c.b16 %v2072, %v2068
    %v2357 = vpack.c.b16 %v2073, %v2069
    %v2358 = vpack.c.b16 %v2074, %v2070
    %v2359 = vpack.c.b16 %v2075, %v2071
    %v2360 = vpack.c.b16 %v2080, %v2076
    %v2361 = vpack.c.b16 %v2081, %v2077
    %v2362 = vpack.c.b16 %v2082, %v2078
    %v2363 = vpack.c.b16 %v2083, %v2079
    %v2364 = vpack.c.b16 %v2088, %v2084
    %v2365 = vpack.c.b16 %v2089, %v2085
    %v2366 = vpack.c.b16 %v2090, %v2086
    %v2367 = vpack.c.b16 %v2091, %v2087
    %v2368 = vpack.c.b16 %v2096, %v2092
    %v2369 = vpack.c.b16 %v2097, %v2093
    %v2370 = vpack.c.b16 %v2098, %v2094
    %v2371 = vpack.c.b16 %v2099, %v2095
    %v2372 = vpack.c.b16 %v2104, %v2100
    %v2373 = vpack.c.b16 %v2105, %v2101
    %v2374 = vpack.c.b16 %v2106, %v2102
    %v2375 = vpack.c.b16 %v2107, %v2103
    %v2376 = vpack.c.b16 %v2112, %v2108
    %v2377 = vpack.c.b16 %v2113, %v2109
    %v2378 = vpack.c.b16 %v2114, %v2110
    %v2379 = vpack.c.b16 %v2115, %v2111
    %v2380 = vpack.c.b16 %v2120, %v2116
    %v2381 = vpack.c.b16 %v2121, %v2117
    %v2382 = vpack.c.b16 %v2122, %v2118
    %v2383 = vpack.c.b16 %v2123, %v2119
    %v2384 = vpack.c.b16 %v2128, %v2124
    %v2385 = vpack.c.b16 %v2129, %v2125
    %v2386 = vpack.c.b16 %v2130, %v2126
    %v2387 = vpack.c.b16 %v2131, %v2127
    %2644 = vmatprep.subr.bf16.mxu0 %v2133
    %2645 = vmatpush1.bf16.msra.mxu0 %v2132
    %2646 = vmatprep.subr.bf16.mxu0 %v2137
    %2647 = vmatpush1.bf16.msra.mxu0 %v2136
    %2648 = vmatprep.subr.bf16.mxu0 %v2141
    %2649 = vmatpush1.bf16.msra.mxu0 %v2140
    %2650 = vmatprep.subr.bf16.mxu0 %v2145
    %2651 = vmatpush1.bf16.msra.mxu0 %v2144
    %2652 = vmatprep.subr.bf16.mxu0 %v2149
    %2653 = vmatpush1.bf16.msra.mxu0 %v2148
    %2654 = vmatprep.subr.bf16.mxu0 %v2153
    %2655 = vmatpush1.bf16.msra.mxu0 %v2152
    %2656 = vmatprep.subr.bf16.mxu0 %v2157
    %2657 = vmatpush1.bf16.msra.mxu0 %v2156
    %2658 = vmatprep.subr.bf16.mxu0 %v2161
    %2659 = vmatpush1.bf16.msra.mxu0 %v2160
    %2660 = vmatprep.subr.bf16.mxu0 %v2165
    %2661 = vmatpush1.bf16.msra.mxu0 %v2164
    %2662 = vmatprep.subr.bf16.mxu0 %v2169
    %2663 = vmatpush1.bf16.msra.mxu0 %v2168
    %2664 = vmatprep.subr.bf16.mxu0 %v2173
    %2665 = vmatpush1.bf16.msra.mxu0 %v2172
    %2666 = vmatprep.subr.bf16.mxu0 %v2177
    %2667 = vmatpush1.bf16.msra.mxu0 %v2176
    %2668 = vmatprep.subr.bf16.mxu0 %v2181
    %2669 = vmatpush1.bf16.msra.mxu0 %v2180
    %2670 = vmatprep.subr.bf16.mxu0 %v2185
    %2671 = vmatpush1.bf16.msra.mxu0 %v2184
    %2672 = vmatprep.subr.bf16.mxu0 %v2189
    %2673 = vmatpush1.bf16.msra.mxu0 %v2188
    %2674 = vmatprep.subr.bf16.mxu0 %v2193
    %2675 = vmatpush1.bf16.msra.mxu0 %v2192
    %2676 = vmatprep.mubr.bf16.mxu0 %v1079
    %2677 = vmatmul.mubr.bf16.gmra.mrb[0].mxu0 %v1078
    %v2678 = vpop.f32.mrb[0].mxu0
    %v2679 = vadd.f32 %v1347, %v2678
    %v2680 = vpop.f32.mrb[0].mxu0
    %v2681 = vadd.f32 %v1351, %v2680
    %v2682 = vpop.f32.mrb[0].mxu0
    %v2683 = vadd.f32 %v1347, %v2682
    %v2684 = vpop.f32.mrb[0].mxu0
    %v2685 = vadd.f32 %v1351, %v2684
    %2686 = vdwg.mxu0
    %2687 = vmatprep.subr.bf16.mxu0 %v2197
    %2688 = vmatpush1.bf16.msra.mxu0 %v2196
    %2689 = vmatprep.subr.bf16.mxu0 %v2201
    %2690 = vmatpush1.bf16.msra.mxu0 %v2200
    %2691 = vmatprep.subr.bf16.mxu0 %v2205
    %2692 = vmatpush1.bf16.msra.mxu0 %v2204
    %2693 = vmatprep.subr.bf16.mxu0 %v2209
    %2694 = vmatpush1.bf16.msra.mxu0 %v2208
    %2695 = vmatprep.subr.bf16.mxu0 %v2213
    %2696 = vmatpush1.bf16.msra.mxu0 %v2212
    %2697 = vmatprep.subr.bf16.mxu0 %v2217
    %2698 = vmatpush1.bf16.msra.mxu0 %v2216
    %2699 = vmatprep.subr.bf16.mxu0 %v2221
    %2700 = vmatpush1.bf16.msra.mxu0 %v2220
    %2701 = vmatprep.subr.bf16.mxu0 %v2225
    %2702 = vmatpush1.bf16.msra.mxu0 %v2224
    %2703 = vmatprep.subr.bf16.mxu0 %v2229
    %2704 = vmatpush1.bf16.msra.mxu0 %v2228
    %2705 = vmatprep.subr.bf16.mxu0 %v2233
    %2706 = vmatpush1.bf16.msra.mxu0 %v2232
    %2707 = vmatprep.subr.bf16.mxu0 %v2237
    %2708 = vmatpush1.bf16.msra.mxu0 %v2236
    %2709 = vmatprep.subr.bf16.mxu0 %v2241
    %2710 = vmatpush1.bf16.msra.mxu0 %v2240
    %2711 = vmatprep.subr.bf16.mxu0 %v2245
    %2712 = vmatpush1.bf16.msra.mxu0 %v2244
    %2713 = vmatprep.subr.bf16.mxu0 %v2249
    %2714 = vmatpush1.bf16.msra.mxu0 %v2248
    %2715 = vmatprep.subr.bf16.mxu0 %v2253
    %2716 = vmatpush1.bf16.msra.mxu0 %v2252
    %2717 = vmatprep.subr.bf16.mxu0 %v2257
    %2718 = vmatpush1.bf16.msra.mxu0 %v2256
    %2719 = vmatprep.mubr.bf16.mxu0 %v1081
    %2720 = vmatmul.mubr.bf16.gmra.mrb[0].mxu0 %v1080
    %v2721 = vpop.f32.mrb[0].mxu0
    %v2722 = vadd.f32 %v2679, %v2721
    %v2723 = vpop.f32.mrb[0].mxu0
    %v2724 = vadd.f32 %v2681, %v2723
    %v2725 = vpop.f32.mrb[0].mxu0
    %v2726 = vadd.f32 %v2683, %v2725
    %v2727 = vpop.f32.mrb[0].mxu0
    %v2728 = vadd.f32 %v2685, %v2727
    %2729 = vdwg.mxu0
    %2730 = vmatprep.subr.bf16.mxu0 %v2261
    %2731 = vmatpush1.bf16.msra.mxu0 %v2260
    %2732 = vmatprep.subr.bf16.mxu0 %v2265
    %2733 = vmatpush1.bf16.msra.mxu0 %v2264
    %2734 = vmatprep.subr.bf16.mxu0 %v2269
    %2735 = vmatpush1.bf16.msra.mxu0 %v2268
    %2736 = vmatprep.subr.bf16.mxu0 %v2273
    %2737 = vmatpush1.bf16.msra.mxu0 %v2272
    %2738 = vmatprep.subr.bf16.mxu0 %v2277
    %2739 = vmatpush1.bf16.msra.mxu0 %v2276
    %2740 = vmatprep.subr.bf16.mxu0 %v2281
    %2741 = vmatpush1.bf16.msra.mxu0 %v2280
    %2742 = vmatprep.subr.bf16.mxu0 %v2285
    %2743 = vmatpush1.bf16.msra.mxu0 %v2284
    %2744 = vmatprep.subr.bf16.mxu0 %v2289
    %2745 = vmatpush1.bf16.msra.mxu0 %v2288
    %2746 = vmatprep.subr.bf16.mxu0 %v2293
    %2747 = vmatpush1.bf16.msra.mxu0 %v2292
    %2748 = vmatprep.subr.bf16.mxu0 %v2297
    %2749 = vmatpush1.bf16.msra.mxu0 %v2296
    %2750 = vmatprep.subr.bf16.mxu0 %v2301
    %2751 = vmatpush1.bf16.msra.mxu0 %v2300
    %2752 = vmatprep.subr.bf16.mxu0 %v2305
    %2753 = vmatpush1.bf16.msra.mxu0 %v2304
    %2754 = vmatprep.subr.bf16.mxu0 %v2309
    %2755 = vmatpush1.bf16.msra.mxu0 %v2308
    %2756 = vmatprep.subr.bf16.mxu0 %v2313
    %2757 = vmatpush1.bf16.msra.mxu0 %v2312
    %2758 = vmatprep.subr.bf16.mxu0 %v2317
    %2759 = vmatpush1.bf16.msra.mxu0 %v2316
    %2760 = vmatprep.subr.bf16.mxu0 %v2321
    %2761 = vmatpush1.bf16.msra.mxu0 %v2320
    %2762 = vmatprep.mubr.bf16.mxu0 %v1083
    %2763 = vmatmul.mubr.bf16.gmra.mrb[0].mxu0 %v1082
    %v2764 = vpop.f32.mrb[0].mxu0
    %v2765 = vadd.f32 %v2722, %v2764
    %v2766 = vpop.f32.mrb[0].mxu0
    %v2767 = vadd.f32 %v2724, %v2766
    %v2768 = vpop.f32.mrb[0].mxu0
    %v2769 = vadd.f32 %v2726, %v2768
    %v2770 = vpop.f32.mrb[0].mxu0
    %v2771 = vadd.f32 %v2728, %v2770
    %2772 = vdwg.mxu0
    %2773 = vmatprep.subr.bf16.mxu0 %v2325
    %2774 = vmatpush1.bf16.msra.mxu0 %v2324
    %2775 = vmatprep.subr.bf16.mxu0 %v2329
    %2776 = vmatpush1.bf16.msra.mxu0 %v2328
    %2777 = vmatprep.subr.bf16.mxu0 %v2333
    %2778 = vmatpush1.bf16.msra.mxu0 %v2332
    %2779 = vmatprep.subr.bf16.mxu0 %v2337
    %2780 = vmatpush1.bf16.msra.mxu0 %v2336
    %2781 = vmatprep.subr.bf16.mxu0 %v2341
    %2782 = vmatpush1.bf16.msra.mxu0 %v2340
    %2783 = vmatprep.subr.bf16.mxu0 %v2345
    %2784 = vmatpush1.bf16.msra.mxu0 %v2344
    %2785 = vmatprep.subr.bf16.mxu0 %v2349
    %2786 = vmatpush1.bf16.msra.mxu0 %v2348
    %2787 = vmatprep.subr.bf16.mxu0 %v2353
    %2788 = vmatpush1.bf16.msra.mxu0 %v2352
    %2789 = vmatprep.subr.bf16.mxu0 %v2357
    %2790 = vmatpush1.bf16.msra.mxu0 %v2356
    %2791 = vmatprep.subr.bf16.mxu0 %v2361
    %2792 = vmatpush1.bf16.msra.mxu0 %v2360
    %2793 = vmatprep.subr.bf16.mxu0 %v2365
    %2794 = vmatpush1.bf16.msra.mxu0 %v2364
    %2795 = vmatprep.subr.bf16.mxu0 %v2369
    %2796 = vmatpush1.bf16.msra.mxu0 %v2368
    %2797 = vmatprep.subr.bf16.mxu0 %v2373
    %2798 = vmatpush1.bf16.msra.mxu0 %v2372
    %2799 = vmatprep.subr.bf16.mxu0 %v2377
    %2800 = vmatpush1.bf16.msra.mxu0 %v2376
    %2801 = vmatprep.subr.bf16.mxu0 %v2381
    %2802 = vmatpush1.bf16.msra.mxu0 %v2380
    %2803 = vmatprep.subr.bf16.mxu0 %v2385
    %2804 = vmatpush1.bf16.msra.mxu0 %v2384
    %2805 = vmatprep.mubr.bf16.mxu0 %v1085
    %2806 = vmatmul.mubr.bf16.gmra.mrb[0].mxu0 %v1084
    %v2807 = vpop.f32.mrb[0].mxu0
    %v2808 = vadd.f32 %v2765, %v2807
    %v2809 = vpop.f32.mrb[0].mxu0
    %v2810 = vadd.f32 %v2767, %v2809
    %v2811 = vpop.f32.mrb[0].mxu0
    %v2812 = vadd.f32 %v2769, %v2811
    %v2813 = vpop.f32.mrb[0].mxu0
    %v2814 = vadd.f32 %v2771, %v2813
    %2815 = vdwg.mxu0
    %2816 = vmatprep.subr.bf16.mxu0 %v2135
    %2817 = vmatpush1.bf16.msra.mxu0 %v2134
    %2818 = vmatprep.subr.bf16.mxu0 %v2139
    %2819 = vmatpush1.bf16.msra.mxu0 %v2138
    %2820 = vmatprep.subr.bf16.mxu0 %v2143
    %2821 = vmatpush1.bf16.msra.mxu0 %v2142
    %2822 = vmatprep.subr.bf16.mxu0 %v2147
    %2823 = vmatpush1.bf16.msra.mxu0 %v2146
    %2824 = vmatprep.subr.bf16.mxu0 %v2151
    %2825 = vmatpush1.bf16.msra.mxu0 %v2150
    %2826 = vmatprep.subr.bf16.mxu0 %v2155
    %2827 = vmatpush1.bf16.msra.mxu0 %v2154
    %2828 = vmatprep.subr.bf16.mxu0 %v2159
    %2829 = vmatpush1.bf16.msra.mxu0 %v2158
    %2830 = vmatprep.subr.bf16.mxu0 %v2163
    %2831 = vmatpush1.bf16.msra.mxu0 %v2162
    %2832 = vmatprep.subr.bf16.mxu0 %v2167
    %2833 = vmatpush1.bf16.msra.mxu0 %v2166
    %2834 = vmatprep.subr.bf16.mxu0 %v2171
    %2835 = vmatpush1.bf16.msra.mxu0 %v2170
    %2836 = vmatprep.subr.bf16.mxu0 %v2175
    %2837 = vmatpush1.bf16.msra.mxu0 %v2174
    %2838 = vmatprep.subr.bf16.mxu0 %v2179
    %2839 = vmatpush1.bf16.msra.mxu0 %v2178
    %2840 = vmatprep.subr.bf16.mxu0 %v2183
    %2841 = vmatpush1.bf16.msra.mxu0 %v2182
    %2842 = vmatprep.subr.bf16.mxu0 %v2187
    %2843 = vmatpush1.bf16.msra.mxu0 %v2186
    %2844 = vmatprep.subr.bf16.mxu0 %v2191
    %2845 = vmatpush1.bf16.msra.mxu0 %v2190
    %2846 = vmatprep.subr.bf16.mxu0 %v2195
    %2847 = vmatpush1.bf16.msra.mxu0 %v2194
    %2848 = vmatprep.mubr.bf16.mxu0 %v1079
    %2849 = vmatmul.mubr.bf16.gmra.mrb[0].mxu0 %v1078
    %v2850 = vpop.f32.mrb[0].mxu0
    %v2851 = vadd.f32 %v1355, %v2850
    %v2852 = vpop.f32.mrb[0].mxu0
    %v2853 = vadd.f32 %v1359, %v2852
    %v2854 = vpop.f32.mrb[0].mxu0
    %v2855 = vadd.f32 %v1355, %v2854
    %v2856 = vpop.f32.mrb[0].mxu0
    %v2857 = vadd.f32 %v1359, %v2856
    %2858 = vdwg.mxu0
    %2859 = vmatprep.subr.bf16.mxu0 %v2199
    %2860 = vmatpush1.bf16.msra.mxu0 %v2198
    %2861 = vmatprep.subr.bf16.mxu0 %v2203
    %2862 = vmatpush1.bf16.msra.mxu0 %v2202
    %2863 = vmatprep.subr.bf16.mxu0 %v2207
    %2864 = vmatpush1.bf16.msra.mxu0 %v2206
    %2865 = vmatprep.subr.bf16.mxu0 %v2211
    %2866 = vmatpush1.bf16.msra.mxu0 %v2210
    %2867 = vmatprep.subr.bf16.mxu0 %v2215
    %2868 = vmatpush1.bf16.msra.mxu0 %v2214
    %2869 = vmatprep.subr.bf16.mxu0 %v2219
    %2870 = vmatpush1.bf16.msra.mxu0 %v2218
    %2871 = vmatprep.subr.bf16.mxu0 %v2223
    %2872 = vmatpush1.bf16.msra.mxu0 %v2222
    %2873 = vmatprep.subr.bf16.mxu0 %v2227
    %2874 = vmatpush1.bf16.msra.mxu0 %v2226
    %2875 = vmatprep.subr.bf16.mxu0 %v2231
    %2876 = vmatpush1.bf16.msra.mxu0 %v2230
    %2877 = vmatprep.subr.bf16.mxu0 %v2235
    %2878 = vmatpush1.bf16.msra.mxu0 %v2234
    %2879 = vmatprep.subr.bf16.mxu0 %v2239
    %2880 = vmatpush1.bf16.msra.mxu0 %v2238
    %2881 = vmatprep.subr.bf16.mxu0 %v2243
    %2882 = vmatpush1.bf16.msra.mxu0 %v2242
    %2883 = vmatprep.subr.bf16.mxu0 %v2247
    %2884 = vmatpush1.bf16.msra.mxu0 %v2246
    %2885 = vmatprep.subr.bf16.mxu0 %v2251
    %2886 = vmatpush1.bf16.msra.mxu0 %v2250
    %2887 = vmatprep.subr.bf16.mxu0 %v2255
    %2888 = vmatpush1.bf16.msra.mxu0 %v2254
    %2889 = vmatprep.subr.bf16.mxu0 %v2259
    %2890 = vmatpush1.bf16.msra.mxu0 %v2258
    %2891 = vmatprep.mubr.bf16.mxu0 %v1081
    %2892 = vmatmul.mubr.bf16.gmra.mrb[0].mxu0 %v1080
    %v2893 = vpop.f32.mrb[0].mxu0
    %v2894 = vadd.f32 %v2851, %v2893
    %v2895 = vpop.f32.mrb[0].mxu0
    %v2896 = vadd.f32 %v2853, %v2895
    %v2897 = vpop.f32.mrb[0].mxu0
    %v2898 = vadd.f32 %v2855, %v2897
    %v2899 = vpop.f32.mrb[0].mxu0
    %v2900 = vadd.f32 %v2857, %v2899
    %2901 = vdwg.mxu0
    %2902 = vmatprep.subr.bf16.mxu0 %v2263
    %2903 = vmatpush1.bf16.msra.mxu0 %v2262
    %2904 = vmatprep.subr.bf16.mxu0 %v2267
    %2905 = vmatpush1.bf16.msra.mxu0 %v2266
    %2906 = vmatprep.subr.bf16.mxu0 %v2271
    %2907 = vmatpush1.bf16.msra.mxu0 %v2270
    %2908 = vmatprep.subr.bf16.mxu0 %v2275
    %2909 = vmatpush1.bf16.msra.mxu0 %v2274
    %2910 = vmatprep.subr.bf16.mxu0 %v2279
    %2911 = vmatpush1.bf16.msra.mxu0 %v2278
    %2912 = vmatprep.subr.bf16.mxu0 %v2283
    %2913 = vmatpush1.bf16.msra.mxu0 %v2282
    %2914 = vmatprep.subr.bf16.mxu0 %v2287
    %2915 = vmatpush1.bf16.msra.mxu0 %v2286
    %2916 = vmatprep.subr.bf16.mxu0 %v2291
    %2917 = vmatpush1.bf16.msra.mxu0 %v2290
    %2918 = vmatprep.subr.bf16.mxu0 %v2295
    %2919 = vmatpush1.bf16.msra.mxu0 %v2294
    %2920 = vmatprep.subr.bf16.mxu0 %v2299
    %2921 = vmatpush1.bf16.msra.mxu0 %v2298
    %2922 = vmatprep.subr.bf16.mxu0 %v2303
    %2923 = vmatpush1.bf16.msra.mxu0 %v2302
    %2924 = vmatprep.subr.bf16.mxu0 %v2307
    %2925 = vmatpush1.bf16.msra.mxu0 %v2306
    %2926 = vmatprep.subr.bf16.mxu0 %v2311
    %2927 = vmatpush1.bf16.msra.mxu0 %v2310
    %2928 = vmatprep.subr.bf16.mxu0 %v2315
    %2929 = vmatpush1.bf16.msra.mxu0 %v2314
    %2930 = vmatprep.subr.bf16.mxu0 %v2319
    %2931 = vmatpush1.bf16.msra.mxu0 %v2318
    %2932 = vmatprep.subr.bf16.mxu0 %v2323
    %2933 = vmatpush1.bf16.msra.mxu0 %v2322
    %2934 = vmatprep.mubr.bf16.mxu0 %v1083
    %2935 = vmatmul.mubr.bf16.gmra.mrb[0].mxu0 %v1082
    %v2936 = vpop.f32.mrb[0].mxu0
    %v2937 = vadd.f32 %v2894, %v2936
    %v2938 = vpop.f32.mrb[0].mxu0
    %v2939 = vadd.f32 %v2896, %v2938
    %v2940 = vpop.f32.mrb[0].mxu0
    %v2941 = vadd.f32 %v2898, %v2940
    %v2942 = vpop.f32.mrb[0].mxu0
    %v2943 = vadd.f32 %v2900, %v2942
    %2944 = vdwg.mxu0
    %2945 = vmatprep.subr.bf16.mxu0 %v2327
    %2946 = vmatpush1.bf16.msra.mxu0 %v2326
    %2947 = vmatprep.subr.bf16.mxu0 %v2331
    %2948 = vmatpush1.bf16.msra.mxu0 %v2330
    %2949 = vmatprep.subr.bf16.mxu0 %v2335
    %2950 = vmatpush1.bf16.msra.mxu0 %v2334
    %2951 = vmatprep.subr.bf16.mxu0 %v2339
    %2952 = vmatpush1.bf16.msra.mxu0 %v2338
    %2953 = vmatprep.subr.bf16.mxu0 %v2343
    %2954 = vmatpush1.bf16.msra.mxu0 %v2342
    %2955 = vmatprep.subr.bf16.mxu0 %v2347
    %2956 = vmatpush1.bf16.msra.mxu0 %v2346
    %2957 = vmatprep.subr.bf16.mxu0 %v2351
    %2958 = vmatpush1.bf16.msra.mxu0 %v2350
    %2959 = vmatprep.subr.bf16.mxu0 %v2355
    %2960 = vmatpush1.bf16.msra.mxu0 %v2354
    %2961 = vmatprep.subr.bf16.mxu0 %v2359
    %2962 = vmatpush1.bf16.msra.mxu0 %v2358
    %2963 = vmatprep.subr.bf16.mxu0 %v2363
    %2964 = vmatpush1.bf16.msra.mxu0 %v2362
    %2965 = vmatprep.subr.bf16.mxu0 %v2367
    %2966 = vmatpush1.bf16.msra.mxu0 %v2366
    %2967 = vmatprep.subr.bf16.mxu0 %v2371
    %2968 = vmatpush1.bf16.msra.mxu0 %v2370
    %2969 = vmatprep.subr.bf16.mxu0 %v2375
    %2970 = vmatpush1.bf16.msra.mxu0 %v2374
    %2971 = vmatprep.subr.bf16.mxu0 %v2379
    %2972 = vmatpush1.bf16.msra.mxu0 %v2378
    %2973 = vmatprep.subr.bf16.mxu0 %v2383
    %2974 = vmatpush1.bf16.msra.mxu0 %v2382
    %2975 = vmatprep.subr.bf16.mxu0 %v2387
    %2976 = vmatpush1.bf16.msra.mxu0 %v2386
    %2977 = vmatprep.mubr.bf16.mxu0 %v1085
    %2978 = vmatmul.mubr.bf16.gmra.mrb[0].mxu0 %v1084
    %v2979 = vpop.f32.mrb[0].mxu0
    %v2980 = vadd.f32 %v2937, %v2979
    %v2981 = vpop.f32.mrb[0].mxu0
    %v2982 = vadd.f32 %v2939, %v2981
    %v2983 = vpop.f32.mrb[0].mxu0
    %v2984 = vadd.f32 %v2941, %v2983
    %v2985 = vpop.f32.mrb[0].mxu0
    %v2986 = vadd.f32 %v2943, %v2985
    %2987 = vdwg.mxu0
    %v2988 = vmax.f32 %v2808, 0.0
    %v2989 = vmax.f32 %v2810, 0.0
    %v2990 = vmax.f32 %v2980, 0.0
    %v2991 = vmax.f32 %v2982, 0.0
    %v2992 = vmax.f32 %v2812, 0.0
    %v2993 = vmax.f32 %v2814, 0.0
    %v2994 = vmax.f32 %v2984, 0.0
    %v2995 = vmax.f32 %v2986, 0.0
    %v2996 = vpack.c.bf16 %v2992, %v2988
    %v2997 = vpack.c.bf16 %v2993, %v2989
    %v2998 = vpack.c.bf16 %v2994, %v2990
    %v2999 = vpack.c.bf16 %v2995, %v2991
    %v3000 = vld [vmem:[#allocation6] sm:$0xff]
    %v3001 = vld [vmem:[#allocation6 + $0x8] sm:$0xff]
    %v3002 = vld [vmem:[#allocation6 + $0x10] sm:$0xff]
    %v3003 = vld [vmem:[#allocation6 + $0x18] sm:$0xff]
    %v3004 = vld [vmem:[#allocation6 + $0x20] sm:$0xff]
    %v3005 = vld [vmem:[#allocation6 + $0x28] sm:$0xff]
    %v3006 = vld [vmem:[#allocation6 + $0x30] sm:$0xff]
    %v3007 = vld [vmem:[#allocation6 + $0x38] sm:$0xff]
    %v3008 = vld [vmem:[#allocation6 + $0x40] sm:$0xff]
    %v3009 = vld [vmem:[#allocation6 + $0x48] sm:$0xff]
    %v3010 = vld [vmem:[#allocation6 + $0x50] sm:$0xff]
    %v3011 = vld [vmem:[#allocation6 + $0x58] sm:$0xff]
    %v3012 = vld [vmem:[#allocation6 + $0x60] sm:$0xff]
    %v3013 = vld [vmem:[#allocation6 + $0x68] sm:$0xff]
    %v3014 = vld [vmem:[#allocation6 + $0x70] sm:$0xff]
    %v3015 = vld [vmem:[#allocation6 + $0x78] sm:$0xff]
    %v3016 = vld [vmem:[#allocation6 + $0x80] sm:$0xff]
    %v3017 = vld [vmem:[#allocation6 + $0x88] sm:$0xff]
    %v3018 = vld [vmem:[#allocation6 + $0x90] sm:$0xff]
    %v3019 = vld [vmem:[#allocation6 + $0x98] sm:$0xff]
    %v3020 = vld [vmem:[#allocation6 + $0xa0] sm:$0xff]
    %v3021 = vld [vmem:[#allocation6 + $0xa8] sm:$0xff]
    %v3022 = vld [vmem:[#allocation6 + $0xb0] sm:$0xff]
    %v3023 = vld [vmem:[#allocation6 + $0xb8] sm:$0xff]
    %v3024 = vld [vmem:[#allocation6 + $0xc0] sm:$0xff]
    %v3025 = vld [vmem:[#allocation6 + $0xc8] sm:$0xff]
    %v3026 = vld [vmem:[#allocation6 + $0xd0] sm:$0xff]
    %v3027 = vld [vmem:[#allocation6 + $0xd8] sm:$0xff]
    %v3028 = vld [vmem:[#allocation6 + $0xe0] sm:$0xff]
    %v3029 = vld [vmem:[#allocation6 + $0xe8] sm:$0xff]
    %v3030 = vld [vmem:[#allocation6 + $0xf0] sm:$0xff]
    %v3031 = vld [vmem:[#allocation6 + $0xf8] sm:$0xff]
    %v3032 = vld [vmem:[#allocation6 + $0x100] sm:$0xff]
    %v3033 = vld [vmem:[#allocation6 + $0x108] sm:$0xff]
    %v3034 = vld [vmem:[#allocation6 + $0x110] sm:$0xff]
    %v3035 = vld [vmem:[#allocation6 + $0x118] sm:$0xff]
    %v3036 = vld [vmem:[#allocation6 + $0x120] sm:$0xff]
    %v3037 = vld [vmem:[#allocation6 + $0x128] sm:$0xff]
    %v3038 = vld [vmem:[#allocation6 + $0x130] sm:$0xff]
    %v3039 = vld [vmem:[#allocation6 + $0x138] sm:$0xff]
    %v3040 = vld [vmem:[#allocation6 + $0x140] sm:$0xff]
    %v3041 = vld [vmem:[#allocation6 + $0x148] sm:$0xff]
    %v3042 = vld [vmem:[#allocation6 + $0x150] sm:$0xff]
    %v3043 = vld [vmem:[#allocation6 + $0x158] sm:$0xff]
    %v3044 = vld [vmem:[#allocation6 + $0x160] sm:$0xff]
    %v3045 = vld [vmem:[#allocation6 + $0x168] sm:$0xff]
    %v3046 = vld [vmem:[#allocation6 + $0x170] sm:$0xff]
    %v3047 = vld [vmem:[#allocation6 + $0x178] sm:$0xff]
    %v3048 = vld [vmem:[#allocation6 + $0x180] sm:$0xff]
    %v3049 = vld [vmem:[#allocation6 + $0x188] sm:$0xff]
    %v3050 = vld [vmem:[#allocation6 + $0x190] sm:$0xff]
    %v3051 = vld [vmem:[#allocation6 + $0x198] sm:$0xff]
    %v3052 = vld [vmem:[#allocation6 + $0x1a0] sm:$0xff]
    %v3053 = vld [vmem:[#allocation6 + $0x1a8] sm:$0xff]
    %v3054 = vld [vmem:[#allocation6 + $0x1b0] sm:$0xff]
    %v3055 = vld [vmem:[#allocation6 + $0x1b8] sm:$0xff]
    %v3056 = vld [vmem:[#allocation6 + $0x1c0] sm:$0xff]
    %v3057 = vld [vmem:[#allocation6 + $0x1c8] sm:$0xff]
    %v3058 = vld [vmem:[#allocation6 + $0x1d0] sm:$0xff]
    %v3059 = vld [vmem:[#allocation6 + $0x1d8] sm:$0xff]
    %v3060 = vld [vmem:[#allocation6 + $0x1e0] sm:$0xff]
    %v3061 = vld [vmem:[#allocation6 + $0x1e8] sm:$0xff]
    %v3062 = vld [vmem:[#allocation6 + $0x1f0] sm:$0xff]
    %v3063 = vld [vmem:[#allocation6 + $0x1f8] sm:$0xff]
    %v3064 = vld [vmem:[%s6] sm:$0x3]
    %v3066 = vlaneseq
    %v3067 = vshrl.u32 %v3066, 7
    %v3068 = vsub.s32 0, %v3067
    %v3069 = vrot.slane %v3064, %v3068
    %v3070 = vlaneseq
    %v3071 = vshrl.u32 %v3070, 7
    %v3072 = vsub.s32 1, %v3071
    %v3073 = vrot.slane %v3064, %v3072
    %v3140 = vunpack.c.l.b16 %v3000
    %v3141 = vunpack.c.h.b16 %v3000
    %v3142 = vunpack.c.l.b16 %v3001
    %v3143 = vunpack.c.h.b16 %v3001
    %v3144 = vunpack.c.l.b16 %v3002
    %v3145 = vunpack.c.h.b16 %v3002
    %v3146 = vunpack.c.l.b16 %v3003
    %v3147 = vunpack.c.h.b16 %v3003
    %v3148 = vunpack.c.l.b16 %v3004
    %v3149 = vunpack.c.h.b16 %v3004
    %v3150 = vunpack.c.l.b16 %v3005
    %v3151 = vunpack.c.h.b16 %v3005
    %v3152 = vunpack.c.l.b16 %v3006
    %v3153 = vunpack.c.h.b16 %v3006
    %v3154 = vunpack.c.l.b16 %v3007
    %v3155 = vunpack.c.h.b16 %v3007
    %v3156 = vunpack.c.l.b16 %v3008
    %v3157 = vunpack.c.h.b16 %v3008
    %v3158 = vunpack.c.l.b16 %v3009
    %v3159 = vunpack.c.h.b16 %v3009
    %v3160 = vunpack.c.l.b16 %v3010
    %v3161 = vunpack.c.h.b16 %v3010
    %v3162 = vunpack.c.l.b16 %v3011
    %v3163 = vunpack.c.h.b16 %v3011
    %v3164 = vunpack.c.l.b16 %v3012
    %v3165 = vunpack.c.h.b16 %v3012
    %v3166 = vunpack.c.l.b16 %v3013
    %v3167 = vunpack.c.h.b16 %v3013
    %v3168 = vunpack.c.l.b16 %v3014
    %v3169 = vunpack.c.h.b16 %v3014
    %v3170 = vunpack.c.l.b16 %v3015
    %v3171 = vunpack.c.h.b16 %v3015
    %v3172 = vunpack.c.l.b16 %v3016
    %v3173 = vunpack.c.h.b16 %v3016
    %v3174 = vunpack.c.l.b16 %v3017
    %v3175 = vunpack.c.h.b16 %v3017
    %v3176 = vunpack.c.l.b16 %v3018
    %v3177 = vunpack.c.h.b16 %v3018
    %v3178 = vunpack.c.l.b16 %v3019
    %v3179 = vunpack.c.h.b16 %v3019
    %v3180 = vunpack.c.l.b16 %v3020
    %v3181 = vunpack.c.h.b16 %v3020
    %v3182 = vunpack.c.l.b16 %v3021
    %v3183 = vunpack.c.h.b16 %v3021
    %v3184 = vunpack.c.l.b16 %v3022
    %v3185 = vunpack.c.h.b16 %v3022
    %v3186 = vunpack.c.l.b16 %v3023
    %v3187 = vunpack.c.h.b16 %v3023
    %v3188 = vunpack.c.l.b16 %v3024
    %v3189 = vunpack.c.h.b16 %v3024
    %v3190 = vunpack.c.l.b16 %v3025
    %v3191 = vunpack.c.h.b16 %v3025
    %v3192 = vunpack.c.l.b16 %v3026
    %v3193 = vunpack.c.h.b16 %v3026
    %v3194 = vunpack.c.l.b16 %v3027
    %v3195 = vunpack.c.h.b16 %v3027
    %v3196 = vunpack.c.l.b16 %v3028
    %v3197 = vunpack.c.h.b16 %v3028
    %v3198 = vunpack.c.l.b16 %v3029
    %v3199 = vunpack.c.h.b16 %v3029
    %v3200 = vunpack.c.l.b16 %v3030
    %v3201 = vunpack.c.h.b16 %v3030
    %v3202 = vunpack.c.l.b16 %v3031
    %v3203 = vunpack.c.h.b16 %v3031
    %v3204 = vunpack.c.l.b16 %v3032
    %v3205 = vunpack.c.h.b16 %v3032
    %v3206 = vunpack.c.l.b16 %v3033
    %v3207 = vunpack.c.h.b16 %v3033
    %v3208 = vunpack.c.l.b16 %v3034
    %v3209 = vunpack.c.h.b16 %v3034
    %v3210 = vunpack.c.l.b16 %v3035
    %v3211 = vunpack.c.h.b16 %v3035
    %v3212 = vunpack.c.l.b16 %v3036
    %v3213 = vunpack.c.h.b16 %v3036
    %v3214 = vunpack.c.l.b16 %v3037
    %v3215 = vunpack.c.h.b16 %v3037
    %v3216 = vunpack.c.l.b16 %v3038
    %v3217 = vunpack.c.h.b16 %v3038
    %v3218 = vunpack.c.l.b16 %v3039
    %v3219 = vunpack.c.h.b16 %v3039
    %v3220 = vunpack.c.l.b16 %v3040
    %v3221 = vunpack.c.h.b16 %v3040
    %v3222 = vunpack.c.l.b16 %v3041
    %v3223 = vunpack.c.h.b16 %v3041
    %v3224 = vunpack.c.l.b16 %v3042
    %v3225 = vunpack.c.h.b16 %v3042
    %v3226 = vunpack.c.l.b16 %v3043
    %v3227 = vunpack.c.h.b16 %v3043
    %v3228 = vunpack.c.l.b16 %v3044
    %v3229 = vunpack.c.h.b16 %v3044
    %v3230 = vunpack.c.l.b16 %v3045
    %v3231 = vunpack.c.h.b16 %v3045
    %v3232 = vunpack.c.l.b16 %v3046
    %v3233 = vunpack.c.h.b16 %v3046
    %v3234 = vunpack.c.l.b16 %v3047
    %v3235 = vunpack.c.h.b16 %v3047
    %v3236 = vunpack.c.l.b16 %v3048
    %v3237 = vunpack.c.h.b16 %v3048
    %v3238 = vunpack.c.l.b16 %v3049
    %v3239 = vunpack.c.h.b16 %v3049
    %v3240 = vunpack.c.l.b16 %v3050
    %v3241 = vunpack.c.h.b16 %v3050
    %v3242 = vunpack.c.l.b16 %v3051
    %v3243 = vunpack.c.h.b16 %v3051
    %v3244 = vunpack.c.l.b16 %v3052
    %v3245 = vunpack.c.h.b16 %v3052
    %v3246 = vunpack.c.l.b16 %v3053
    %v3247 = vunpack.c.h.b16 %v3053
    %v3248 = vunpack.c.l.b16 %v3054
    %v3249 = vunpack.c.h.b16 %v3054
    %v3250 = vunpack.c.l.b16 %v3055
    %v3251 = vunpack.c.h.b16 %v3055
    %v3252 = vunpack.c.l.b16 %v3056
    %v3253 = vunpack.c.h.b16 %v3056
    %v3254 = vunpack.c.l.b16 %v3057
    %v3255 = vunpack.c.h.b16 %v3057
    %v3256 = vunpack.c.l.b16 %v3058
    %v3257 = vunpack.c.h.b16 %v3058
    %v3258 = vunpack.c.l.b16 %v3059
    %v3259 = vunpack.c.h.b16 %v3059
    %v3260 = vunpack.c.l.b16 %v3060
    %v3261 = vunpack.c.h.b16 %v3060
    %v3262 = vunpack.c.l.b16 %v3061
    %v3263 = vunpack.c.h.b16 %v3061
    %v3264 = vunpack.c.l.b16 %v3062
    %v3265 = vunpack.c.h.b16 %v3062
    %v3266 = vunpack.c.l.b16 %v3063
    %v3267 = vunpack.c.h.b16 %v3063
    %v3268 = vpack.c.b16 %v3142, %v3140
    %v3269 = vpack.c.b16 %v3143, %v3141
    %v3270 = vpack.c.b16 %v3146, %v3144
    %v3271 = vpack.c.b16 %v3147, %v3145
    %v3272 = vpack.c.b16 %v3150, %v3148
    %v3273 = vpack.c.b16 %v3151, %v3149
    %v3274 = vpack.c.b16 %v3154, %v3152
    %v3275 = vpack.c.b16 %v3155, %v3153
    %v3276 = vpack.c.b16 %v3158, %v3156
    %v3277 = vpack.c.b16 %v3159, %v3157
    %v3278 = vpack.c.b16 %v3162, %v3160
    %v3279 = vpack.c.b16 %v3163, %v3161
    %v3280 = vpack.c.b16 %v3166, %v3164
    %v3281 = vpack.c.b16 %v3167, %v3165
    %v3282 = vpack.c.b16 %v3170, %v3168
    %v3283 = vpack.c.b16 %v3171, %v3169
    %v3284 = vpack.c.b16 %v3174, %v3172
    %v3285 = vpack.c.b16 %v3175, %v3173
    %v3286 = vpack.c.b16 %v3178, %v3176
    %v3287 = vpack.c.b16 %v3179, %v3177
    %v3288 = vpack.c.b16 %v3182, %v3180
    %v3289 = vpack.c.b16 %v3183, %v3181
    %v3290 = vpack.c.b16 %v3186, %v3184
    %v3291 = vpack.c.b16 %v3187, %v3185
    %v3292 = vpack.c.b16 %v3190, %v3188
    %v3293 = vpack.c.b16 %v3191, %v3189
    %v3294 = vpack.c.b16 %v3194, %v3192
    %v3295 = vpack.c.b16 %v3195, %v3193
    %v3296 = vpack.c.b16 %v3198, %v3196
    %v3297 = vpack.c.b16 %v3199, %v3197
    %v3298 = vpack.c.b16 %v3202, %v3200
    %v3299 = vpack.c.b16 %v3203, %v3201
    %v3300 = vpack.c.b16 %v3206, %v3204
    %v3301 = vpack.c.b16 %v3207, %v3205
    %v3302 = vpack.c.b16 %v3210, %v3208
    %v3303 = vpack.c.b16 %v3211, %v3209
    %v3304 = vpack.c.b16 %v3214, %v3212
    %v3305 = vpack.c.b16 %v3215, %v3213
    %v3306 = vpack.c.b16 %v3218, %v3216
    %v3307 = vpack.c.b16 %v3219, %v3217
    %v3308 = vpack.c.b16 %v3222, %v3220
    %v3309 = vpack.c.b16 %v3223, %v3221
    %v3310 = vpack.c.b16 %v3226, %v3224
    %v3311 = vpack.c.b16 %v3227, %v3225
    %v3312 = vpack.c.b16 %v3230, %v3228
    %v3313 = vpack.c.b16 %v3231, %v3229
    %v3314 = vpack.c.b16 %v3234, %v3232
    %v3315 = vpack.c.b16 %v3235, %v3233
    %v3316 = vpack.c.b16 %v3238, %v3236
    %v3317 = vpack.c.b16 %v3239, %v3237
    %v3318 = vpack.c.b16 %v3242, %v3240
    %v3319 = vpack.c.b16 %v3243, %v3241
    %v3320 = vpack.c.b16 %v3246, %v3244
    %v3321 = vpack.c.b16 %v3247, %v3245
    %v3322 = vpack.c.b16 %v3250, %v3248
    %v3323 = vpack.c.b16 %v3251, %v3249
    %v3324 = vpack.c.b16 %v3254, %v3252
    %v3325 = vpack.c.b16 %v3255, %v3253
    %v3326 = vpack.c.b16 %v3258, %v3256
    %v3327 = vpack.c.b16 %v3259, %v3257
    %v3328 = vpack.c.b16 %v3262, %v3260
    %v3329 = vpack.c.b16 %v3263, %v3261
    %v3330 = vpack.c.b16 %v3266, %v3264
    %v3331 = vpack.c.b16 %v3267, %v3265
    %3396 = vmatprep.subr.bf16.mxu0 %v3269
    %3397 = vmatpush1.bf16.msra.mxu0 %v3268
    %3398 = vmatprep.subr.bf16.mxu0 %v3271
    %3399 = vmatpush1.bf16.msra.mxu0 %v3270
    %3400 = vmatprep.subr.bf16.mxu0 %v3273
    %3401 = vmatpush1.bf16.msra.mxu0 %v3272
    %3402 = vmatprep.subr.bf16.mxu0 %v3275
    %3403 = vmatpush1.bf16.msra.mxu0 %v3274
    %3404 = vmatprep.subr.bf16.mxu0 %v3277
    %3405 = vmatpush1.bf16.msra.mxu0 %v3276
    %3406 = vmatprep.subr.bf16.mxu0 %v3279
    %3407 = vmatpush1.bf16.msra.mxu0 %v3278
    %3408 = vmatprep.subr.bf16.mxu0 %v3281
    %3409 = vmatpush1.bf16.msra.mxu0 %v3280
    %3410 = vmatprep.subr.bf16.mxu0 %v3283
    %3411 = vmatpush1.bf16.msra.mxu0 %v3282
    %3412 = vmatprep.subr.bf16.mxu0 %v3285
    %3413 = vmatpush1.bf16.msra.mxu0 %v3284
    %3414 = vmatprep.subr.bf16.mxu0 %v3287
    %3415 = vmatpush1.bf16.msra.mxu0 %v3286
    %3416 = vmatprep.subr.bf16.mxu0 %v3289
    %3417 = vmatpush1.bf16.msra.mxu0 %v3288
    %3418 = vmatprep.subr.bf16.mxu0 %v3291
    %3419 = vmatpush1.bf16.msra.mxu0 %v3290
    %3420 = vmatprep.subr.bf16.mxu0 %v3293
    %3421 = vmatpush1.bf16.msra.mxu0 %v3292
    %3422 = vmatprep.subr.bf16.mxu0 %v3295
    %3423 = vmatpush1.bf16.msra.mxu0 %v3294
    %3424 = vmatprep.subr.bf16.mxu0 %v3297
    %3425 = vmatpush1.bf16.msra.mxu0 %v3296
    %3426 = vmatprep.subr.bf16.mxu0 %v3299
    %3427 = vmatpush1.bf16.msra.mxu0 %v3298
    %3428 = vmatprep.mubr.bf16.mxu0 %v2997
    %3429 = vmatmul.mubr.bf16.gmra.mrb[0].mxu0 %v2996
    %v3430 = vpop.f32.mrb[0].mxu0
    %v3431 = vadd.f32 %v3069, %v3430
    %v3432 = vpop.f32.mrb[0].mxu0
    %v3433 = vadd.f32 %v3073, %v3432
    %v3434 = vpop.f32.mrb[0].mxu0
    %v3435 = vadd.f32 %v3069, %v3434
    %v3436 = vpop.f32.mrb[0].mxu0
    %v3437 = vadd.f32 %v3073, %v3436
    %3438 = vdwg.mxu0
    %3439 = vmatprep.subr.bf16.mxu0 %v3301
    %3440 = vmatpush1.bf16.msra.mxu0 %v3300
    %3441 = vmatprep.subr.bf16.mxu0 %v3303
    %3442 = vmatpush1.bf16.msra.mxu0 %v3302
    %3443 = vmatprep.subr.bf16.mxu0 %v3305
    %3444 = vmatpush1.bf16.msra.mxu0 %v3304
    %3445 = vmatprep.subr.bf16.mxu0 %v3307
    %3446 = vmatpush1.bf16.msra.mxu0 %v3306
    %3447 = vmatprep.subr.bf16.mxu0 %v3309
    %3448 = vmatpush1.bf16.msra.mxu0 %v3308
    %3449 = vmatprep.subr.bf16.mxu0 %v3311
    %3450 = vmatpush1.bf16.msra.mxu0 %v3310
    %3451 = vmatprep.subr.bf16.mxu0 %v3313
    %3452 = vmatpush1.bf16.msra.mxu0 %v3312
    %3453 = vmatprep.subr.bf16.mxu0 %v3315
    %3454 = vmatpush1.bf16.msra.mxu0 %v3314
    %3455 = vmatprep.subr.bf16.mxu0 %v3317
    %3456 = vmatpush1.bf16.msra.mxu0 %v3316
    %3457 = vmatprep.subr.bf16.mxu0 %v3319
    %3458 = vmatpush1.bf16.msra.mxu0 %v3318
    %3459 = vmatprep.subr.bf16.mxu0 %v3321
    %3460 = vmatpush1.bf16.msra.mxu0 %v3320
    %3461 = vmatprep.subr.bf16.mxu0 %v3323
    %3462 = vmatpush1.bf16.msra.mxu0 %v3322
    %3463 = vmatprep.subr.bf16.mxu0 %v3325
    %3464 = vmatpush1.bf16.msra.mxu0 %v3324
    %3465 = vmatprep.subr.bf16.mxu0 %v3327
    %3466 = vmatpush1.bf16.msra.mxu0 %v3326
    %3467 = vmatprep.subr.bf16.mxu0 %v3329
    %3468 = vmatpush1.bf16.msra.mxu0 %v3328
    %3469 = vmatprep.subr.bf16.mxu0 %v3331
    %3470 = vmatpush1.bf16.msra.mxu0 %v3330
    %3471 = vmatprep.mubr.bf16.mxu0 %v2999
    %3472 = vmatmul.mubr.bf16.gmra.mrb[0].mxu0 %v2998
    %v3473 = vpop.f32.mrb[0].mxu0
    %v3474 = vadd.f32 %v3431, %v3473
    %v3475 = vpop.f32.mrb[0].mxu0
    %v3476 = vadd.f32 %v3433, %v3475
    %v3477 = vpop.f32.mrb[0].mxu0
    %v3478 = vadd.f32 %v3435, %v3477
    %v3479 = vpop.f32.mrb[0].mxu0
    %v3480 = vadd.f32 %v3437, %v3479
    %3481 = vdwg.mxu0
    %v3482 = vmax.f32 %v3474, 0.0
    %v3483 = vmax.f32 %v3476, 0.0
    %v3484 = vmax.f32 %v3478, 0.0
    %v3485 = vmax.f32 %v3480, 0.0
    %v3486 = vpack.c.bf16 %v3484, %v3482
    %v3487 = vpack.c.bf16 %v3485, %v3483
    %v3488 = vld [vmem:[%s7] sm:$0xf]
    %v3489 = vld [vmem:[%s7 + $0x4] sm:$0xf]
    %v3490 = vld [vmem:[%s7 + $0x8] sm:$0xf]
    %v3491 = vld [vmem:[%s7 + $0xc] sm:$0xf]
    %v3492 = vld [vmem:[%s7 + $0x10] sm:$0xf]
    %v3493 = vld [vmem:[%s7 + $0x14] sm:$0xf]
    %v3494 = vld [vmem:[%s7 + $0x18] sm:$0xf]
    %v3495 = vld [vmem:[%s7 + $0x1c] sm:$0xf]
    %v3496 = vld [vmem:[%s7 + $0x20] sm:$0xf]
    %v3497 = vld [vmem:[%s7 + $0x24] sm:$0xf]
    %v3498 = vld [vmem:[%s7 + $0x28] sm:$0xf]
    %v3499 = vld [vmem:[%s7 + $0x2c] sm:$0xf]
    %v3500 = vld [vmem:[%s7 + $0x30] sm:$0xf]
    %v3501 = vld [vmem:[%s7 + $0x34] sm:$0xf]
    %v3502 = vld [vmem:[%s7 + $0x38] sm:$0xf]
    %v3503 = vld [vmem:[%s7 + $0x3c] sm:$0xf]
    %v3504 = vld [vmem:[%s7 + $0x40] sm:$0xf]
    %v3505 = vld [vmem:[%s7 + $0x44] sm:$0xf]
    %v3506 = vld [vmem:[%s7 + $0x48] sm:$0xf]
    %v3507 = vld [vmem:[%s7 + $0x4c] sm:$0xf]
    %v3508 = vld [vmem:[%s7 + $0x50] sm:$0xf]
    %v3509 = vld [vmem:[%s7 + $0x54] sm:$0xf]
    %v3510 = vld [vmem:[%s7 + $0x58] sm:$0xf]
    %v3511 = vld [vmem:[%s7 + $0x5c] sm:$0xf]
    %v3512 = vld [vmem:[%s7 + $0x60] sm:$0xf]
    %v3513 = vld [vmem:[%s7 + $0x64] sm:$0xf]
    %v3514 = vld [vmem:[%s7 + $0x68] sm:$0xf]
    %v3515 = vld [vmem:[%s7 + $0x6c] sm:$0xf]
    %v3516 = vld [vmem:[%s7 + $0x70] sm:$0xf]
    %v3517 = vld [vmem:[%s7 + $0x74] sm:$0xf]
    %v3518 = vld [vmem:[%s7 + $0x78] sm:$0xf]
    %v3519 = vld [vmem:[%s7 + $0x7c] sm:$0xf]
    %v3520 = vld [vmem:[%s8] sm:$0x1]
    %v3522 = vlaneseq
    %v3523 = vshrl.u32 %v3522, 7
    %v3524 = vsub.s32 0, %v3523
    %v3525 = vrot.slane %v3520, %v3524
    %v3559 = vunpack.c.l.b16 %v3488
    %v3560 = vunpack.c.l.b16 %v3489
    %v3561 = vunpack.c.l.b16 %v3490
    %v3562 = vunpack.c.l.b16 %v3491
    %v3563 = vunpack.c.l.b16 %v3492
    %v3564 = vunpack.c.l.b16 %v3493
    %v3565 = vunpack.c.l.b16 %v3494
    %v3566 = vunpack.c.l.b16 %v3495
    %v3567 = vunpack.c.l.b16 %v3496
    %v3568 = vunpack.c.l.b16 %v3497
    %v3569 = vunpack.c.l.b16 %v3498
    %v3570 = vunpack.c.l.b16 %v3499
    %v3571 = vunpack.c.l.b16 %v3500
    %v3572 = vunpack.c.l.b16 %v3501
    %v3573 = vunpack.c.l.b16 %v3502
    %v3574 = vunpack.c.l.b16 %v3503
    %v3575 = vunpack.c.l.b16 %v3504
    %v3576 = vunpack.c.l.b16 %v3505
    %v3577 = vunpack.c.l.b16 %v3506
    %v3578 = vunpack.c.l.b16 %v3507
    %v3579 = vunpack.c.l.b16 %v3508
    %v3580 = vunpack.c.l.b16 %v3509
    %v3581 = vunpack.c.l.b16 %v3510
    %v3582 = vunpack.c.l.b16 %v3511
    %v3583 = vunpack.c.l.b16 %v3512
    %v3584 = vunpack.c.l.b16 %v3513
    %v3585 = vunpack.c.l.b16 %v3514
    %v3586 = vunpack.c.l.b16 %v3515
    %v3587 = vunpack.c.l.b16 %v3516
    %v3588 = vunpack.c.l.b16 %v3517
    %v3589 = vunpack.c.l.b16 %v3518
    %v3590 = vunpack.c.l.b16 %v3519
    %v3591 = vpack.c.b16 %v3560, %v3559
    %v3592 = vpack.c.b16 %v3562, %v3561
    %v3593 = vpack.c.b16 %v3564, %v3563
    %v3594 = vpack.c.b16 %v3566, %v3565
    %v3595 = vpack.c.b16 %v3568, %v3567
    %v3596 = vpack.c.b16 %v3570, %v3569
    %v3597 = vpack.c.b16 %v3572, %v3571
    %v3598 = vpack.c.b16 %v3574, %v3573
    %v3599 = vpack.c.b16 %v3576, %v3575
    %v3600 = vpack.c.b16 %v3578, %v3577
    %v3601 = vpack.c.b16 %v3580, %v3579
    %v3602 = vpack.c.b16 %v3582, %v3581
    %v3603 = vpack.c.b16 %v3584, %v3583
    %v3604 = vpack.c.b16 %v3586, %v3585
    %v3605 = vpack.c.b16 %v3588, %v3587
    %v3606 = vpack.c.b16 %v3590, %v3589
    %3623 = vmatprep.subr.bf16.mxu0 0
    %3624 = vmatpush1.bf16.msra.mxu0 %v3591
    %3625 = vmatprep.subr.bf16.mxu0 0
    %3626 = vmatpush1.bf16.msra.mxu0 %v3592
    %3627 = vmatprep.subr.bf16.mxu0 0
    %3628 = vmatpush1.bf16.msra.mxu0 %v3593
    %3629 = vmatprep.subr.bf16.mxu0 0
    %3630 = vmatpush1.bf16.msra.mxu0 %v3594
    %3631 = vmatprep.subr.bf16.mxu0 0
    %3632 = vmatpush1.bf16.msra.mxu0 %v3595
    %3633 = vmatprep.subr.bf16.mxu0 0
    %3634 = vmatpush1.bf16.msra.mxu0 %v3596
    %3635 = vmatprep.subr.bf16.mxu0 0
    %3636 = vmatpush1.bf16.msra.mxu0 %v3597
    %3637 = vmatprep.subr.bf16.mxu0 0
    %3638 = vmatpush1.bf16.msra.mxu0 %v3598
    %3639 = vmatprep.subr.bf16.mxu0 0
    %3640 = vmatpush1.bf16.msra.mxu0 %v3599
    %3641 = vmatprep.subr.bf16.mxu0 0
    %3642 = vmatpush1.bf16.msra.mxu0 %v3600
    %3643 = vmatprep.subr.bf16.mxu0 0
    %3644 = vmatpush1.bf16.msra.mxu0 %v3601
    %3645 = vmatprep.subr.bf16.mxu0 0
    %3646 = vmatpush1.bf16.msra.mxu0 %v3602
    %3647 = vmatprep.subr.bf16.mxu0 0
    %3648 = vmatpush1.bf16.msra.mxu0 %v3603
    %3649 = vmatprep.subr.bf16.mxu0 0
    %3650 = vmatpush1.bf16.msra.mxu0 %v3604
    %3651 = vmatprep.subr.bf16.mxu0 0
    %3652 = vmatpush1.bf16.msra.mxu0 %v3605
    %3653 = vmatprep.subr.bf16.mxu0 0
    %3654 = vmatpush1.bf16.msra.mxu0 %v3606
    %3655 = vmatprep.mubr.bf16.mxu0 %v3487
    %3656 = vmatmul.mubr.bf16.gmra.mrb[0].mxu0 %v3486
    %v3657 = vpop.f32.mrb[0].mxu0
    %v3658 = vadd.f32 %v3525, %v3657
    %v3659 = vpop.f32.mrb[0].mxu0
    %v3660 = vpop.f32.mrb[0].mxu0
    %v3661 = vadd.f32 %v3525, %v3660
    %v3662 = vpop.f32.mrb[0].mxu0
    %3663 = vdwg.mxu0
    %v3664 = vmax.f32 %v3658, 0.0
    %v3665 = vmax.f32 %v3661, 0.0
    %v3666 = vpack.c.bf16 %v3665, %v3664
    %v3668 = vunpack.c.l.b16 %v3666
    %v3669 = vunpack.c.h.b16 %v3666
    %v3670 = vpack.c.b16 %v3668, %v3668
    %v3671 = vpack.c.b16 %v3669, %v3669
    %3674 = vst [vmem:[%s9] sm:$0xf] %v3670
    %3675 = vst [vmem:[%s9 + $0x4] sm:$0xf] %v3671
    // Predicated region
    $region50: #{_forward_impl.1} parent=1 // pred_check
      _
    $region51: #{_forward_impl.1} parent=1 // pred_check_branch
      %3677 = sbr.rel (0) target = $region53
    $region52: #{_forward_impl.1} parent=1 // pred_region
      _
    $region53: #{_forward_impl.1} parent=1 // pred_fallthru
      _
    // Predicated region
    $region54: #{_forward_impl.1} parent=1 // pred_check
      _
    $region55: #{_forward_impl.1} parent=1 // pred_check_branch
      %3679 = sbr.rel (0) target = $region57
    $region56: #{_forward_impl.1} parent=1 // pred_region
      _
    $region57: #{_forward_impl.1} parent=1 // pred_fallthru
      _
    %3680 = vsyncpa [#allocation3], 1
    %3681 = vsyncpa [#allocation5], 1

// kernel: _forward_impl.1
$region0: #{_forward_impl.1}
  #allocation0 [shape = 'u32[]', space=smem, size = 0x4, offset = 0x4, fixed_abs, tag = 'smem constant byte address 0x4 - core index']
  #allocation1 [shape = 'u32[144,128]{1,0:T(1,128)}', space=vmem, size = 0x12000, scoped, tag = 'internal scratch']
  %s0 = inlined_call_operand.vmem [shape: f32[16,256], index: 0, kind: input, shape index: {}]
  %s1 = inlined_call_operand.hbm [shape: bf16[256,1024], index: 1, kind: input, shape index: {}]
  %s2 = inlined_call_operand.vmem [shape: f32[1,1024], index: 2, kind: input, shape index: {}]
  %s3 = inlined_call_operand.hbm [shape: bf16[1024,512], index: 3, kind: input, shape index: {}]
  %s4 = inlined_call_operand.vmem [shape: f32[1,512], index: 4, kind: input, shape index: {}]
  %s5 = inlined_call_operand.hbm [shape: bf16[512,256], index: 5, kind: input, shape index: {}]
  %s6 = inlined_call_operand.vmem [shape: f32[1,256], index: 6, kind: input, shape index: {}]
  %s7 = inlined_call_operand.vmem [shape: bf16[256,128], index: 7, kind: input, shape index: {}]
  %s8 = inlined_call_operand.vmem [shape: f32[1,128], index: 8, kind: input, shape index: {}]
  %s9 = inlined_call_operand.vmem [shape: bf16[16,128], index: 9, kind: output, shape index: {}]
  %s10 = sld [smem:[#allocation0]]
  $region58: #{_forward_impl.1} parent=0
    _
  %s12 = ssub.s32 1, %s10
  %s13 = scalar_select 0, %s12, %s10
  $region1: #{_forward_impl.1} parent=0
    #allocation2 [shape = 'u8[524288]{0}', space=vmem, size = 0x80000, scoped, tag = 'input window, operand 1, single buffered']
    #allocation3 [shape = 's32[1]{0}', space=sflag, size = 0x4, scoped, tag = 'scoped memory for _forward_impl.1']
    #allocation4 [shape = 'u8[1048576]{0}', space=vmem, size = 0x100000, scoped, tag = 'input window, operand 3, single buffered']
    #allocation5 [shape = 's32[1]{0}', space=sflag, size = 0x4, scoped, tag = 'scoped memory for _forward_impl.1']
    #allocation6 [shape = 'u8[262144]{0}', space=vmem, size = 0x40000, scoped, tag = 'input window, operand 5, single buffered']
    %14 = vsyncpa [#allocation3], 0
    %15 = vsyncpa [#allocation5], 0
    // Predicated region
    $region2: #{_forward_impl.1} parent=1 // pred_check
      _
    $region3: #{_forward_impl.1} parent=1 // pred_check_branch
      %17 = sbr.rel (0) target = $region5
    $region4: #{_forward_impl.1} parent=1 // pred_region
      _
    $region5: #{_forward_impl.1} parent=1 // pred_fallthru
      _
    // Predicated region
    $region6: #{_forward_impl.1} parent=1 // pred_check
      _
    $region7: #{_forward_impl.1} parent=1 // pred_check_branch
      %19 = sbr.rel (0) target = $region9
    $region8: #{_forward_impl.1} parent=1 // pred_region
      %s21 = ssub.s32 16384, 16384
      %22 = vsyncadd [#allocation3], %s21
      %s23 = sshll.u32 [#allocation2], 4
      %s24 = int_to_ptr.vmem [resolvable:$true] %s23
      %29 = dma.hbm_to_vmem [thread:$0]  %s1, 16384, %s24, [#allocation3], 512, 512, 32
    $region9: #{_forward_impl.1} parent=1 // pred_fallthru
      _
    // Predicated region
    $region10: #{_forward_impl.1} parent=1 // pred_check
      _
    $region11: #{_forward_impl.1} parent=1 // pred_check_branch
      %31 = sbr.rel (0) target = $region13
    $region12: #{_forward_impl.1} parent=1 // pred_region
      _
    $region13: #{_forward_impl.1} parent=1 // pred_fallthru
      _
    // Predicated region
    $region14: #{_forward_impl.1} parent=1 // pred_check
      _
    $region15: #{_forward_impl.1} parent=1 // pred_check_branch
      %33 = sbr.rel (0) target = $region17
    $region16: #{_forward_impl.1} parent=1 // pred_region
      %s35 = ssub.s32 32768, 32768
      %36 = vsyncadd [#allocation5], %s35
      %s37 = sshll.u32 [#allocation4], 4
      %s38 = int_to_ptr.vmem [resolvable:$true] %s37
      %43 = dma.hbm_to_vmem [thread:$0]  %s3, 32768, %s38, [#allocation5], 256, 256, 16
    $region17: #{_forward_impl.1} parent=1 // pred_fallthru
      _
    // Predicated region
    $region18: #{_forward_impl.1} parent=1 // pred_check
      _
    $region19: #{_forward_impl.1} parent=1 // pred_check_branch
      %45 = sbr.rel (0) target = $region21
    $region20: #{_forward_impl.1} parent=1 // pred_region
      _
    $region21: #{_forward_impl.1} parent=1 // pred_fallthru
      _
    // Predicated region
    $region22: #{_forward_impl.1} parent=1 // pred_check
      _
    $region23: #{_forward_impl.1} parent=1 // pred_check_branch
      %47 = sbr.rel (0) target = $region25
    $region24: #{_forward_impl.1} parent=1 // pred_region
      %s49 = ssub.s32 8192, 8192
      %50 = vsyncadd [#allocation5], %s49
      %s51 = sshll.u32 [#allocation6], 4
      %s52 = int_to_ptr.vmem [resolvable:$true] %s51
      %57 = dma.hbm_to_vmem [thread:$0]  %s5, 8192, %s52, [#allocation5], 128, 128, 8
    $region25: #{_forward_impl.1} parent=1 // pred_fallthru
      _
    // Predicated region
    $region26: #{_forward_impl.1} parent=1 // pred_check
      _
    $region27: #{_forward_impl.1} parent=1 // pred_check_branch
      %59 = sbr.rel (0) target = $region29
    $region28: #{_forward_impl.1} parent=1 // pred_region
      _
    $region29: #{_forward_impl.1} parent=1 // pred_fallthru
      _
    // Predicated region
    $region30: #{_forward_impl.1} parent=1 // pred_check
      _
    $region31: #{_forward_impl.1} parent=1 // pred_check_branch
      %61 = sbr.rel (0) target = $region33
    $region32: #{_forward_impl.1} parent=1 // pred_region
      _
    $region33: #{_forward_impl.1} parent=1 // pred_fallthru
      _
    // Predicated region
    $region34: #{_forward_impl.1} parent=1 // pred_check
      _
    $region35: #{_forward_impl.1} parent=1 // pred_check_branch
      %63 = sbr.rel (0) target = $region37
    $region36: #{_forward_impl.1} parent=1 // pred_region
      _
    $region37: #{_forward_impl.1} parent=1 // pred_fallthru
      _
    // Predicated region
    $region38: #{_forward_impl.1} parent=1 // pred_check
      _
    $region39: #{_forward_impl.1} parent=1 // pred_check_branch
      %65 = sbr.rel (0) target = $region41
    $region40: #{_forward_impl.1} parent=1 // pred_region
      %66 = dma.done [#allocation3], 16384
    $region41: #{_forward_impl.1} parent=1 // pred_fallthru
      _
    // Predicated region
    $region42: #{_forward_impl.1} parent=1 // pred_check
      _
    $region43: #{_forward_impl.1} parent=1 // pred_check_branch
      %68 = sbr.rel (0) target = $region45
    $region44: #{_forward_impl.1} parent=1 // pred_region
      %69 = dma.done [#allocation5], 32768
    $region45: #{_forward_impl.1} parent=1 // pred_fallthru
      _
    // Predicated region
    $region46: #{_forward_impl.1} parent=1 // pred_check
      _
    $region47: #{_forward_impl.1} parent=1 // pred_check_branch
      %71 = sbr.rel (0) target = $region49
    $region48: #{_forward_impl.1} parent=1 // pred_region
      %72 = dma.done [#allocation5], 8192
    $region49: #{_forward_impl.1} parent=1 // pred_fallthru
      _
    %v74 = vld [vmem:[%s0] sm:$0xff]
    %v75 = vld [vmem:[%s0 + $0x8] sm:$0xff]
    %v76 = vld [vmem:[%s0 + $0x10] sm:$0xff]
    %v77 = vld [vmem:[%s0 + $0x18] sm:$0xff]
    %v78 = vpack.c.bf16 %v76, %v74
    %v79 = vpack.c.bf16 %v77, %v75
    %v80 = vld [vmem:[#allocation2] sm:$0xff]
    %v81 = vld [vmem:[#allocation2 + $0x8] sm:$0xff]
    %v82 = vld [vmem:[#allocation2 + $0x10] sm:$0xff]
    %v83 = vld [vmem:[#allocation2 + $0x18] sm:$0xff]
    %v84 = vld [vmem:[#allocation2 + $0x20] sm:$0xff]
    %v85 = vld [vmem:[#allocation2 + $0x28] sm:$0xff]
    %v86 = vld [vmem:[#allocation2 + $0x30] sm:$0xff]
    %v87 = vld [vmem:[#allocation2 + $0x38] sm:$0xff]
    %v88 = vld [vmem:[#allocation2 + $0x40] sm:$0xff]
    %v89 = vld [vmem:[#allocation2 + $0x48] sm:$0xff]
    %v90 = vld [vmem:[#allocation2 + $0x50] sm:$0xff]
    %v91 = vld [vmem:[#allocation2 + $0x58] sm:$0xff]
    %v92 = vld [vmem:[#allocation2 + $0x60] sm:$0xff]
    %v93 = vld [vmem:[#allocation2 + $0x68] sm:$0xff]
    %v94 = vld [vmem:[#allocation2 + $0x70] sm:$0xff]
    %v95 = vld [vmem:[#allocation2 + $0x78] sm:$0xff]
    %v96 = vld [vmem:[#allocation2 + $0x80] sm:$0xff]
    %v97 = vld [vmem:[#allocation2 + $0x88] sm:$0xff]
    %v98 = vld [vmem:[#allocation2 + $0x90] sm:$0xff]
    %v99 = vld [vmem:[#allocation2 + $0x98] sm:$0xff]
    %v100 = vld [vmem:[#allocation2 + $0xa0] sm:$0xff]
    %v101 = vld [vmem:[#allocation2 + $0xa8] sm:$0xff]
    %v102 = vld [vmem:[#allocation2 + $0xb0] sm:$0xff]
    %v103 = vld [vmem:[#allocation2 + $0xb8] sm:$0xff]
    %v104 = vld [vmem:[#allocation2 + $0xc0] sm:$0xff]
    %v105 = vld [vmem:[#allocation2 + $0xc8] sm:$0xff]
    %v106 = vld [vmem:[#allocation2 + $0xd0] sm:$0xff]
    %v107 = vld [vmem:[#allocation2 + $0xd8] sm:$0xff]
    %v108 = vld [vmem:[#allocation2 + $0xe0] sm:$0xff]
    %v109 = vld [vmem:[#allocation2 + $0xe8] sm:$0xff]
    %v110 = vld [vmem:[#allocation2 + $0xf0] sm:$0xff]
    %v111 = vld [vmem:[#allocation2 + $0xf8] sm:$0xff]
    %v112 = vld [vmem:[#allocation2 + $0x100] sm:$0xff]
    %v113 = vld [vmem:[#allocation2 + $0x108] sm:$0xff]
    %v114 = vld [vmem:[#allocation2 + $0x110] sm:$0xff]
    %v115 = vld [vmem:[#allocation2 + $0x118] sm:$0xff]
    %v116 = vld [vmem:[#allocation2 + $0x120] sm:$0xff]
    %v117 = vld [vmem:[#allocation2 + $0x128] sm:$0xff]
    %v118 = vld [vmem:[#allocation2 + $0x130] sm:$0xff]
    %v119 = vld [vmem:[#allocation2 + $0x138] sm:$0xff]
    %v120 = vld [vmem:[#allocation2 + $0x140] sm:$0xff]
    %v121 = vld [vmem:[#allocation2 + $0x148] sm:$0xff]
    %v122 = vld [vmem:[#allocation2 + $0x150] sm:$0xff]
    %v123 = vld [vmem:[#allocation2 + $0x158] sm:$0xff]
    %v124 = vld [vmem:[#allocation2 + $0x160] sm:$0xff]
    %v125 = vld [vmem:[#allocation2 + $0x168] sm:$0xff]
    %v126 = vld [vmem:[#allocation2 + $0x170] sm:$0xff]
    %v127 = vld [vmem:[#allocation2 + $0x178] sm:$0xff]
    %v128 = vld [vmem:[#allocation2 + $0x180] sm:$0xff]
    %v129 = vld [vmem:[#allocation2 + $0x188] sm:$0xff]
    %v130 = vld [vmem:[#allocation2 + $0x190] sm:$0xff]
    %v131 = vld [vmem:[#allocation2 + $0x198] sm:$0xff]
    %v132 = vld [vmem:[#allocation2 + $0x1a0] sm:$0xff]
    %v133 = vld [vmem:[#allocation2 + $0x1a8] sm:$0xff]
    %v134 = vld [vmem:[#allocation2 + $0x1b0] sm:$0xff]
    %v135 = vld [vmem:[#allocation2 + $0x1b8] sm:$0xff]
    %v136 = vld [vmem:[#allocation2 + $0x1c0] sm:$0xff]
    %v137 = vld [vmem:[#allocation2 + $0x1c8] sm:$0xff]
    %v138 = vld [vmem:[#allocation2 + $0x1d0] sm:$0xff]
    %v139 = vld [vmem:[#allocation2 + $0x1d8] sm:$0xff]
    %v140 = vld [vmem:[#allocation2 + $0x1e0] sm:$0xff]
    %v141 = vld [vmem:[#allocation2 + $0x1e8] sm:$0xff]
    %v142 = vld [vmem:[#allocation2 + $0x1f0] sm:$0xff]
    %v143 = vld [vmem:[#allocation2 + $0x1f8] sm:$0xff]
    %v144 = vld [vmem:[#allocation2 + $0x200] sm:$0xff]
    %v145 = vld [vmem:[#allocation2 + $0x208] sm:$0xff]
    %v146 = vld [vmem:[#allocation2 + $0x210] sm:$0xff]
    %v147 = vld [vmem:[#allocation2 + $0x218] sm:$0xff]
    %v148 = vld [vmem:[#allocation2 + $0x220] sm:$0xff]
    %v149 = vld [vmem:[#allocation2 + $0x228] sm:$0xff]
    %v150 = vld [vmem:[#allocation2 + $0x230] sm:$0xff]
    %v151 = vld [vmem:[#allocation2 + $0x238] sm:$0xff]
    %v152 = vld [vmem:[#allocation2 + $0x240] sm:$0xff]
    %v153 = vld [vmem:[#allocation2 + $0x248] sm:$0xff]
    %v154 = vld [vmem:[#allocation2 + $0x250] sm:$0xff]
    %v155 = vld [vmem:[#allocation2 + $0x258] sm:$0xff]
    %v156 = vld [vmem:[#allocation2 + $0x260] sm:$0xff]
    %v157 = vld [vmem:[#allocation2 + $0x268] sm:$0xff]
    %v158 = vld [vmem:[#allocation2 + $0x270] sm:$0xff]
    %v159 = vld [vmem:[#allocation2 + $0x278] sm:$0xff]
    %v160 = vld [vmem:[#allocation2 + $0x280] sm:$0xff]
    %v161 = vld [vmem:[#allocation2 + $0x288] sm:$0xff]
    %v162 = vld [vmem:[#allocation2 + $0x290] sm:$0xff]
    %v163 = vld [vmem:[#allocation2 + $0x298] sm:$0xff]
    %v164 = vld [vmem:[#allocation2 + $0x2a0] sm:$0xff]
    %v165 = vld [vmem:[#allocation2 + $0x2a8] sm:$0xff]
    %v166 = vld [vmem:[#allocation2 + $0x2b0] sm:$0xff]
    %v167 = vld [vmem:[#allocation2 + $0x2b8] sm:$0xff]
    %v168 = vld [vmem:[#allocation2 + $0x2c0] sm:$0xff]
    %v169 = vld [vmem:[#allocation2 + $0x2c8] sm:$0xff]
    %v170 = vld [vmem:[#allocation2 + $0x2d0] sm:$0xff]
    %v171 = vld [vmem:[#allocation2 + $0x2d8] sm:$0xff]
    %v172 = vld [vmem:[#allocation2 + $0x2e0] sm:$0xff]
    %v173 = vld [vmem:[#allocation2 + $0x2e8] sm:$0xff]
    %v174 = vld [vmem:[#allocation2 + $0x2f0] sm:$0xff]
    %v175 = vld [vmem:[#allocation2 + $0x2f8] sm:$0xff]
    %v176 = vld [vmem:[#allocation2 + $0x300] sm:$0xff]
    %v177 = vld [vmem:[#allocation2 + $0x308] sm:$0xff]
    %v178 = vld [vmem:[#allocation2 + $0x310] sm:$0xff]
    %v179 = vld [vmem:[#allocation2 + $0x318] sm:$0xff]
    %v180 = vld [vmem:[#allocation2 + $0x320] sm:$0xff]
    %v181 = vld [vmem:[#allocation2 + $0x328] sm:$0xff]
    %v182 = vld [vmem:[#allocation2 + $0x330] sm:$0xff]
    %v183 = vld [vmem:[#allocation2 + $0x338] sm:$0xff]
    %v184 = vld [vmem:[#allocation2 + $0x340] sm:$0xff]
    %v185 = vld [vmem:[#allocation2 + $0x348] sm:$0xff]
    %v186 = vld [vmem:[#allocation2 + $0x350] sm:$0xff]
    %v187 = vld [vmem:[#allocation2 + $0x358] sm:$0xff]
    %v188 = vld [vmem:[#allocation2 + $0x360] sm:$0xff]
    %v189 = vld [vmem:[#allocation2 + $0x368] sm:$0xff]
    %v190 = vld [vmem:[#allocation2 + $0x370] sm:$0xff]
    %v191 = vld [vmem:[#allocation2 + $0x378] sm:$0xff]
    %v192 = vld [vmem:[#allocation2 + $0x380] sm:$0xff]
    %v193 = vld [vmem:[#allocation2 + $0x388] sm:$0xff]
    %v194 = vld [vmem:[#allocation2 + $0x390] sm:$0xff]
    %v195 = vld [vmem:[#allocation2 + $0x398] sm:$0xff]
    %v196 = vld [vmem:[#allocation2 + $0x3a0] sm:$0xff]
    %v197 = vld [vmem:[#allocation2 + $0x3a8] sm:$0xff]
    %v198 = vld [vmem:[#allocation2 + $0x3b0] sm:$0xff]
    %v199 = vld [vmem:[#allocation2 + $0x3b8] sm:$0xff]
    %v200 = vld [vmem:[#allocation2 + $0x3c0] sm:$0xff]
    %v201 = vld [vmem:[#allocation2 + $0x3c8] sm:$0xff]
    %v202 = vld [vmem:[#allocation2 + $0x3d0] sm:$0xff]
    %v203 = vld [vmem:[#allocation2 + $0x3d8] sm:$0xff]
    %v204 = vld [vmem:[#allocation2 + $0x3e0] sm:$0xff]
    %v205 = vld [vmem:[#allocation2 + $0x3e8] sm:$0xff]
    %v206 = vld [vmem:[#allocation2 + $0x3f0] sm:$0xff]
    %v207 = vld [vmem:[#allocation2 + $0x3f8] sm:$0xff]
    %v208 = vld [vmem:[%s2] sm:$0xff]
    %v210 = vlaneseq
    %v211 = vshrl.u32 %v210, 7
    %v212 = vsub.s32 0, %v211
    %v213 = vrot.slane %v208, %v212
    %v214 = vlaneseq
    %v215 = vshrl.u32 %v214, 7
    %v216 = vsub.s32 1, %v215
    %v217 = vrot.slane %v208, %v216
    %v218 = vlaneseq
    %v219 = vshrl.u32 %v218, 7
    %v220 = vsub.s32 2, %v219
    %v221 = vrot.slane %v208, %v220
    %v222 = vlaneseq
    %v223 = vshrl.u32 %v222, 7
    %v224 = vsub.s32 3, %v223
    %v225 = vrot.slane %v208, %v224
    %v226 = vlaneseq
    %v227 = vshrl.u32 %v226, 7
    %v228 = vsub.s32 4, %v227
    %v229 = vrot.slane %v208, %v228
    %v230 = vlaneseq
    %v231 = vshrl.u32 %v230, 7
    %v232 = vsub.s32 5, %v231
    %v233 = vrot.slane %v208, %v232
    %v234 = vlaneseq
    %v235 = vshrl.u32 %v234, 7
    %v236 = vsub.s32 6, %v235
    %v237 = vrot.slane %v208, %v236
    %v238 = vlaneseq
    %v239 = vshrl.u32 %v238, 7
    %v240 = vsub.s32 7, %v239
    %v241 = vrot.slane %v208, %v240
    %v378 = vunpack.c.l.b16 %v80
    %v379 = vunpack.c.h.b16 %v80
    %v380 = vunpack.c.l.b16 %v81
    %v381 = vunpack.c.h.b16 %v81
    %v382 = vunpack.c.l.b16 %v82
    %v383 = vunpack.c.h.b16 %v82
    %v384 = vunpack.c.l.b16 %v83
    %v385 = vunpack.c.h.b16 %v83
    %v386 = vunpack.c.l.b16 %v84
    %v387 = vunpack.c.h.b16 %v84
    %v388 = vunpack.c.l.b16 %v85
    %v389 = vunpack.c.h.b16 %v85
    %v390 = vunpack.c.l.b16 %v86
    %v391 = vunpack.c.h.b16 %v86
    %v392 = vunpack.c.l.b16 %v87
    %v393 = vunpack.c.h.b16 %v87
    %v394 = vunpack.c.l.b16 %v88
    %v395 = vunpack.c.h.b16 %v88
    %v396 = vunpack.c.l.b16 %v89
    %v397 = vunpack.c.h.b16 %v89
    %v398 = vunpack.c.l.b16 %v90
    %v399 = vunpack.c.h.b16 %v90
    %v400 = vunpack.c.l.b16 %v91
    %v401 = vunpack.c.h.b16 %v91
    %v402 = vunpack.c.l.b16 %v92
    %v403 = vunpack.c.h.b16 %v92
    %v404 = vunpack.c.l.b16 %v93
    %v405 = vunpack.c.h.b16 %v93
    %v406 = vunpack.c.l.b16 %v94
    %v407 = vunpack.c.h.b16 %v94
    %v408 = vunpack.c.l.b16 %v95
    %v409 = vunpack.c.h.b16 %v95
    %v410 = vunpack.c.l.b16 %v96
    %v411 = vunpack.c.h.b16 %v96
    %v412 = vunpack.c.l.b16 %v97
    %v413 = vunpack.c.h.b16 %v97
    %v414 = vunpack.c.l.b16 %v98
    %v415 = vunpack.c.h.b16 %v98
    %v416 = vunpack.c.l.b16 %v99
    %v417 = vunpack.c.h.b16 %v99
    %v418 = vunpack.c.l.b16 %v100
    %v419 = vunpack.c.h.b16 %v100
    %v420 = vunpack.c.l.b16 %v101
    %v421 = vunpack.c.h.b16 %v101
    %v422 = vunpack.c.l.b16 %v102
    %v423 = vunpack.c.h.b16 %v102
    %v424 = vunpack.c.l.b16 %v103
    %v425 = vunpack.c.h.b16 %v103
    %v426 = vunpack.c.l.b16 %v104
    %v427 = vunpack.c.h.b16 %v104
    %v428 = vunpack.c.l.b16 %v105
    %v429 = vunpack.c.h.b16 %v105
    %v430 = vunpack.c.l.b16 %v106
    %v431 = vunpack.c.h.b16 %v106
    %v432 = vunpack.c.l.b16 %v107
    %v433 = vunpack.c.h.b16 %v107
    %v434 = vunpack.c.l.b16 %v108
    %v435 = vunpack.c.h.b16 %v108
    %v436 = vunpack.c.l.b16 %v109
    %v437 = vunpack.c.h.b16 %v109
    %v438 = vunpack.c.l.b16 %v110
    %v439 = vunpack.c.h.b16 %v110
    %v440 = vunpack.c.l.b16 %v111
    %v441 = vunpack.c.h.b16 %v111
    %v442 = vunpack.c.l.b16 %v112
    %v443 = vunpack.c.h.b16 %v112
    %v444 = vunpack.c.l.b16 %v113
    %v445 = vunpack.c.h.b16 %v113
    %v446 = vunpack.c.l.b16 %v114
    %v447 = vunpack.c.h.b16 %v114
    %v448 = vunpack.c.l.b16 %v115
    %v449 = vunpack.c.h.b16 %v115
    %v450 = vunpack.c.l.b16 %v116
    %v451 = vunpack.c.h.b16 %v116
    %v452 = vunpack.c.l.b16 %v117
    %v453 = vunpack.c.h.b16 %v117
    %v454 = vunpack.c.l.b16 %v118
    %v455 = vunpack.c.h.b16 %v118
    %v456 = vunpack.c.l.b16 %v119
    %v457 = vunpack.c.h.b16 %v119
    %v458 = vunpack.c.l.b16 %v120
    %v459 = vunpack.c.h.b16 %v120
    %v460 = vunpack.c.l.b16 %v121
    %v461 = vunpack.c.h.b16 %v121
    %v462 = vunpack.c.l.b16 %v122
    %v463 = vunpack.c.h.b16 %v122
    %v464 = vunpack.c.l.b16 %v123
    %v465 = vunpack.c.h.b16 %v123
    %v466 = vunpack.c.l.b16 %v124
    %v467 = vunpack.c.h.b16 %v124
    %v468 = vunpack.c.l.b16 %v125
    %v469 = vunpack.c.h.b16 %v125
    %v470 = vunpack.c.l.b16 %v126
    %v471 = vunpack.c.h.b16 %v126
    %v472 = vunpack.c.l.b16 %v127
    %v473 = vunpack.c.h.b16 %v127
    %v474 = vunpack.c.l.b16 %v128
    %v475 = vunpack.c.h.b16 %v128
    %v476 = vunpack.c.l.b16 %v129
    %v477 = vunpack.c.h.b16 %v129
    %v478 = vunpack.c.l.b16 %v130
    %v479 = vunpack.c.h.b16 %v130
    %v480 = vunpack.c.l.b16 %v131
    %v481 = vunpack.c.h.b16 %v131
    %v482 = vunpack.c.l.b16 %v132
    %v483 = vunpack.c.h.b16 %v132
    %v484 = vunpack.c.l.b16 %v133
    %v485 = vunpack.c.h.b16 %v133
    %v486 = vunpack.c.l.b16 %v134
    %v487 = vunpack.c.h.b16 %v134
    %v488 = vunpack.c.l.b16 %v135
    %v489 = vunpack.c.h.b16 %v135
    %v490 = vunpack.c.l.b16 %v136
    %v491 = vunpack.c.h.b16 %v136
    %v492 = vunpack.c.l.b16 %v137
    %v493 = vunpack.c.h.b16 %v137
    %v494 = vunpack.c.l.b16 %v138
    %v495 = vunpack.c.h.b16 %v138
    %v496 = vunpack.c.l.b16 %v139
    %v497 = vunpack.c.h.b16 %v139
    %v498 = vunpack.c.l.b16 %v140
    %v499 = vunpack.c.h.b16 %v140
    %v500 = vunpack.c.l.b16 %v141
    %v501 = vunpack.c.h.b16 %v141
    %v502 = vunpack.c.l.b16 %v142
    %v503 = vunpack.c.h.b16 %v142
    %v504 = vunpack.c.l.b16 %v143
    %v505 = vunpack.c.h.b16 %v143
    %v506 = vunpack.c.l.b16 %v144
    %v507 = vunpack.c.h.b16 %v144
    %v508 = vunpack.c.l.b16 %v145
    %v509 = vunpack.c.h.b16 %v145
    %v510 = vunpack.c.l.b16 %v146
    %v511 = vunpack.c.h.b16 %v146
    %v512 = vunpack.c.l.b16 %v147
    %v513 = vunpack.c.h.b16 %v147
    %v514 = vunpack.c.l.b16 %v148
    %v515 = vunpack.c.h.b16 %v148
    %v516 = vunpack.c.l.b16 %v149
    %v517 = vunpack.c.h.b16 %v149
    %v518 = vunpack.c.l.b16 %v150
    %v519 = vunpack.c.h.b16 %v150
    %v520 = vunpack.c.l.b16 %v151
    %v521 = vunpack.c.h.b16 %v151
    %v522 = vunpack.c.l.b16 %v152
    %v523 = vunpack.c.h.b16 %v152
    %v524 = vunpack.c.l.b16 %v153
    %v525 = vunpack.c.h.b16 %v153
    %v526 = vunpack.c.l.b16 %v154
    %v527 = vunpack.c.h.b16 %v154
    %v528 = vunpack.c.l.b16 %v155
    %v529 = vunpack.c.h.b16 %v155
    %v530 = vunpack.c.l.b16 %v156
    %v531 = vunpack.c.h.b16 %v156
    %v532 = vunpack.c.l.b16 %v157
    %v533 = vunpack.c.h.b16 %v157
    %v534 = vunpack.c.l.b16 %v158
    %v535 = vunpack.c.h.b16 %v158
    %v536 = vunpack.c.l.b16 %v159
    %v537 = vunpack.c.h.b16 %v159
    %v538 = vunpack.c.l.b16 %v160
    %v539 = vunpack.c.h.b16 %v160
    %v540 = vunpack.c.l.b16 %v161
    %v541 = vunpack.c.h.b16 %v161
    %v542 = vunpack.c.l.b16 %v162
    %v543 = vunpack.c.h.b16 %v162
    %v544 = vunpack.c.l.b16 %v163
    %v545 = vunpack.c.h.b16 %v163
    %v546 = vunpack.c.l.b16 %v164
    %v547 = vunpack.c.h.b16 %v164
    %v548 = vunpack.c.l.b16 %v165
    %v549 = vunpack.c.h.b16 %v165
    %v550 = vunpack.c.l.b16 %v166
    %v551 = vunpack.c.h.b16 %v166
    %v552 = vunpack.c.l.b16 %v167
    %v553 = vunpack.c.h.b16 %v167
    %v554 = vunpack.c.l.b16 %v168
    %v555 = vunpack.c.h.b16 %v168
    %v556 = vunpack.c.l.b16 %v169
    %v557 = vunpack.c.h.b16 %v169
    %v558 = vunpack.c.l.b16 %v170
    %v559 = vunpack.c.h.b16 %v170
    %v560 = vunpack.c.l.b16 %v171
    %v561 = vunpack.c.h.b16 %v171
    %v562 = vunpack.c.l.b16 %v172
    %v563 = vunpack.c.h.b16 %v172
    %v564 = vunpack.c.l.b16 %v173
    %v565 = vunpack.c.h.b16 %v173
    %v566 = vunpack.c.l.b16 %v174
    %v567 = vunpack.c.h.b16 %v174
    %v568 = vunpack.c.l.b16 %v175
    %v569 = vunpack.c.h.b16 %v175
    %v570 = vunpack.c.l.b16 %v176
    %v571 = vunpack.c.h.b16 %v176
    %v572 = vunpack.c.l.b16 %v177
    %v573 = vunpack.c.h.b16 %v177
    %v574 = vunpack.c.l.b16 %v178
    %v575 = vunpack.c.h.b16 %v178
    %v576 = vunpack.c.l.b16 %v179
    %v577 = vunpack.c.h.b16 %v179
    %v578 = vunpack.c.l.b16 %v180
    %v579 = vunpack.c.h.b16 %v180
    %v580 = vunpack.c.l.b16 %v181
    %v581 = vunpack.c.h.b16 %v181
    %v582 = vunpack.c.l.b16 %v182
    %v583 = vunpack.c.h.b16 %v182
    %v584 = vunpack.c.l.b16 %v183
    %v585 = vunpack.c.h.b16 %v183
    %v586 = vunpack.c.l.b16 %v184
    %v587 = vunpack.c.h.b16 %v184
    %v588 = vunpack.c.l.b16 %v185
    %v589 = vunpack.c.h.b16 %v185
    %v590 = vunpack.c.l.b16 %v186
    %v591 = vunpack.c.h.b16 %v186
    %v592 = vunpack.c.l.b16 %v187
    %v593 = vunpack.c.h.b16 %v187
    %v594 = vunpack.c.l.b16 %v188
    %v595 = vunpack.c.h.b16 %v188
    %v596 = vunpack.c.l.b16 %v189
    %v597 = vunpack.c.h.b16 %v189
    %v598 = vunpack.c.l.b16 %v190
    %v599 = vunpack.c.h.b16 %v190
    %v600 = vunpack.c.l.b16 %v191
    %v601 = vunpack.c.h.b16 %v191
    %v602 = vunpack.c.l.b16 %v192
    %v603 = vunpack.c.h.b16 %v192
    %v604 = vunpack.c.l.b16 %v193
    %v605 = vunpack.c.h.b16 %v193
    %v606 = vunpack.c.l.b16 %v194
    %v607 = vunpack.c.h.b16 %v194
    %v608 = vunpack.c.l.b16 %v195
    %v609 = vunpack.c.h.b16 %v195
    %v610 = vunpack.c.l.b16 %v196
    %v611 = vunpack.c.h.b16 %v196
    %v612 = vunpack.c.l.b16 %v197
    %v613 = vunpack.c.h.b16 %v197
    %v614 = vunpack.c.l.b16 %v198
    %v615 = vunpack.c.h.b16 %v198
    %v616 = vunpack.c.l.b16 %v199
    %v617 = vunpack.c.h.b16 %v199
    %v618 = vunpack.c.l.b16 %v200
    %v619 = vunpack.c.h.b16 %v200
    %v620 = vunpack.c.l.b16 %v201
    %v621 = vunpack.c.h.b16 %v201
    %v622 = vunpack.c.l.b16 %v202
    %v623 = vunpack.c.h.b16 %v202
    %v624 = vunpack.c.l.b16 %v203
    %v625 = vunpack.c.h.b16 %v203
    %v626 = vunpack.c.l.b16 %v204
    %v627 = vunpack.c.h.b16 %v204
    %v628 = vunpack.c.l.b16 %v205
    %v629 = vunpack.c.h.b16 %v205
    %v630 = vunpack.c.l.b16 %v206
    %v631 = vunpack.c.h.b16 %v206
    %v632 = vunpack.c.l.b16 %v207
    %v633 = vunpack.c.h.b16 %v207
    %v634 = vpack.c.b16 %v386, %v378
    %v635 = vpack.c.b16 %v387, %v379
    %v636 = vpack.c.b16 %v388, %v380
    %v637 = vpack.c.b16 %v389, %v381
    %v638 = vpack.c.b16 %v390, %v382
    %v639 = vpack.c.b16 %v391, %v383
    %v640 = vpack.c.b16 %v392, %v384
    %v641 = vpack.c.b16 %v393, %v385
    %v642 = vpack.c.b16 %v402, %v394
    %v643 = vpack.c.b16 %v403, %v395
    %v644 = vpack.c.b16 %v404, %v396
    %v645 = vpack.c.b16 %v405, %v397
    %v646 = vpack.c.b16 %v406, %v398
    %v647 = vpack.c.b16 %v407, %v399
    %v648 = vpack.c.b16 %v408, %v400
    %v649 = vpack.c.b16 %v409, %v401
    %v650 = vpack.c.b16 %v418, %v410
    %v651 = vpack.c.b16 %v419, %v411
    %v652 = vpack.c.b16 %v420, %v412
    %v653 = vpack.c.b16 %v421, %v413
    %v654 = vpack.c.b16 %v422, %v414
    %v655 = vpack.c.b16 %v423, %v415
    %v656 = vpack.c.b16 %v424, %v416
    %v657 = vpack.c.b16 %v425, %v417
    %v658 = vpack.c.b16 %v434, %v426
    %v659 = vpack.c.b16 %v435, %v427
    %v660 = vpack.c.b16 %v436, %v428
    %v661 = vpack.c.b16 %v437, %v429
    %v662 = vpack.c.b16 %v438, %v430
    %v663 = vpack.c.b16 %v439, %v431
    %v664 = vpack.c.b16 %v440, %v432
    %v665 = vpack.c.b16 %v441, %v433
    %v666 = vpack.c.b16 %v450, %v442
    %v667 = vpack.c.b16 %v451, %v443
    %v668 = vpack.c.b16 %v452, %v444
    %v669 = vpack.c.b16 %v453, %v445
    %v670 = vpack.c.b16 %v454, %v446
    %v671 = vpack.c.b16 %v455, %v447
    %v672 = vpack.c.b16 %v456, %v448
    %v673 = vpack.c.b16 %v457, %v449
    %v674 = vpack.c.b16 %v466, %v458
    %v675 = vpack.c.b16 %v467, %v459
    %v676 = vpack.c.b16 %v468, %v460
    %v677 = vpack.c.b16 %v469, %v461
    %v678 = vpack.c.b16 %v470, %v462
    %v679 = vpack.c.b16 %v471, %v463
    %v680 = vpack.c.b16 %v472, %v464
    %v681 = vpack.c.b16 %v473, %v465
    %v682 = vpack.c.b16 %v482, %v474
    %v683 = vpack.c.b16 %v483, %v475
    %v684 = vpack.c.b16 %v484, %v476
    %v685 = vpack.c.b16 %v485, %v477
    %v686 = vpack.c.b16 %v486, %v478
    %v687 = vpack.c.b16 %v487, %v479
    %v688 = vpack.c.b16 %v488, %v480
    %v689 = vpack.c.b16 %v489, %v481
    %v690 = vpack.c.b16 %v498, %v490
    %v691 = vpack.c.b16 %v499, %v491
    %v692 = vpack.c.b16 %v500, %v492
    %v693 = vpack.c.b16 %v501, %v493
    %v694 = vpack.c.b16 %v502, %v494
    %v695 = vpack.c.b16 %v503, %v495
    %v696 = vpack.c.b16 %v504, %v496
    %v697 = vpack.c.b16 %v505, %v497
    %v698 = vpack.c.b16 %v514, %v506
    %v699 = vpack.c.b16 %v515, %v507
    %v700 = vpack.c.b16 %v516, %v508
    %v701 = vpack.c.b16 %v517, %v509
    %v702 = vpack.c.b16 %v518, %v510
    %v703 = vpack.c.b16 %v519, %v511
    %v704 = vpack.c.b16 %v520, %v512
    %v705 = vpack.c.b16 %v521, %v513
    %v706 = vpack.c.b16 %v530, %v522
    %v707 = vpack.c.b16 %v531, %v523
    %v708 = vpack.c.b16 %v532, %v524
    %v709 = vpack.c.b16 %v533, %v525
    %v710 = vpack.c.b16 %v534, %v526
    %v711 = vpack.c.b16 %v535, %v527
    %v712 = vpack.c.b16 %v536, %v528
    %v713 = vpack.c.b16 %v537, %v529
    %v714 = vpack.c.b16 %v546, %v538
    %v715 = vpack.c.b16 %v547, %v539
    %v716 = vpack.c.b16 %v548, %v540
    %v717 = vpack.c.b16 %v549, %v541
    %v718 = vpack.c.b16 %v550, %v542
    %v719 = vpack.c.b16 %v551, %v543
    %v720 = vpack.c.b16 %v552, %v544
    %v721 = vpack.c.b16 %v553, %v545
    %v722 = vpack.c.b16 %v562, %v554
    %v723 = vpack.c.b16 %v563, %v555
    %v724 = vpack.c.b16 %v564, %v556
    %v725 = vpack.c.b16 %v565, %v557
    %v726 = vpack.c.b16 %v566, %v558
    %v727 = vpack.c.b16 %v567, %v559
    %v728 = vpack.c.b16 %v568, %v560
    %v729 = vpack.c.b16 %v569, %v561
    %v730 = vpack.c.b16 %v578, %v570
    %v731 = vpack.c.b16 %v579, %v571
    %v732 = vpack.c.b16 %v580, %v572
    %v733 = vpack.c.b16 %v581, %v573
    %v734 = vpack.c.b16 %v582, %v574
    %v735 = vpack.c.b16 %v583, %v575
    %v736 = vpack.c.b16 %v584, %v576
    %v737 = vpack.c.b16 %v585, %v577
    %v738 = vpack.c.b16 %v594, %v586
    %v739 = vpack.c.b16 %v595, %v587
    %v740 = vpack.c.b16 %v596, %v588
    %v741 = vpack.c.b16 %v597, %v589
    %v742 = vpack.c.b16 %v598, %v590
    %v743 = vpack.c.b16 %v599, %v591
    %v744 = vpack.c.b16 %v600, %v592
    %v745 = vpack.c.b16 %v601, %v593
    %v746 = vpack.c.b16 %v610, %v602
    %v747 = vpack.c.b16 %v611, %v603
    %v748 = vpack.c.b16 %v612, %v604
    %v749 = vpack.c.b16 %v613, %v605
    %v750 = vpack.c.b16 %v614, %v606
    %v751 = vpack.c.b16 %v615, %v607
    %v752 = vpack.c.b16 %v616, %v608
    %v753 = vpack.c.b16 %v617, %v609
    %v754 = vpack.c.b16 %v626, %v618
    %v755 = vpack.c.b16 %v627, %v619
    %v756 = vpack.c.b16 %v628, %v620
    %v757 = vpack.c.b16 %v629, %v621
    %v758 = vpack.c.b16 %v630, %v622
    %v759 = vpack.c.b16 %v631, %v623
    %v760 = vpack.c.b16 %v632, %v624
    %v761 = vpack.c.b16 %v633, %v625
    %890 = vmatprep.subr.bf16.mxu0 %v635
    %891 = vmatpush1.bf16.msra.mxu0 %v634
    %892 = vmatprep.subr.bf16.mxu0 %v643
    %893 = vmatpush1.bf16.msra.mxu0 %v642
    %894 = vmatprep.subr.bf16.mxu0 %v651
    %895 = vmatpush1.bf16.msra.mxu0 %v650
    %896 = vmatprep.subr.bf16.mxu0 %v659
    %897 = vmatpush1.bf16.msra.mxu0 %v658
    %898 = vmatprep.subr.bf16.mxu0 %v667
    %899 = vmatpush1.bf16.msra.mxu0 %v666
    %900 = vmatprep.subr.bf16.mxu0 %v675
    %901 = vmatpush1.bf16.msra.mxu0 %v674
    %902 = vmatprep.subr.bf16.mxu0 %v683
    %903 = vmatpush1.bf16.msra.mxu0 %v682
    %904 = vmatprep.subr.bf16.mxu0 %v691
    %905 = vmatpush1.bf16.msra.mxu0 %v690
    %906 = vmatprep.subr.bf16.mxu0 %v699
    %907 = vmatpush1.bf16.msra.mxu0 %v698
    %908 = vmatprep.subr.bf16.mxu0 %v707
    %909 = vmatpush1.bf16.msra.mxu0 %v706
    %910 = vmatprep.subr.bf16.mxu0 %v715
    %911 = vmatpush1.bf16.msra.mxu0 %v714
    %912 = vmatprep.subr.bf16.mxu0 %v723
    %913 = vmatpush1.bf16.msra.mxu0 %v722
    %914 = vmatprep.subr.bf16.mxu0 %v731
    %915 = vmatpush1.bf16.msra.mxu0 %v730
    %916 = vmatprep.subr.bf16.mxu0 %v739
    %917 = vmatpush1.bf16.msra.mxu0 %v738
    %918 = vmatprep.subr.bf16.mxu0 %v747
    %919 = vmatpush1.bf16.msra.mxu0 %v746
    %920 = vmatprep.subr.bf16.mxu0 %v755
    %921 = vmatpush1.bf16.msra.mxu0 %v754
    %922 = vmatprep.mubr.bf16.mxu0 %v79
    %923 = vmatmul.mubr.bf16.gmra.mrb[0].mxu0 %v78
    %v924 = vpop.f32.mrb[0].mxu0
    %v925 = vadd.f32 %v213, %v924
    %v926 = vpop.f32.mrb[0].mxu0
    %v927 = vadd.f32 %v217, %v926
    %v928 = vpop.f32.mrb[0].mxu0
    %v929 = vadd.f32 %v213, %v928
    %v930 = vpop.f32.mrb[0].mxu0
    %v931 = vadd.f32 %v217, %v930
    %932 = vdwg.mxu0
    %933 = vmatprep.subr.bf16.mxu0 %v637
    %934 = vmatpush1.bf16.msra.mxu0 %v636
    %935 = vmatprep.subr.bf16.mxu0 %v645
    %936 = vmatpush1.bf16.msra.mxu0 %v644
    %937 = vmatprep.subr.bf16.mxu0 %v653
    %938 = vmatpush1.bf16.msra.mxu0 %v652
    %939 = vmatprep.subr.bf16.mxu0 %v661
    %940 = vmatpush1.bf16.msra.mxu0 %v660
    %941 = vmatprep.subr.bf16.mxu0 %v669
    %942 = vmatpush1.bf16.msra.mxu0 %v668
    %943 = vmatprep.subr.bf16.mxu0 %v677
    %944 = vmatpush1.bf16.msra.mxu0 %v676
    %945 = vmatprep.subr.bf16.mxu0 %v685
    %946 = vmatpush1.bf16.msra.mxu0 %v684
    %947 = vmatprep.subr.bf16.mxu0 %v693
    %948 = vmatpush1.bf16.msra.mxu0 %v692
    %949 = vmatprep.subr.bf16.mxu0 %v701
    %950 = vmatpush1.bf16.msra.mxu0 %v700
    %951 = vmatprep.subr.bf16.mxu0 %v709
    %952 = vmatpush1.bf16.msra.mxu0 %v708
    %953 = vmatprep.subr.bf16.mxu0 %v717
    %954 = vmatpush1.bf16.msra.mxu0 %v716
    %955 = vmatprep.subr.bf16.mxu0 %v725
    %956 = vmatpush1.bf16.msra.mxu0 %v724
    %957 = vmatprep.subr.bf16.mxu0 %v733
    %958 = vmatpush1.bf16.msra.mxu0 %v732
    %959 = vmatprep.subr.bf16.mxu0 %v741
    %960 = vmatpush1.bf16.msra.mxu0 %v740
    %961 = vmatprep.subr.bf16.mxu0 %v749
    %962 = vmatpush1.bf16.msra.mxu0 %v748
    %963 = vmatprep.subr.bf16.mxu0 %v757
    %964 = vmatpush1.bf16.msra.mxu0 %v756
    %965 = vmatprep.mubr.bf16.mxu0 %v79
    %966 = vmatmul.mubr.bf16.gmra.mrb[0].mxu0 %v78
    %v967 = vpop.f32.mrb[0].mxu0
    %v968 = vadd.f32 %v221, %v967
    %v969 = vpop.f32.mrb[0].mxu0
    %v970 = vadd.f32 %v225, %v969
    %v971 = vpop.f32.mrb[0].mxu0
    %v972 = vadd.f32 %v221, %v971
    %v973 = vpop.f32.mrb[0].mxu0
    %v974 = vadd.f32 %v225, %v973
    %975 = vdwg.mxu0
    %976 = vmatprep.subr.bf16.mxu0 %v639
    %977 = vmatpush1.bf16.msra.mxu0 %v638
    %978 = vmatprep.subr.bf16.mxu0 %v647
    %979 = vmatpush1.bf16.msra.mxu0 %v646
    %980 = vmatprep.subr.bf16.mxu0 %v655
    %981 = vmatpush1.bf16.msra.mxu0 %v654
    %982 = vmatprep.subr.bf16.mxu0 %v663
    %983 = vmatpush1.bf16.msra.mxu0 %v662
    %984 = vmatprep.subr.bf16.mxu0 %v671
    %985 = vmatpush1.bf16.msra.mxu0 %v670
    %986 = vmatprep.subr.bf16.mxu0 %v679
    %987 = vmatpush1.bf16.msra.mxu0 %v678
    %988 = vmatprep.subr.bf16.mxu0 %v687
    %989 = vmatpush1.bf16.msra.mxu0 %v686
    %990 = vmatprep.subr.bf16.mxu0 %v695
    %991 = vmatpush1.bf16.msra.mxu0 %v694
    %992 = vmatprep.subr.bf16.mxu0 %v703
    %993 = vmatpush1.bf16.msra.mxu0 %v702
    %994 = vmatprep.subr.bf16.mxu0 %v711
    %995 = vmatpush1.bf16.msra.mxu0 %v710
    %996 = vmatprep.subr.bf16.mxu0 %v719
    %997 = vmatpush1.bf16.msra.mxu0 %v718
    %998 = vmatprep.subr.bf16.mxu0 %v727
    %999 = vmatpush1.bf16.msra.mxu0 %v726
    %1000 = vmatprep.subr.bf16.mxu0 %v735
    %1001 = vmatpush1.bf16.msra.mxu0 %v734
    %1002 = vmatprep.subr.bf16.mxu0 %v743
    %1003 = vmatpush1.bf16.msra.mxu0 %v742
    %1004 = vmatprep.subr.bf16.mxu0 %v751
    %1005 = vmatpush1.bf16.msra.mxu0 %v750
    %1006 = vmatprep.subr.bf16.mxu0 %v759
    %1007 = vmatpush1.bf16.msra.mxu0 %v758
    %1008 = vmatprep.mubr.bf16.mxu0 %v79
    %1009 = vmatmul.mubr.bf16.gmra.mrb[0].mxu0 %v78
    %v1010 = vpop.f32.mrb[0].mxu0
    %v1011 = vadd.f32 %v229, %v1010
    %v1012 = vpop.f32.mrb[0].mxu0
    %v1013 = vadd.f32 %v233, %v1012
    %v1014 = vpop.f32.mrb[0].mxu0
    %v1015 = vadd.f32 %v229, %v1014
    %v1016 = vpop.f32.mrb[0].mxu0
    %v1017 = vadd.f32 %v233, %v1016
    %1018 = vdwg.mxu0
    %1019 = vmatprep.subr.bf16.mxu0 %v641
    %1020 = vmatpush1.bf16.msra.mxu0 %v640
    %1021 = vmatprep.subr.bf16.mxu0 %v649
    %1022 = vmatpush1.bf16.msra.mxu0 %v648
    %1023 = vmatprep.subr.bf16.mxu0 %v657
    %1024 = vmatpush1.bf16.msra.mxu0 %v656
    %1025 = vmatprep.subr.bf16.mxu0 %v665
    %1026 = vmatpush1.bf16.msra.mxu0 %v664
    %1027 = vmatprep.subr.bf16.mxu0 %v673
    %1028 = vmatpush1.bf16.msra.mxu0 %v672
    %1029 = vmatprep.subr.bf16.mxu0 %v681
    %1030 = vmatpush1.bf16.msra.mxu0 %v680
    %1031 = vmatprep.subr.bf16.mxu0 %v689
    %1032 = vmatpush1.bf16.msra.mxu0 %v688
    %1033 = vmatprep.subr.bf16.mxu0 %v697
    %1034 = vmatpush1.bf16.msra.mxu0 %v696
    %1035 = vmatprep.subr.bf16.mxu0 %v705
    %1036 = vmatpush1.bf16.msra.mxu0 %v704
    %1037 = vmatprep.subr.bf16.mxu0 %v713
    %1038 = vmatpush1.bf16.msra.mxu0 %v712
    %1039 = vmatprep.subr.bf16.mxu0 %v721
    %1040 = vmatpush1.bf16.msra.mxu0 %v720
    %1041 = vmatprep.subr.bf16.mxu0 %v729
    %1042 = vmatpush1.bf16.msra.mxu0 %v728
    %1043 = vmatprep.subr.bf16.mxu0 %v737
    %1044 = vmatpush1.bf16.msra.mxu0 %v736
    %1045 = vmatprep.subr.bf16.mxu0 %v745
    %1046 = vmatpush1.bf16.msra.mxu0 %v744
    %1047 = vmatprep.subr.bf16.mxu0 %v753
    %1048 = vmatpush1.bf16.msra.mxu0 %v752
    %1049 = vmatprep.subr.bf16.mxu0 %v761
    %1050 = vmatpush1.bf16.msra.mxu0 %v760
    %1051 = vmatprep.mubr.bf16.mxu0 %v79
    %1052 = vmatmul.mubr.bf16.gmra.mrb[0].mxu0 %v78
    %v1053 = vpop.f32.mrb[0].mxu0
    %v1054 = vadd.f32 %v237, %v1053
    %v1055 = vpop.f32.mrb[0].mxu0
    %v1056 = vadd.f32 %v241, %v1055
    %v1057 = vpop.f32.mrb[0].mxu0
    %v1058 = vadd.f32 %v237, %v1057
    %v1059 = vpop.f32.mrb[0].mxu0
    %v1060 = vadd.f32 %v241, %v1059
    %1061 = vdwg.mxu0
    %v1062 = vmax.f32 %v925, 0.0
    %v1063 = vmax.f32 %v927, 0.0
    %v1064 = vmax.f32 %v968, 0.0
    %v1065 = vmax.f32 %v970, 0.0
    %v1066 = vmax.f32 %v1011, 0.0
    %v1067 = vmax.f32 %v1013, 0.0
    %v1068 = vmax.f32 %v1054, 0.0
    %v1069 = vmax.f32 %v1056, 0.0
    %v1070 = vmax.f32 %v929, 0.0
    %v1071 = vmax.f32 %v931, 0.0
    %v1072 = vmax.f32 %v972, 0.0
    %v1073 = vmax.f32 %v974, 0.0
    %v1074 = vmax.f32 %v1015, 0.0
    %v1075 = vmax.f32 %v1017, 0.0
    %v1076 = vmax.f32 %v1058, 0.0
    %v1077 = vmax.f32 %v1060, 0.0
    %v1078 = vpack.c.bf16 %v1070, %v1062
    %v1079 = vpack.c.bf16 %v1071, %v1063
    %v1080 = vpack.c.bf16 %v1072, %v1064
    %v1081 = vpack.c.bf16 %v1073, %v1065
    %v1082 = vpack.c.bf16 %v1074, %v1066
    %v1083 = vpack.c.bf16 %v1075, %v1067
    %v1084 = vpack.c.bf16 %v1076, %v1068
    %v1085 = vpack.c.bf16 %v1077, %v1069
    %v1086 = vld [vmem:[#allocation4] sm:$0xff]
    %v1087 = vld [vmem:[#allocation4 + $0x8] sm:$0xff]
    %v1088 = vld [vmem:[#allocation4 + $0x10] sm:$0xff]
    %v1089 = vld [vmem:[#allocation4 + $0x18] sm:$0xff]
    %v1090 = vld [vmem:[#allocation4 + $0x20] sm:$0xff]
    %v1091 = vld [vmem:[#allocation4 + $0x28] sm:$0xff]
    %v1092 = vld [vmem:[#allocation4 + $0x30] sm:$0xff]
    %v1093 = vld [vmem:[#allocation4 + $0x38] sm:$0xff]
    %v1094 = vld [vmem:[#allocation4 + $0x40] sm:$0xff]
    %v1095 = vld [vmem:[#allocation4 + $0x48] sm:$0xff]
    %v1096 = vld [vmem:[#allocation4 + $0x50] sm:$0xff]
    %v1097 = vld [vmem:[#allocation4 + $0x58] sm:$0xff]
    %v1098 = vld [vmem:[#allocation4 + $0x60] sm:$0xff]
    %v1099 = vld [vmem:[#allocation4 + $0x68] sm:$0xff]
    %v1100 = vld [vmem:[#allocation4 + $0x70] sm:$0xff]
    %v1101 = vld [vmem:[#allocation4 + $0x78] sm:$0xff]
    %v1102 = vld [vmem:[#allocation4 + $0x80] sm:$0xff]
    %v1103 = vld [vmem:[#allocation4 + $0x88] sm:$0xff]
    %v1104 = vld [vmem:[#allocation4 + $0x90] sm:$0xff]
    %v1105 = vld [vmem:[#allocation4 + $0x98] sm:$0xff]
    %v1106 = vld [vmem:[#allocation4 + $0xa0] sm:$0xff]
    %v1107 = vld [vmem:[#allocation4 + $0xa8] sm:$0xff]
    %v1108 = vld [vmem:[#allocation4 + $0xb0] sm:$0xff]
    %v1109 = vld [vmem:[#allocation4 + $0xb8] sm:$0xff]
    %v1110 = vld [vmem:[#allocation4 + $0xc0] sm:$0xff]
    %v1111 = vld [vmem:[#allocation4 + $0xc8] sm:$0xff]
    %v1112 = vld [vmem:[#allocation4 + $0xd0] sm:$0xff]
    %v1113 = vld [vmem:[#allocation4 + $0xd8] sm:$0xff]
    %v1114 = vld [vmem:[#allocation4 + $0xe0] sm:$0xff]
    %v1115 = vld [vmem:[#allocation4 + $0xe8] sm:$0xff]
    %v1116 = vld [vmem:[#allocation4 + $0xf0] sm:$0xff]
    %v1117 = vld [vmem:[#allocation4 + $0xf8] sm:$0xff]
    %v1118 = vld [vmem:[#allocation4 + $0x100] sm:$0xff]
    %v1119 = vld [vmem:[#allocation4 + $0x108] sm:$0xff]
    %v1120 = vld [vmem:[#allocation4 + $0x110] sm:$0xff]
    %v1121 = vld [vmem:[#allocation4 + $0x118] sm:$0xff]
    %v1122 = vld [vmem:[#allocation4 + $0x120] sm:$0xff]
    %v1123 = vld [vmem:[#allocation4 + $0x128] sm:$0xff]
    %v1124 = vld [vmem:[#allocation4 + $0x130] sm:$0xff]
    %v1125 = vld [vmem:[#allocation4 + $0x138] sm:$0xff]
    %v1126 = vld [vmem:[#allocation4 + $0x140] sm:$0xff]
    %v1127 = vld [vmem:[#allocation4 + $0x148] sm:$0xff]
    %v1128 = vld [vmem:[#allocation4 + $0x150] sm:$0xff]
    %v1129 = vld [vmem:[#allocation4 + $0x158] sm:$0xff]
    %v1130 = vld [vmem:[#allocation4 + $0x160] sm:$0xff]
    %v1131 = vld [vmem:[#allocation4 + $0x168] sm:$0xff]
    %v1132 = vld [vmem:[#allocation4 + $0x170] sm:$0xff]
    %v1133 = vld [vmem:[#allocation4 + $0x178] sm:$0xff]
    %v1134 = vld [vmem:[#allocation4 + $0x180] sm:$0xff]
    %v1135 = vld [vmem:[#allocation4 + $0x188] sm:$0xff]
    %v1136 = vld [vmem:[#allocation4 + $0x190] sm:$0xff]
    %v1137 = vld [vmem:[#allocation4 + $0x198] sm:$0xff]
    %v1138 = vld [vmem:[#allocation4 + $0x1a0] sm:$0xff]
    %v1139 = vld [vmem:[#allocation4 + $0x1a8] sm:$0xff]
    %v1140 = vld [vmem:[#allocation4 + $0x1b0] sm:$0xff]
    %v1141 = vld [vmem:[#allocation4 + $0x1b8] sm:$0xff]
    %v1142 = vld [vmem:[#allocation4 + $0x1c0] sm:$0xff]
    %v1143 = vld [vmem:[#allocation4 + $0x1c8] sm:$0xff]
    %v1144 = vld [vmem:[#allocation4 + $0x1d0] sm:$0xff]
    %v1145 = vld [vmem:[#allocation4 + $0x1d8] sm:$0xff]
    %v1146 = vld [vmem:[#allocation4 + $0x1e0] sm:$0xff]
    %v1147 = vld [vmem:[#allocation4 + $0x1e8] sm:$0xff]
    %v1148 = vld [vmem:[#allocation4 + $0x1f0] sm:$0xff]
    %v1149 = vld [vmem:[#allocation4 + $0x1f8] sm:$0xff]
    %v1150 = vld [vmem:[#allocation4 + $0x200] sm:$0xff]
    %v1151 = vld [vmem:[#allocation4 + $0x208] sm:$0xff]
    %v1152 = vld [vmem:[#allocation4 + $0x210] sm:$0xff]
    %v1153 = vld [vmem:[#allocation4 + $0x218] sm:$0xff]
    %v1154 = vld [vmem:[#allocation4 + $0x220] sm:$0xff]
    %v1155 = vld [vmem:[#allocation4 + $0x228] sm:$0xff]
    %v1156 = vld [vmem:[#allocation4 + $0x230] sm:$0xff]
    %v1157 = vld [vmem:[#allocation4 + $0x238] sm:$0xff]
    %v1158 = vld [vmem:[#allocation4 + $0x240] sm:$0xff]
    %v1159 = vld [vmem:[#allocation4 + $0x248] sm:$0xff]
    %v1160 = vld [vmem:[#allocation4 + $0x250] sm:$0xff]
    %v1161 = vld [vmem:[#allocation4 + $0x258] sm:$0xff]
    %v1162 = vld [vmem:[#allocation4 + $0x260] sm:$0xff]
    %v1163 = vld [vmem:[#allocation4 + $0x268] sm:$0xff]
    %v1164 = vld [vmem:[#allocation4 + $0x270] sm:$0xff]
    %v1165 = vld [vmem:[#allocation4 + $0x278] sm:$0xff]
    %v1166 = vld [vmem:[#allocation4 + $0x280] sm:$0xff]
    %v1167 = vld [vmem:[#allocation4 + $0x288] sm:$0xff]
    %v1168 = vld [vmem:[#allocation4 + $0x290] sm:$0xff]
    %v1169 = vld [vmem:[#allocation4 + $0x298] sm:$0xff]
    %v1170 = vld [vmem:[#allocation4 + $0x2a0] sm:$0xff]
    %v1171 = vld [vmem:[#allocation4 + $0x2a8] sm:$0xff]
    %v1172 = vld [vmem:[#allocation4 + $0x2b0] sm:$0xff]
    %v1173 = vld [vmem:[#allocation4 + $0x2b8] sm:$0xff]
    %v1174 = vld [vmem:[#allocation4 + $0x2c0] sm:$0xff]
    %v1175 = vld [vmem:[#allocation4 + $0x2c8] sm:$0xff]
    %v1176 = vld [vmem:[#allocation4 + $0x2d0] sm:$0xff]
    %v1177 = vld [vmem:[#allocation4 + $0x2d8] sm:$0xff]
    %v1178 = vld [vmem:[#allocation4 + $0x2e0] sm:$0xff]
    %v1179 = vld [vmem:[#allocation4 + $0x2e8] sm:$0xff]
    %v1180 = vld [vmem:[#allocation4 + $0x2f0] sm:$0xff]
    %v1181 = vld [vmem:[#allocation4 + $0x2f8] sm:$0xff]
    %v1182 = vld [vmem:[#allocation4 + $0x300] sm:$0xff]
    %v1183 = vld [vmem:[#allocation4 + $0x308] sm:$0xff]
    %v1184 = vld [vmem:[#allocation4 + $0x310] sm:$0xff]
    %v1185 = vld [vmem:[#allocation4 + $0x318] sm:$0xff]
    %v1186 = vld [vmem:[#allocation4 + $0x320] sm:$0xff]
    %v1187 = vld [vmem:[#allocation4 + $0x328] sm:$0xff]
    %v1188 = vld [vmem:[#allocation4 + $0x330] sm:$0xff]
    %v1189 = vld [vmem:[#allocation4 + $0x338] sm:$0xff]
    %v1190 = vld [vmem:[#allocation4 + $0x340] sm:$0xff]
    %v1191 = vld [vmem:[#allocation4 + $0x348] sm:$0xff]
    %v1192 = vld [vmem:[#allocation4 + $0x350] sm:$0xff]
    %v1193 = vld [vmem:[#allocation4 + $0x358] sm:$0xff]
    %v1194 = vld [vmem:[#allocation4 + $0x360] sm:$0xff]
    %v1195 = vld [vmem:[#allocation4 + $0x368] sm:$0xff]
    %v1196 = vld [vmem:[#allocation4 + $0x370] sm:$0xff]
    %v1197 = vld [vmem:[#allocation4 + $0x378] sm:$0xff]
    %v1198 = vld [vmem:[#allocation4 + $0x380] sm:$0xff]
    %v1199 = vld [vmem:[#allocation4 + $0x388] sm:$0xff]
    %v1200 = vld [vmem:[#allocation4 + $0x390] sm:$0xff]
    %v1201 = vld [vmem:[#allocation4 + $0x398] sm:$0xff]
    %v1202 = vld [vmem:[#allocation4 + $0x3a0] sm:$0xff]
    %v1203 = vld [vmem:[#allocation4 + $0x3a8] sm:$0xff]
    %v1204 = vld [vmem:[#allocation4 + $0x3b0] sm:$0xff]
    %v1205 = vld [vmem:[#allocation4 + $0x3b8] sm:$0xff]
    %v1206 = vld [vmem:[#allocation4 + $0x3c0] sm:$0xff]
    %v1207 = vld [vmem:[#allocation4 + $0x3c8] sm:$0xff]
    %v1208 = vld [vmem:[#allocation4 + $0x3d0] sm:$0xff]
    %v1209 = vld [vmem:[#allocation4 + $0x3d8] sm:$0xff]
    %v1210 = vld [vmem:[#allocation4 + $0x3e0] sm:$0xff]
    %v1211 = vld [vmem:[#allocation4 + $0x3e8] sm:$0xff]
    %v1212 = vld [vmem:[#allocation4 + $0x3f0] sm:$0xff]
    %v1213 = vld [vmem:[#allocation4 + $0x3f8] sm:$0xff]
    %v1214 = vld [vmem:[#allocation4 + $0x400] sm:$0xff]
    %v1215 = vld [vmem:[#allocation4 + $0x408] sm:$0xff]
    %v1216 = vld [vmem:[#allocation4 + $0x410] sm:$0xff]
    %v1217 = vld [vmem:[#allocation4 + $0x418] sm:$0xff]
    %v1218 = vld [vmem:[#allocation4 + $0x420] sm:$0xff]
    %v1219 = vld [vmem:[#allocation4 + $0x428] sm:$0xff]
    %v1220 = vld [vmem:[#allocation4 + $0x430] sm:$0xff]
    %v1221 = vld [vmem:[#allocation4 + $0x438] sm:$0xff]
    %v1222 = vld [vmem:[#allocation4 + $0x440] sm:$0xff]
    %v1223 = vld [vmem:[#allocation4 + $0x448] sm:$0xff]
    %v1224 = vld [vmem:[#allocation4 + $0x450] sm:$0xff]
    %v1225 = vld [vmem:[#allocation4 + $0x458] sm:$0xff]
    %v1226 = vld [vmem:[#allocation4 + $0x460] sm:$0xff]
    %v1227 = vld [vmem:[#allocation4 + $0x468] sm:$0xff]
    %v1228 = vld [vmem:[#allocation4 + $0x470] sm:$0xff]
    %v1229 = vld [vmem:[#allocation4 + $0x478] sm:$0xff]
    %v1230 = vld [vmem:[#allocation4 + $0x480] sm:$0xff]
    %v1231 = vld [vmem:[#allocation4 + $0x488] sm:$0xff]
    %v1232 = vld [vmem:[#allocation4 + $0x490] sm:$0xff]
    %v1233 = vld [vmem:[#allocation4 + $0x498] sm:$0xff]
    %v1234 = vld [vmem:[#allocation4 + $0x4a0] sm:$0xff]
    %v1235 = vld [vmem:[#allocation4 + $0x4a8] sm:$0xff]
    %v1236 = vld [vmem:[#allocation4 + $0x4b0] sm:$0xff]
    %v1237 = vld [vmem:[#allocation4 + $0x4b8] sm:$0xff]
    %v1238 = vld [vmem:[#allocation4 + $0x4c0] sm:$0xff]
    %v1239 = vld [vmem:[#allocation4 + $0x4c8] sm:$0xff]
    %v1240 = vld [vmem:[#allocation4 + $0x4d0] sm:$0xff]
    %v1241 = vld [vmem:[#allocation4 + $0x4d8] sm:$0xff]
    %v1242 = vld [vmem:[#allocation4 + $0x4e0] sm:$0xff]
    %v1243 = vld [vmem:[#allocation4 + $0x4e8] sm:$0xff]
    %v1244 = vld [vmem:[#allocation4 + $0x4f0] sm:$0xff]
    %v1245 = vld [vmem:[#allocation4 + $0x4f8] sm:$0xff]
    %v1246 = vld [vmem:[#allocation4 + $0x500] sm:$0xff]
    %v1247 = vld [vmem:[#allocation4 + $0x508] sm:$0xff]
    %v1248 = vld [vmem:[#allocation4 + $0x510] sm:$0xff]
    %v1249 = vld [vmem:[#allocation4 + $0x518] sm:$0xff]
    %v1250 = vld [vmem:[#allocation4 + $0x520] sm:$0xff]
    %v1251 = vld [vmem:[#allocation4 + $0x528] sm:$0xff]
    %v1252 = vld [vmem:[#allocation4 + $0x530] sm:$0xff]
    %v1253 = vld [vmem:[#allocation4 + $0x538] sm:$0xff]
    %v1254 = vld [vmem:[#allocation4 + $0x540] sm:$0xff]
    %v1255 = vld [vmem:[#allocation4 + $0x548] sm:$0xff]
    %v1256 = vld [vmem:[#allocation4 + $0x550] sm:$0xff]
    %v1257 = vld [vmem:[#allocation4 + $0x558] sm:$0xff]
    %v1258 = vld [vmem:[#allocation4 + $0x560] sm:$0xff]
    %v1259 = vld [vmem:[#allocation4 + $0x568] sm:$0xff]
    %v1260 = vld [vmem:[#allocation4 + $0x570] sm:$0xff]
    %v1261 = vld [vmem:[#allocation4 + $0x578] sm:$0xff]
    %v1262 = vld [vmem:[#allocation4 + $0x580] sm:$0xff]
    %v1263 = vld [vmem:[#allocation4 + $0x588] sm:$0xff]
    %v1264 = vld [vmem:[#allocation4 + $0x590] sm:$0xff]
    %v1265 = vld [vmem:[#allocation4 + $0x598] sm:$0xff]
    %v1266 = vld [vmem:[#allocation4 + $0x5a0] sm:$0xff]
    %v1267 = vld [vmem:[#allocation4 + $0x5a8] sm:$0xff]
    %v1268 = vld [vmem:[#allocation4 + $0x5b0] sm:$0xff]
    %v1269 = vld [vmem:[#allocation4 + $0x5b8] sm:$0xff]
    %v1270 = vld [vmem:[#allocation4 + $0x5c0] sm:$0xff]
    %v1271 = vld [vmem:[#allocation4 + $0x5c8] sm:$0xff]
    %v1272 = vld [vmem:[#allocation4 + $0x5d0] sm:$0xff]
    %v1273 = vld [vmem:[#allocation4 + $0x5d8] sm:$0xff]
    %v1274 = vld [vmem:[#allocation4 + $0x5e0] sm:$0xff]
    %v1275 = vld [vmem:[#allocation4 + $0x5e8] sm:$0xff]
    %v1276 = vld [vmem:[#allocation4 + $0x5f0] sm:$0xff]
    %v1277 = vld [vmem:[#allocation4 + $0x5f8] sm:$0xff]
    %v1278 = vld [vmem:[#allocation4 + $0x600] sm:$0xff]
    %v1279 = vld [vmem:[#allocation4 + $0x608] sm:$0xff]
    %v1280 = vld [vmem:[#allocation4 + $0x610] sm:$0xff]
    %v1281 = vld [vmem:[#allocation4 + $0x618] sm:$0xff]
    %v1282 = vld [vmem:[#allocation4 + $0x620] sm:$0xff]
    %v1283 = vld [vmem:[#allocation4 + $0x628] sm:$0xff]
    %v1284 = vld [vmem:[#allocation4 + $0x630] sm:$0xff]
    %v1285 = vld [vmem:[#allocation4 + $0x638] sm:$0xff]
    %v1286 = vld [vmem:[#allocation4 + $0x640] sm:$0xff]
    %v1287 = vld [vmem:[#allocation4 + $0x648] sm:$0xff]
    %v1288 = vld [vmem:[#allocation4 + $0x650] sm:$0xff]
    %v1289 = vld [vmem:[#allocation4 + $0x658] sm:$0xff]
    %v1290 = vld [vmem:[#allocation4 + $0x660] sm:$0xff]
    %v1291 = vld [vmem:[#allocation4 + $0x668] sm:$0xff]
    %v1292 = vld [vmem:[#allocation4 + $0x670] sm:$0xff]
    %v1293 = vld [vmem:[#allocation4 + $0x678] sm:$0xff]
    %v1294 = vld [vmem:[#allocation4 + $0x680] sm:$0xff]
    %v1295 = vld [vmem:[#allocation4 + $0x688] sm:$0xff]
    %v1296 = vld [vmem:[#allocation4 + $0x690] sm:$0xff]
    %v1297 = vld [vmem:[#allocation4 + $0x698] sm:$0xff]
    %v1298 = vld [vmem:[#allocation4 + $0x6a0] sm:$0xff]
    %v1299 = vld [vmem:[#allocation4 + $0x6a8] sm:$0xff]
    %v1300 = vld [vmem:[#allocation4 + $0x6b0] sm:$0xff]
    %v1301 = vld [vmem:[#allocation4 + $0x6b8] sm:$0xff]
    %v1302 = vld [vmem:[#allocation4 + $0x6c0] sm:$0xff]
    %v1303 = vld [vmem:[#allocation4 + $0x6c8] sm:$0xff]
    %v1304 = vld [vmem:[#allocation4 + $0x6d0] sm:$0xff]
    %v1305 = vld [vmem:[#allocation4 + $0x6d8] sm:$0xff]
    %v1306 = vld [vmem:[#allocation4 + $0x6e0] sm:$0xff]
    %v1307 = vld [vmem:[#allocation4 + $0x6e8] sm:$0xff]
    %v1308 = vld [vmem:[#allocation4 + $0x6f0] sm:$0xff]
    %v1309 = vld [vmem:[#allocation4 + $0x6f8] sm:$0xff]
    %v1310 = vld [vmem:[#allocation4 + $0x700] sm:$0xff]
    %v1311 = vld [vmem:[#allocation4 + $0x708] sm:$0xff]
    %v1312 = vld [vmem:[#allocation4 + $0x710] sm:$0xff]
    %v1313 = vld [vmem:[#allocation4 + $0x718] sm:$0xff]
    %v1314 = vld [vmem:[#allocation4 + $0x720] sm:$0xff]
    %v1315 = vld [vmem:[#allocation4 + $0x728] sm:$0xff]
    %v1316 = vld [vmem:[#allocation4 + $0x730] sm:$0xff]
    %v1317 = vld [vmem:[#allocation4 + $0x738] sm:$0xff]
    %v1318 = vld [vmem:[#allocation4 + $0x740] sm:$0xff]
    %v1319 = vld [vmem:[#allocation4 + $0x748] sm:$0xff]
    %v1320 = vld [vmem:[#allocation4 + $0x750] sm:$0xff]
    %v1321 = vld [vmem:[#allocation4 + $0x758] sm:$0xff]
    %v1322 = vld [vmem:[#allocation4 + $0x760] sm:$0xff]
    %v1323 = vld [vmem:[#allocation4 + $0x768] sm:$0xff]
    %v1324 = vld [vmem:[#allocation4 + $0x770] sm:$0xff]
    %v1325 = vld [vmem:[#allocation4 + $0x778] sm:$0xff]
    %v1326 = vld [vmem:[#allocation4 + $0x780] sm:$0xff]
    %v1327 = vld [vmem:[#allocation4 + $0x788] sm:$0xff]
    %v1328 = vld [vmem:[#allocation4 + $0x790] sm:$0xff]
    %v1329 = vld [vmem:[#allocation4 + $0x798] sm:$0xff]
    %v1330 = vld [vmem:[#allocation4 + $0x7a0] sm:$0xff]
    %v1331 = vld [vmem:[#allocation4 + $0x7a8] sm:$0xff]
    %v1332 = vld [vmem:[#allocation4 + $0x7b0] sm:$0xff]
    %v1333 = vld [vmem:[#allocation4 + $0x7b8] sm:$0xff]
    %v1334 = vld [vmem:[#allocation4 + $0x7c0] sm:$0xff]
    %v1335 = vld [vmem:[#allocation4 + $0x7c8] sm:$0xff]
    %v1336 = vld [vmem:[#allocation4 + $0x7d0] sm:$0xff]
    %v1337 = vld [vmem:[#allocation4 + $0x7d8] sm:$0xff]
    %v1338 = vld [vmem:[#allocation4 + $0x7e0] sm:$0xff]
    %v1339 = vld [vmem:[#allocation4 + $0x7e8] sm:$0xff]
    %v1340 = vld [vmem:[#allocation4 + $0x7f0] sm:$0xff]
    %v1341 = vld [vmem:[#allocation4 + $0x7f8] sm:$0xff]
    %v1342 = vld [vmem:[%s4] sm:$0xf]
    %v1344 = vlaneseq
    %v1345 = vshrl.u32 %v1344, 7
    %v1346 = vsub.s32 0, %v1345
    %v1347 = vrot.slane %v1342, %v1346
    %v1348 = vlaneseq
    %v1349 = vshrl.u32 %v1348, 7
    %v1350 = vsub.s32 1, %v1349
    %v1351 = vrot.slane %v1342, %v1350
    %v1352 = vlaneseq
    %v1353 = vshrl.u32 %v1352, 7
    %v1354 = vsub.s32 2, %v1353
    %v1355 = vrot.slane %v1342, %v1354
    %v1356 = vlaneseq
    %v1357 = vshrl.u32 %v1356, 7
    %v1358 = vsub.s32 3, %v1357
    %v1359 = vrot.slane %v1342, %v1358
    %v1620 = vunpack.c.l.b16 %v1086
    %v1621 = vunpack.c.h.b16 %v1086
    %v1622 = vunpack.c.l.b16 %v1087
    %v1623 = vunpack.c.h.b16 %v1087
    %v1624 = vunpack.c.l.b16 %v1088
    %v1625 = vunpack.c.h.b16 %v1088
    %v1626 = vunpack.c.l.b16 %v1089
    %v1627 = vunpack.c.h.b16 %v1089
    %v1628 = vunpack.c.l.b16 %v1090
    %v1629 = vunpack.c.h.b16 %v1090
    %v1630 = vunpack.c.l.b16 %v1091
    %v1631 = vunpack.c.h.b16 %v1091
    %v1632 = vunpack.c.l.b16 %v1092
    %v1633 = vunpack.c.h.b16 %v1092
    %v1634 = vunpack.c.l.b16 %v1093
    %v1635 = vunpack.c.h.b16 %v1093
    %v1636 = vunpack.c.l.b16 %v1094
    %v1637 = vunpack.c.h.b16 %v1094
    %v1638 = vunpack.c.l.b16 %v1095
    %v1639 = vunpack.c.h.b16 %v1095
    %v1640 = vunpack.c.l.b16 %v1096
    %v1641 = vunpack.c.h.b16 %v1096
    %v1642 = vunpack.c.l.b16 %v1097
    %v1643 = vunpack.c.h.b16 %v1097
    %v1644 = vunpack.c.l.b16 %v1098
    %v1645 = vunpack.c.h.b16 %v1098
    %v1646 = vunpack.c.l.b16 %v1099
    %v1647 = vunpack.c.h.b16 %v1099
    %v1648 = vunpack.c.l.b16 %v1100
    %v1649 = vunpack.c.h.b16 %v1100
    %v1650 = vunpack.c.l.b16 %v1101
    %v1651 = vunpack.c.h.b16 %v1101
    %v1652 = vunpack.c.l.b16 %v1102
    %v1653 = vunpack.c.h.b16 %v1102
    %v1654 = vunpack.c.l.b16 %v1103
    %v1655 = vunpack.c.h.b16 %v1103
    %v1656 = vunpack.c.l.b16 %v1104
    %v1657 = vunpack.c.h.b16 %v1104
    %v1658 = vunpack.c.l.b16 %v1105
    %v1659 = vunpack.c.h.b16 %v1105
    %v1660 = vunpack.c.l.b16 %v1106
    %v1661 = vunpack.c.h.b16 %v1106
    %v1662 = vunpack.c.l.b16 %v1107
    %v1663 = vunpack.c.h.b16 %v1107
    %v1664 = vunpack.c.l.b16 %v1108
    %v1665 = vunpack.c.h.b16 %v1108
    %v1666 = vunpack.c.l.b16 %v1109
    %v1667 = vunpack.c.h.b16 %v1109
    %v1668 = vunpack.c.l.b16 %v1110
    %v1669 = vunpack.c.h.b16 %v1110
    %v1670 = vunpack.c.l.b16 %v1111
    %v1671 = vunpack.c.h.b16 %v1111
    %v1672 = vunpack.c.l.b16 %v1112
    %v1673 = vunpack.c.h.b16 %v1112
    %v1674 = vunpack.c.l.b16 %v1113
    %v1675 = vunpack.c.h.b16 %v1113
    %v1676 = vunpack.c.l.b16 %v1114
    %v1677 = vunpack.c.h.b16 %v1114
    %v1678 = vunpack.c.l.b16 %v1115
    %v1679 = vunpack.c.h.b16 %v1115
    %v1680 = vunpack.c.l.b16 %v1116
    %v1681 = vunpack.c.h.b16 %v1116
    %v1682 = vunpack.c.l.b16 %v1117
    %v1683 = vunpack.c.h.b16 %v1117
    %v1684 = vunpack.c.l.b16 %v1118
    %v1685 = vunpack.c.h.b16 %v1118
    %v1686 = vunpack.c.l.b16 %v1119
    %v1687 = vunpack.c.h.b16 %v1119
    %v1688 = vunpack.c.l.b16 %v1120
    %v1689 = vunpack.c.h.b16 %v1120
    %v1690 = vunpack.c.l.b16 %v1121
    %v1691 = vunpack.c.h.b16 %v1121
    %v1692 = vunpack.c.l.b16 %v1122
    %v1693 = vunpack.c.h.b16 %v1122
    %v1694 = vunpack.c.l.b16 %v1123
    %v1695 = vunpack.c.h.b16 %v1123
    %v1696 = vunpack.c.l.b16 %v1124
    %v1697 = vunpack.c.h.b16 %v1124
    %v1698 = vunpack.c.l.b16 %v1125
    %v1699 = vunpack.c.h.b16 %v1125
    %v1700 = vunpack.c.l.b16 %v1126
    %v1701 = vunpack.c.h.b16 %v1126
    %v1702 = vunpack.c.l.b16 %v1127
    %v1703 = vunpack.c.h.b16 %v1127
    %v1704 = vunpack.c.l.b16 %v1128
    %v1705 = vunpack.c.h.b16 %v1128
    %v1706 = vunpack.c.l.b16 %v1129
    %v1707 = vunpack.c.h.b16 %v1129
    %v1708 = vunpack.c.l.b16 %v1130
    %v1709 = vunpack.c.h.b16 %v1130
    %v1710 = vunpack.c.l.b16 %v1131
    %v1711 = vunpack.c.h.b16 %v1131
    %v1712 = vunpack.c.l.b16 %v1132
    %v1713 = vunpack.c.h.b16 %v1132
    %v1714 = vunpack.c.l.b16 %v1133
    %v1715 = vunpack.c.h.b16 %v1133
    %v1716 = vunpack.c.l.b16 %v1134
    %v1717 = vunpack.c.h.b16 %v1134
    %v1718 = vunpack.c.l.b16 %v1135
    %v1719 = vunpack.c.h.b16 %v1135
    %v1720 = vunpack.c.l.b16 %v1136
    %v1721 = vunpack.c.h.b16 %v1136
    %v1722 = vunpack.c.l.b16 %v1137
    %v1723 = vunpack.c.h.b16 %v1137
    %v1724 = vunpack.c.l.b16 %v1138
    %v1725 = vunpack.c.h.b16 %v1138
    %v1726 = vunpack.c.l.b16 %v1139
    %v1727 = vunpack.c.h.b16 %v1139
    %v1728 = vunpack.c.l.b16 %v1140
    %v1729 = vunpack.c.h.b16 %v1140
    %v1730 = vunpack.c.l.b16 %v1141
    %v1731 = vunpack.c.h.b16 %v1141
    %v1732 = vunpack.c.l.b16 %v1142
    %v1733 = vunpack.c.h.b16 %v1142
    %v1734 = vunpack.c.l.b16 %v1143
    %v1735 = vunpack.c.h.b16 %v1143
    %v1736 = vunpack.c.l.b16 %v1144
    %v1737 = vunpack.c.h.b16 %v1144
    %v1738 = vunpack.c.l.b16 %v1145
    %v1739 = vunpack.c.h.b16 %v1145
    %v1740 = vunpack.c.l.b16 %v1146
    %v1741 = vunpack.c.h.b16 %v1146
    %v1742 = vunpack.c.l.b16 %v1147
    %v1743 = vunpack.c.h.b16 %v1147
    %v1744 = vunpack.c.l.b16 %v1148
    %v1745 = vunpack.c.h.b16 %v1148
    %v1746 = vunpack.c.l.b16 %v1149
    %v1747 = vunpack.c.h.b16 %v1149
    %v1748 = vunpack.c.l.b16 %v1150
    %v1749 = vunpack.c.h.b16 %v1150
    %v1750 = vunpack.c.l.b16 %v1151
    %v1751 = vunpack.c.h.b16 %v1151
    %v1752 = vunpack.c.l.b16 %v1152
    %v1753 = vunpack.c.h.b16 %v1152
    %v1754 = vunpack.c.l.b16 %v1153
    %v1755 = vunpack.c.h.b16 %v1153
    %v1756 = vunpack.c.l.b16 %v1154
    %v1757 = vunpack.c.h.b16 %v1154
    %v1758 = vunpack.c.l.b16 %v1155
    %v1759 = vunpack.c.h.b16 %v1155
    %v1760 = vunpack.c.l.b16 %v1156
    %v1761 = vunpack.c.h.b16 %v1156
    %v1762 = vunpack.c.l.b16 %v1157
    %v1763 = vunpack.c.h.b16 %v1157
    %v1764 = vunpack.c.l.b16 %v1158
    %v1765 = vunpack.c.h.b16 %v1158
    %v1766 = vunpack.c.l.b16 %v1159
    %v1767 = vunpack.c.h.b16 %v1159
    %v1768 = vunpack.c.l.b16 %v1160
    %v1769 = vunpack.c.h.b16 %v1160
    %v1770 = vunpack.c.l.b16 %v1161
    %v1771 = vunpack.c.h.b16 %v1161
    %v1772 = vunpack.c.l.b16 %v1162
    %v1773 = vunpack.c.h.b16 %v1162
    %v1774 = vunpack.c.l.b16 %v1163
    %v1775 = vunpack.c.h.b16 %v1163
    %v1776 = vunpack.c.l.b16 %v1164
    %v1777 = vunpack.c.h.b16 %v1164
    %v1778 = vunpack.c.l.b16 %v1165
    %v1779 = vunpack.c.h.b16 %v1165
    %v1780 = vunpack.c.l.b16 %v1166
    %v1781 = vunpack.c.h.b16 %v1166
    %v1782 = vunpack.c.l.b16 %v1167
    %v1783 = vunpack.c.h.b16 %v1167
    %v1784 = vunpack.c.l.b16 %v1168
    %v1785 = vunpack.c.h.b16 %v1168
    %v1786 = vunpack.c.l.b16 %v1169
    %v1787 = vunpack.c.h.b16 %v1169
    %v1788 = vunpack.c.l.b16 %v1170
    %v1789 = vunpack.c.h.b16 %v1170
    %v1790 = vunpack.c.l.b16 %v1171
    %v1791 = vunpack.c.h.b16 %v1171
    %v1792 = vunpack.c.l.b16 %v1172
    %v1793 = vunpack.c.h.b16 %v1172
    %v1794 = vunpack.c.l.b16 %v1173
    %v1795 = vunpack.c.h.b16 %v1173
    %v1796 = vunpack.c.l.b16 %v1174
    %v1797 = vunpack.c.h.b16 %v1174
    %v1798 = vunpack.c.l.b16 %v1175
    %v1799 = vunpack.c.h.b16 %v1175
    %v1800 = vunpack.c.l.b16 %v1176
    %v1801 = vunpack.c.h.b16 %v1176
    %v1802 = vunpack.c.l.b16 %v1177
    %v1803 = vunpack.c.h.b16 %v1177
    %v1804 = vunpack.c.l.b16 %v1178
    %v1805 = vunpack.c.h.b16 %v1178
    %v1806 = vunpack.c.l.b16 %v1179
    %v1807 = vunpack.c.h.b16 %v1179
    %v1808 = vunpack.c.l.b16 %v1180
    %v1809 = vunpack.c.h.b16 %v1180
    %v1810 = vunpack.c.l.b16 %v1181
    %v1811 = vunpack.c.h.b16 %v1181
    %v1812 = vunpack.c.l.b16 %v1182
    %v1813 = vunpack.c.h.b16 %v1182
    %v1814 = vunpack.c.l.b16 %v1183
    %v1815 = vunpack.c.h.b16 %v1183
    %v1816 = vunpack.c.l.b16 %v1184
    %v1817 = vunpack.c.h.b16 %v1184
    %v1818 = vunpack.c.l.b16 %v1185
    %v1819 = vunpack.c.h.b16 %v1185
    %v1820 = vunpack.c.l.b16 %v1186
    %v1821 = vunpack.c.h.b16 %v1186
    %v1822 = vunpack.c.l.b16 %v1187
    %v1823 = vunpack.c.h.b16 %v1187
    %v1824 = vunpack.c.l.b16 %v1188
    %v1825 = vunpack.c.h.b16 %v1188
    %v1826 = vunpack.c.l.b16 %v1189
    %v1827 = vunpack.c.h.b16 %v1189
    %v1828 = vunpack.c.l.b16 %v1190
    %v1829 = vunpack.c.h.b16 %v1190
    %v1830 = vunpack.c.l.b16 %v1191
    %v1831 = vunpack.c.h.b16 %v1191
    %v1832 = vunpack.c.l.b16 %v1192
    %v1833 = vunpack.c.h.b16 %v1192
    %v1834 = vunpack.c.l.b16 %v1193
    %v1835 = vunpack.c.h.b16 %v1193
    %v1836 = vunpack.c.l.b16 %v1194
    %v1837 = vunpack.c.h.b16 %v1194
    %v1838 = vunpack.c.l.b16 %v1195
    %v1839 = vunpack.c.h.b16 %v1195
    %v1840 = vunpack.c.l.b16 %v1196
    %v1841 = vunpack.c.h.b16 %v1196
    %v1842 = vunpack.c.l.b16 %v1197
    %v1843 = vunpack.c.h.b16 %v1197
    %v1844 = vunpack.c.l.b16 %v1198
    %v1845 = vunpack.c.h.b16 %v1198
    %v1846 = vunpack.c.l.b16 %v1199
    %v1847 = vunpack.c.h.b16 %v1199
    %v1848 = vunpack.c.l.b16 %v1200
    %v1849 = vunpack.c.h.b16 %v1200
    %v1850 = vunpack.c.l.b16 %v1201
    %v1851 = vunpack.c.h.b16 %v1201
    %v1852 = vunpack.c.l.b16 %v1202
    %v1853 = vunpack.c.h.b16 %v1202
    %v1854 = vunpack.c.l.b16 %v1203
    %v1855 = vunpack.c.h.b16 %v1203
    %v1856 = vunpack.c.l.b16 %v1204
    %v1857 = vunpack.c.h.b16 %v1204
    %v1858 = vunpack.c.l.b16 %v1205
    %v1859 = vunpack.c.h.b16 %v1205
    %v1860 = vunpack.c.l.b16 %v1206
    %v1861 = vunpack.c.h.b16 %v1206
    %v1862 = vunpack.c.l.b16 %v1207
    %v1863 = vunpack.c.h.b16 %v1207
    %v1864 = vunpack.c.l.b16 %v1208
    %v1865 = vunpack.c.h.b16 %v1208
    %v1866 = vunpack.c.l.b16 %v1209
    %v1867 = vunpack.c.h.b16 %v1209
    %v1868 = vunpack.c.l.b16 %v1210
    %v1869 = vunpack.c.h.b16 %v1210
    %v1870 = vunpack.c.l.b16 %v1211
    %v1871 = vunpack.c.h.b16 %v1211
    %v1872 = vunpack.c.l.b16 %v1212
    %v1873 = vunpack.c.h.b16 %v1212
    %v1874 = vunpack.c.l.b16 %v1213
    %v1875 = vunpack.c.h.b16 %v1213
    %v1876 = vunpack.c.l.b16 %v1214
    %v1877 = vunpack.c.h.b16 %v1214
    %v1878 = vunpack.c.l.b16 %v1215
    %v1879 = vunpack.c.h.b16 %v1215
    %v1880 = vunpack.c.l.b16 %v1216
    %v1881 = vunpack.c.h.b16 %v1216
    %v1882 = vunpack.c.l.b16 %v1217
    %v1883 = vunpack.c.h.b16 %v1217
    %v1884 = vunpack.c.l.b16 %v1218
    %v1885 = vunpack.c.h.b16 %v1218
    %v1886 = vunpack.c.l.b16 %v1219
    %v1887 = vunpack.c.h.b16 %v1219
    %v1888 = vunpack.c.l.b16 %v1220
    %v1889 = vunpack.c.h.b16 %v1220
    %v1890 = vunpack.c.l.b16 %v1221
    %v1891 = vunpack.c.h.b16 %v1221
    %v1892 = vunpack.c.l.b16 %v1222
    %v1893 = vunpack.c.h.b16 %v1222
    %v1894 = vunpack.c.l.b16 %v1223
    %v1895 = vunpack.c.h.b16 %v1223
    %v1896 = vunpack.c.l.b16 %v1224
    %v1897 = vunpack.c.h.b16 %v1224
    %v1898 = vunpack.c.l.b16 %v1225
    %v1899 = vunpack.c.h.b16 %v1225
    %v1900 = vunpack.c.l.b16 %v1226
    %v1901 = vunpack.c.h.b16 %v1226
    %v1902 = vunpack.c.l.b16 %v1227
    %v1903 = vunpack.c.h.b16 %v1227
    %v1904 = vunpack.c.l.b16 %v1228
    %v1905 = vunpack.c.h.b16 %v1228
    %v1906 = vunpack.c.l.b16 %v1229
    %v1907 = vunpack.c.h.b16 %v1229
    %v1908 = vunpack.c.l.b16 %v1230
    %v1909 = vunpack.c.h.b16 %v1230
    %v1910 = vunpack.c.l.b16 %v1231
    %v1911 = vunpack.c.h.b16 %v1231
    %v1912 = vunpack.c.l.b16 %v1232
    %v1913 = vunpack.c.h.b16 %v1232
    %v1914 = vunpack.c.l.b16 %v1233
    %v1915 = vunpack.c.h.b16 %v1233
    %v1916 = vunpack.c.l.b16 %v1234
    %v1917 = vunpack.c.h.b16 %v1234
    %v1918 = vunpack.c.l.b16 %v1235
    %v1919 = vunpack.c.h.b16 %v1235
    %v1920 = vunpack.c.l.b16 %v1236
    %v1921 = vunpack.c.h.b16 %v1236
    %v1922 = vunpack.c.l.b16 %v1237
    %v1923 = vunpack.c.h.b16 %v1237
    %v1924 = vunpack.c.l.b16 %v1238
    %v1925 = vunpack.c.h.b16 %v1238
    %v1926 = vunpack.c.l.b16 %v1239
    %v1927 = vunpack.c.h.b16 %v1239
    %v1928 = vunpack.c.l.b16 %v1240
    %v1929 = vunpack.c.h.b16 %v1240
    %v1930 = vunpack.c.l.b16 %v1241
    %v1931 = vunpack.c.h.b16 %v1241
    %v1932 = vunpack.c.l.b16 %v1242
    %v1933 = vunpack.c.h.b16 %v1242
    %v1934 = vunpack.c.l.b16 %v1243
    %v1935 = vunpack.c.h.b16 %v1243
    %v1936 = vunpack.c.l.b16 %v1244
    %v1937 = vunpack.c.h.b16 %v1244
    %v1938 = vunpack.c.l.b16 %v1245
    %v1939 = vunpack.c.h.b16 %v1245
    %v1940 = vunpack.c.l.b16 %v1246
    %v1941 = vunpack.c.h.b16 %v1246
    %v1942 = vunpack.c.l.b16 %v1247
    %v1943 = vunpack.c.h.b16 %v1247
    %v1944 = vunpack.c.l.b16 %v1248
    %v1945 = vunpack.c.h.b16 %v1248
    %v1946 = vunpack.c.l.b16 %v1249
    %v1947 = vunpack.c.h.b16 %v1249
    %v1948 = vunpack.c.l.b16 %v1250
    %v1949 = vunpack.c.h.b16 %v1250
    %v1950 = vunpack.c.l.b16 %v1251
    %v1951 = vunpack.c.h.b16 %v1251
    %v1952 = vunpack.c.l.b16 %v1252
    %v1953 = vunpack.c.h.b16 %v1252
    %v1954 = vunpack.c.l.b16 %v1253
    %v1955 = vunpack.c.h.b16 %v1253
    %v1956 = vunpack.c.l.b16 %v1254
    %v1957 = vunpack.c.h.b16 %v1254
    %v1958 = vunpack.c.l.b16 %v1255
    %v1959 = vunpack.c.h.b16 %v1255
    %v1960 = vunpack.c.l.b16 %v1256
    %v1961 = vunpack.c.h.b16 %v1256
    %v1962 = vunpack.c.l.b16 %v1257
    %v1963 = vunpack.c.h.b16 %v1257
    %v1964 = vunpack.c.l.b16 %v1258
    %v1965 = vunpack.c.h.b16 %v1258
    %v1966 = vunpack.c.l.b16 %v1259
    %v1967 = vunpack.c.h.b16 %v1259
    %v1968 = vunpack.c.l.b16 %v1260
    %v1969 = vunpack.c.h.b16 %v1260
    %v1970 = vunpack.c.l.b16 %v1261
    %v1971 = vunpack.c.h.b16 %v1261
    %v1972 = vunpack.c.l.b16 %v1262
    %v1973 = vunpack.c.h.b16 %v1262
    %v1974 = vunpack.c.l.b16 %v1263
    %v1975 = vunpack.c.h.b16 %v1263
    %v1976 = vunpack.c.l.b16 %v1264
    %v1977 = vunpack.c.h.b16 %v1264
    %v1978 = vunpack.c.l.b16 %v1265
    %v1979 = vunpack.c.h.b16 %v1265
    %v1980 = vunpack.c.l.b16 %v1266
    %v1981 = vunpack.c.h.b16 %v1266
    %v1982 = vunpack.c.l.b16 %v1267
    %v1983 = vunpack.c.h.b16 %v1267
    %v1984 = vunpack.c.l.b16 %v1268
    %v1985 = vunpack.c.h.b16 %v1268
    %v1986 = vunpack.c.l.b16 %v1269
    %v1987 = vunpack.c.h.b16 %v1269
    %v1988 = vunpack.c.l.b16 %v1270
    %v1989 = vunpack.c.h.b16 %v1270
    %v1990 = vunpack.c.l.b16 %v1271
    %v1991 = vunpack.c.h.b16 %v1271
    %v1992 = vunpack.c.l.b16 %v1272
    %v1993 = vunpack.c.h.b16 %v1272
    %v1994 = vunpack.c.l.b16 %v1273
    %v1995 = vunpack.c.h.b16 %v1273
    %v1996 = vunpack.c.l.b16 %v1274
    %v1997 = vunpack.c.h.b16 %v1274
    %v1998 = vunpack.c.l.b16 %v1275
    %v1999 = vunpack.c.h.b16 %v1275
    %v2000 = vunpack.c.l.b16 %v1276
    %v2001 = vunpack.c.h.b16 %v1276
    %v2002 = vunpack.c.l.b16 %v1277
    %v2003 = vunpack.c.h.b16 %v1277
    %v2004 = vunpack.c.l.b16 %v1278
    %v2005 = vunpack.c.h.b16 %v1278
    %v2006 = vunpack.c.l.b16 %v1279
    %v2007 = vunpack.c.h.b16 %v1279
    %v2008 = vunpack.c.l.b16 %v1280
    %v2009 = vunpack.c.h.b16 %v1280
    %v2010 = vunpack.c.l.b16 %v1281
    %v2011 = vunpack.c.h.b16 %v1281
    %v2012 = vunpack.c.l.b16 %v1282
    %v2013 = vunpack.c.h.b16 %v1282
    %v2014 = vunpack.c.l.b16 %v1283
    %v2015 = vunpack.c.h.b16 %v1283
    %v2016 = vunpack.c.l.b16 %v1284
    %v2017 = vunpack.c.h.b16 %v1284
    %v2018 = vunpack.c.l.b16 %v1285
    %v2019 = vunpack.c.h.b16 %v1285
    %v2020 = vunpack.c.l.b16 %v1286
    %v2021 = vunpack.c.h.b16 %v1286
    %v2022 = vunpack.c.l.b16 %v1287
    %v2023 = vunpack.c.h.b16 %v1287
    %v2024 = vunpack.c.l.b16 %v1288
    %v2025 = vunpack.c.h.b16 %v1288
    %v2026 = vunpack.c.l.b16 %v1289
    %v2027 = vunpack.c.h.b16 %v1289
    %v2028 = vunpack.c.l.b16 %v1290
    %v2029 = vunpack.c.h.b16 %v1290
    %v2030 = vunpack.c.l.b16 %v1291
    %v2031 = vunpack.c.h.b16 %v1291
    %v2032 = vunpack.c.l.b16 %v1292
    %v2033 = vunpack.c.h.b16 %v1292
    %v2034 = vunpack.c.l.b16 %v1293
    %v2035 = vunpack.c.h.b16 %v1293
    %v2036 = vunpack.c.l.b16 %v1294
    %v2037 = vunpack.c.h.b16 %v1294
    %v2038 = vunpack.c.l.b16 %v1295
    %v2039 = vunpack.c.h.b16 %v1295
    %v2040 = vunpack.c.l.b16 %v1296
    %v2041 = vunpack.c.h.b16 %v1296
    %v2042 = vunpack.c.l.b16 %v1297
    %v2043 = vunpack.c.h.b16 %v1297
    %v2044 = vunpack.c.l.b16 %v1298
    %v2045 = vunpack.c.h.b16 %v1298
    %v2046 = vunpack.c.l.b16 %v1299
    %v2047 = vunpack.c.h.b16 %v1299
    %v2048 = vunpack.c.l.b16 %v1300
    %v2049 = vunpack.c.h.b16 %v1300
    %v2050 = vunpack.c.l.b16 %v1301
    %v2051 = vunpack.c.h.b16 %v1301
    %v2052 = vunpack.c.l.b16 %v1302
    %v2053 = vunpack.c.h.b16 %v1302
    %v2054 = vunpack.c.l.b16 %v1303
    %v2055 = vunpack.c.h.b16 %v1303
    %v2056 = vunpack.c.l.b16 %v1304
    %v2057 = vunpack.c.h.b16 %v1304
    %v2058 = vunpack.c.l.b16 %v1305
    %v2059 = vunpack.c.h.b16 %v1305
    %v2060 = vunpack.c.l.b16 %v1306
    %v2061 = vunpack.c.h.b16 %v1306
    %v2062 = vunpack.c.l.b16 %v1307
    %v2063 = vunpack.c.h.b16 %v1307
    %v2064 = vunpack.c.l.b16 %v1308
    %v2065 = vunpack.c.h.b16 %v1308
    %v2066 = vunpack.c.l.b16 %v1309
    %v2067 = vunpack.c.h.b16 %v1309
    %v2068 = vunpack.c.l.b16 %v1310
    %v2069 = vunpack.c.h.b16 %v1310
    %v2070 = vunpack.c.l.b16 %v1311
    %v2071 = vunpack.c.h.b16 %v1311
    %v2072 = vunpack.c.l.b16 %v1312
    %v2073 = vunpack.c.h.b16 %v1312
    %v2074 = vunpack.c.l.b16 %v1313
    %v2075 = vunpack.c.h.b16 %v1313
    %v2076 = vunpack.c.l.b16 %v1314
    %v2077 = vunpack.c.h.b16 %v1314
    %v2078 = vunpack.c.l.b16 %v1315
    %v2079 = vunpack.c.h.b16 %v1315
    %v2080 = vunpack.c.l.b16 %v1316
    %v2081 = vunpack.c.h.b16 %v1316
    %v2082 = vunpack.c.l.b16 %v1317
    %v2083 = vunpack.c.h.b16 %v1317
    %v2084 = vunpack.c.l.b16 %v1318
    %v2085 = vunpack.c.h.b16 %v1318
    %v2086 = vunpack.c.l.b16 %v1319
    %v2087 = vunpack.c.h.b16 %v1319
    %v2088 = vunpack.c.l.b16 %v1320
    %v2089 = vunpack.c.h.b16 %v1320
    %v2090 = vunpack.c.l.b16 %v1321
    %v2091 = vunpack.c.h.b16 %v1321
    %v2092 = vunpack.c.l.b16 %v1322
    %v2093 = vunpack.c.h.b16 %v1322
    %v2094 = vunpack.c.l.b16 %v1323
    %v2095 = vunpack.c.h.b16 %v1323
    %v2096 = vunpack.c.l.b16 %v1324
    %v2097 = vunpack.c.h.b16 %v1324
    %v2098 = vunpack.c.l.b16 %v1325
    %v2099 = vunpack.c.h.b16 %v1325
    %v2100 = vunpack.c.l.b16 %v1326
    %v2101 = vunpack.c.h.b16 %v1326
    %v2102 = vunpack.c.l.b16 %v1327
    %v2103 = vunpack.c.h.b16 %v1327
    %v2104 = vunpack.c.l.b16 %v1328
    %v2105 = vunpack.c.h.b16 %v1328
    %v2106 = vunpack.c.l.b16 %v1329
    %v2107 = vunpack.c.h.b16 %v1329
    %v2108 = vunpack.c.l.b16 %v1330
    %v2109 = vunpack.c.h.b16 %v1330
    %v2110 = vunpack.c.l.b16 %v1331
    %v2111 = vunpack.c.h.b16 %v1331
    %v2112 = vunpack.c.l.b16 %v1332
    %v2113 = vunpack.c.h.b16 %v1332
    %v2114 = vunpack.c.l.b16 %v1333
    %v2115 = vunpack.c.h.b16 %v1333
    %v2116 = vunpack.c.l.b16 %v1334
    %v2117 = vunpack.c.h.b16 %v1334
    %v2118 = vunpack.c.l.b16 %v1335
    %v2119 = vunpack.c.h.b16 %v1335
    %v2120 = vunpack.c.l.b16 %v1336
    %v2121 = vunpack.c.h.b16 %v1336
    %v2122 = vunpack.c.l.b16 %v1337
    %v2123 = vunpack.c.h.b16 %v1337
    %v2124 = vunpack.c.l.b16 %v1338
    %v2125 = vunpack.c.h.b16 %v1338
    %v2126 = vunpack.c.l.b16 %v1339
    %v2127 = vunpack.c.h.b16 %v1339
    %v2128 = vunpack.c.l.b16 %v1340
    %v2129 = vunpack.c.h.b16 %v1340
    %v2130 = vunpack.c.l.b16 %v1341
    %v2131 = vunpack.c.h.b16 %v1341
    %v2132 = vpack.c.b16 %v1624, %v1620
    %v2133 = vpack.c.b16 %v1625, %v1621
    %v2134 = vpack.c.b16 %v1626, %v1622
    %v2135 = vpack.c.b16 %v1627, %v1623
    %v2136 = vpack.c.b16 %v1632, %v1628
    %v2137 = vpack.c.b16 %v1633, %v1629
    %v2138 = vpack.c.b16 %v1634, %v1630
    %v2139 = vpack.c.b16 %v1635, %v1631
    %v2140 = vpack.c.b16 %v1640, %v1636
    %v2141 = vpack.c.b16 %v1641, %v1637
    %v2142 = vpack.c.b16 %v1642, %v1638
    %v2143 = vpack.c.b16 %v1643, %v1639
    %v2144 = vpack.c.b16 %v1648, %v1644
    %v2145 = vpack.c.b16 %v1649, %v1645
    %v2146 = vpack.c.b16 %v1650, %v1646
    %v2147 = vpack.c.b16 %v1651, %v1647
    %v2148 = vpack.c.b16 %v1656, %v1652
    %v2149 = vpack.c.b16 %v1657, %v1653
    %v2150 = vpack.c.b16 %v1658, %v1654
    %v2151 = vpack.c.b16 %v1659, %v1655
    %v2152 = vpack.c.b16 %v1664, %v1660
    %v2153 = vpack.c.b16 %v1665, %v1661
    %v2154 = vpack.c.b16 %v1666, %v1662
    %v2155 = vpack.c.b16 %v1667, %v1663
    %v2156 = vpack.c.b16 %v1672, %v1668
    %v2157 = vpack.c.b16 %v1673, %v1669
    %v2158 = vpack.c.b16 %v1674, %v1670
    %v2159 = vpack.c.b16 %v1675, %v1671
    %v2160 = vpack.c.b16 %v1680, %v1676
    %v2161 = vpack.c.b16 %v1681, %v1677
    %v2162 = vpack.c.b16 %v1682, %v1678
    %v2163 = vpack.c.b16 %v1683, %v1679
    %v2164 = vpack.c.b16 %v1688, %v1684
    %v2165 = vpack.c.b16 %v1689, %v1685
    %v2166 = vpack.c.b16 %v1690, %v1686
    %v2167 = vpack.c.b16 %v1691, %v1687
    %v2168 = vpack.c.b16 %v1696, %v1692
    %v2169 = vpack.c.b16 %v1697, %v1693
    %v2170 = vpack.c.b16 %v1698, %v1694
    %v2171 = vpack.c.b16 %v1699, %v1695
    %v2172 = vpack.c.b16 %v1704, %v1700
    %v2173 = vpack.c.b16 %v1705, %v1701
    %v2174 = vpack.c.b16 %v1706, %v1702
    %v2175 = vpack.c.b16 %v1707, %v1703
    %v2176 = vpack.c.b16 %v1712, %v1708
    %v2177 = vpack.c.b16 %v1713, %v1709
    %v2178 = vpack.c.b16 %v1714, %v1710
    %v2179 = vpack.c.b16 %v1715, %v1711
    %v2180 = vpack.c.b16 %v1720, %v1716
    %v2181 = vpack.c.b16 %v1721, %v1717
    %v2182 = vpack.c.b16 %v1722, %v1718
    %v2183 = vpack.c.b16 %v1723, %v1719
    %v2184 = vpack.c.b16 %v1728, %v1724
    %v2185 = vpack.c.b16 %v1729, %v1725
    %v2186 = vpack.c.b16 %v1730, %v1726
    %v2187 = vpack.c.b16 %v1731, %v1727
    %v2188 = vpack.c.b16 %v1736, %v1732
    %v2189 = vpack.c.b16 %v1737, %v1733
    %v2190 = vpack.c.b16 %v1738, %v1734
    %v2191 = vpack.c.b16 %v1739, %v1735
    %v2192 = vpack.c.b16 %v1744, %v1740
    %v2193 = vpack.c.b16 %v1745, %v1741
    %v2194 = vpack.c.b16 %v1746, %v1742
    %v2195 = vpack.c.b16 %v1747, %v1743
    %v2196 = vpack.c.b16 %v1752, %v1748
    %v2197 = vpack.c.b16 %v1753, %v1749
    %v2198 = vpack.c.b16 %v1754, %v1750
    %v2199 = vpack.c.b16 %v1755, %v1751
    %v2200 = vpack.c.b16 %v1760, %v1756
    %v2201 = vpack.c.b16 %v1761, %v1757
    %v2202 = vpack.c.b16 %v1762, %v1758
    %v2203 = vpack.c.b16 %v1763, %v1759
    %v2204 = vpack.c.b16 %v1768, %v1764
    %v2205 = vpack.c.b16 %v1769, %v1765
    %v2206 = vpack.c.b16 %v1770, %v1766
    %v2207 = vpack.c.b16 %v1771, %v1767
    %v2208 = vpack.c.b16 %v1776, %v1772
    %v2209 = vpack.c.b16 %v1777, %v1773
    %v2210 = vpack.c.b16 %v1778, %v1774
    %v2211 = vpack.c.b16 %v1779, %v1775
    %v2212 = vpack.c.b16 %v1784, %v1780
    %v2213 = vpack.c.b16 %v1785, %v1781
    %v2214 = vpack.c.b16 %v1786, %v1782
    %v2215 = vpack.c.b16 %v1787, %v1783
    %v2216 = vpack.c.b16 %v1792, %v1788
    %v2217 = vpack.c.b16 %v1793, %v1789
    %v2218 = vpack.c.b16 %v1794, %v1790
    %v2219 = vpack.c.b16 %v1795, %v1791
    %v2220 = vpack.c.b16 %v1800, %v1796
    %v2221 = vpack.c.b16 %v1801, %v1797
    %v2222 = vpack.c.b16 %v1802, %v1798
    %v2223 = vpack.c.b16 %v1803, %v1799
    %v2224 = vpack.c.b16 %v1808, %v1804
    %v2225 = vpack.c.b16 %v1809, %v1805
    %v2226 = vpack.c.b16 %v1810, %v1806
    %v2227 = vpack.c.b16 %v1811, %v1807
    %v2228 = vpack.c.b16 %v1816, %v1812
    %v2229 = vpack.c.b16 %v1817, %v1813
    %v2230 = vpack.c.b16 %v1818, %v1814
    %v2231 = vpack.c.b16 %v1819, %v1815
    %v2232 = vpack.c.b16 %v1824, %v1820
    %v2233 = vpack.c.b16 %v1825, %v1821
    %v2234 = vpack.c.b16 %v1826, %v1822
    %v2235 = vpack.c.b16 %v1827, %v1823
    %v2236 = vpack.c.b16 %v1832, %v1828
    %v2237 = vpack.c.b16 %v1833, %v1829
    %v2238 = vpack.c.b16 %v1834, %v1830
    %v2239 = vpack.c.b16 %v1835, %v1831
    %v2240 = vpack.c.b16 %v1840, %v1836
    %v2241 = vpack.c.b16 %v1841, %v1837
    %v2242 = vpack.c.b16 %v1842, %v1838
    %v2243 = vpack.c.b16 %v1843, %v1839
    %v2244 = vpack.c.b16 %v1848, %v1844
    %v2245 = vpack.c.b16 %v1849, %v1845
    %v2246 = vpack.c.b16 %v1850, %v1846
    %v2247 = vpack.c.b16 %v1851, %v1847
    %v2248 = vpack.c.b16 %v1856, %v1852
    %v2249 = vpack.c.b16 %v1857, %v1853
    %v2250 = vpack.c.b16 %v1858, %v1854
    %v2251 = vpack.c.b16 %v1859, %v1855
    %v2252 = vpack.c.b16 %v1864, %v1860
    %v2253 = vpack.c.b16 %v1865, %v1861
    %v2254 = vpack.c.b16 %v1866, %v1862
    %v2255 = vpack.c.b16 %v1867, %v1863
    %v2256 = vpack.c.b16 %v1872, %v1868
    %v2257 = vpack.c.b16 %v1873, %v1869
    %v2258 = vpack.c.b16 %v1874, %v1870
    %v2259 = vpack.c.b16 %v1875, %v1871
    %v2260 = vpack.c.b16 %v1880, %v1876
    %v2261 = vpack.c.b16 %v1881, %v1877
    %v2262 = vpack.c.b16 %v1882, %v1878
    %v2263 = vpack.c.b16 %v1883, %v1879
    %v2264 = vpack.c.b16 %v1888, %v1884
    %v2265 = vpack.c.b16 %v1889, %v1885
    %v2266 = vpack.c.b16 %v1890, %v1886
    %v2267 = vpack.c.b16 %v1891, %v1887
    %v2268 = vpack.c.b16 %v1896, %v1892
    %v2269 = vpack.c.b16 %v1897, %v1893
    %v2270 = vpack.c.b16 %v1898, %v1894
    %v2271 = vpack.c.b16 %v1899, %v1895
    %v2272 = vpack.c.b16 %v1904, %v1900
    %v2273 = vpack.c.b16 %v1905, %v1901
    %v2274 = vpack.c.b16 %v1906, %v1902
    %v2275 = vpack.c.b16 %v1907, %v1903
    %v2276 = vpack.c.b16 %v1912, %v1908
    %v2277 = vpack.c.b16 %v1913, %v1909
    %v2278 = vpack.c.b16 %v1914, %v1910
    %v2279 = vpack.c.b16 %v1915, %v1911
    %v2280 = vpack.c.b16 %v1920, %v1916
    %v2281 = vpack.c.b16 %v1921, %v1917
    %v2282 = vpack.c.b16 %v1922, %v1918
    %v2283 = vpack.c.b16 %v1923, %v1919
    %v2284 = vpack.c.b16 %v1928, %v1924
    %v2285 = vpack.c.b16 %v1929, %v1925
    %v2286 = vpack.c.b16 %v1930, %v1926
    %v2287 = vpack.c.b16 %v1931, %v1927
    %v2288 = vpack.c.b16 %v1936, %v1932
    %v2289 = vpack.c.b16 %v1937, %v1933
    %v2290 = vpack.c.b16 %v1938, %v1934
    %v2291 = vpack.c.b16 %v1939, %v1935
    %v2292 = vpack.c.b16 %v1944, %v1940
    %v2293 = vpack.c.b16 %v1945, %v1941
    %v2294 = vpack.c.b16 %v1946, %v1942
    %v2295 = vpack.c.b16 %v1947, %v1943
    %v2296 = vpack.c.b16 %v1952, %v1948
    %v2297 = vpack.c.b16 %v1953, %v1949
    %v2298 = vpack.c.b16 %v1954, %v1950
    %v2299 = vpack.c.b16 %v1955, %v1951
    %v2300 = vpack.c.b16 %v1960, %v1956
    %v2301 = vpack.c.b16 %v1961, %v1957
    %v2302 = vpack.c.b16 %v1962, %v1958
    %v2303 = vpack.c.b16 %v1963, %v1959
    %v2304 = vpack.c.b16 %v1968, %v1964
    %v2305 = vpack.c.b16 %v1969, %v1965
    %v2306 = vpack.c.b16 %v1970, %v1966
    %v2307 = vpack.c.b16 %v1971, %v1967
    %v2308 = vpack.c.b16 %v1976, %v1972
    %v2309 = vpack.c.b16 %v1977, %v1973
    %v2310 = vpack.c.b16 %v1978, %v1974
    %v2311 = vpack.c.b16 %v1979, %v1975
    %v2312 = vpack.c.b16 %v1984, %v1980
    %v2313 = vpack.c.b16 %v1985, %v1981
    %v2314 = vpack.c.b16 %v1986, %v1982
    %v2315 = vpack.c.b16 %v1987, %v1983
    %v2316 = vpack.c.b16 %v1992, %v1988
    %v2317 = vpack.c.b16 %v1993, %v1989
    %v2318 = vpack.c.b16 %v1994, %v1990
    %v2319 = vpack.c.b16 %v1995, %v1991
    %v2320 = vpack.c.b16 %v2000, %v1996
    %v2321 = vpack.c.b16 %v2001, %v1997
    %v2322 = vpack.c.b16 %v2002, %v1998
    %v2323 = vpack.c.b16 %v2003, %v1999
    %v2324 = vpack.c.b16 %v2008, %v2004
    %v2325 = vpack.c.b16 %v2009, %v2005
    %v2326 = vpack.c.b16 %v2010, %v2006
    %v2327 = vpack.c.b16 %v2011, %v2007
    %v2328 = vpack.c.b16 %v2016, %v2012
    %v2329 = vpack.c.b16 %v2017, %v2013
    %v2330 = vpack.c.b16 %v2018, %v2014
    %v2331 = vpack.c.b16 %v2019, %v2015
    %v2332 = vpack.c.b16 %v2024, %v2020
    %v2333 = vpack.c.b16 %v2025, %v2021
    %v2334 = vpack.c.b16 %v2026, %v2022
    %v2335 = vpack.c.b16 %v2027, %v2023
    %v2336 = vpack.c.b16 %v2032, %v2028
    %v2337 = vpack.c.b16 %v2033, %v2029
    %v2338 = vpack.c.b16 %v2034, %v2030
    %v2339 = vpack.c.b16 %v2035, %v2031
    %v2340 = vpack.c.b16 %v2040, %v2036
    %v2341 = vpack.c.b16 %v2041, %v2037
    %v2342 = vpack.c.b16 %v2042, %v2038
    %v2343 = vpack.c.b16 %v2043, %v2039
    %v2344 = vpack.c.b16 %v2048, %v2044
    %v2345 = vpack.c.b16 %v2049, %v2045
    %v2346 = vpack.c.b16 %v2050, %v2046
    %v2347 = vpack.c.b16 %v2051, %v2047
    %v2348 = vpack.c.b16 %v2056, %v2052
    %v2349 = vpack.c.b16 %v2057, %v2053
    %v2350 = vpack.c.b16 %v2058, %v2054
    %v2351 = vpack.c.b16 %v2059, %v2055
    %v2352 = vpack.c.b16 %v2064, %v2060
    %v2353 = vpack.c.b16 %v2065, %v2061
    %v2354 = vpack.c.b16 %v2066, %v2062
    %v2355 = vpack.c.b16 %v2067, %v2063
    %v2356 = vpack.c.b16 %v2072, %v2068
    %v2357 = vpack.c.b16 %v2073, %v2069
    %v2358 = vpack.c.b16 %v2074, %v2070
    %v2359 = vpack.c.b16 %v2075, %v2071
    %v2360 = vpack.c.b16 %v2080, %v2076
    %v2361 = vpack.c.b16 %v2081, %v2077
    %v2362 = vpack.c.b16 %v2082, %v2078
    %v2363 = vpack.c.b16 %v2083, %v2079
    %v2364 = vpack.c.b16 %v2088, %v2084
    %v2365 = vpack.c.b16 %v2089, %v2085
    %v2366 = vpack.c.b16 %v2090, %v2086
    %v2367 = vpack.c.b16 %v2091, %v2087
    %v2368 = vpack.c.b16 %v2096, %v2092
    %v2369 = vpack.c.b16 %v2097, %v2093
    %v2370 = vpack.c.b16 %v2098, %v2094
    %v2371 = vpack.c.b16 %v2099, %v2095
    %v2372 = vpack.c.b16 %v2104, %v2100
    %v2373 = vpack.c.b16 %v2105, %v2101
    %v2374 = vpack.c.b16 %v2106, %v2102
    %v2375 = vpack.c.b16 %v2107, %v2103
    %v2376 = vpack.c.b16 %v2112, %v2108
    %v2377 = vpack.c.b16 %v2113, %v2109
    %v2378 = vpack.c.b16 %v2114, %v2110
    %v2379 = vpack.c.b16 %v2115, %v2111
    %v2380 = vpack.c.b16 %v2120, %v2116
    %v2381 = vpack.c.b16 %v2121, %v2117
    %v2382 = vpack.c.b16 %v2122, %v2118
    %v2383 = vpack.c.b16 %v2123, %v2119
    %v2384 = vpack.c.b16 %v2128, %v2124
    %v2385 = vpack.c.b16 %v2129, %v2125
    %v2386 = vpack.c.b16 %v2130, %v2126
    %v2387 = vpack.c.b16 %v2131, %v2127
    %2644 = vmatprep.subr.bf16.mxu0 %v2133
    %2645 = vmatpush1.bf16.msra.mxu0 %v2132
    %2646 = vmatprep.subr.bf16.mxu0 %v2137
    %2647 = vmatpush1.bf16.msra.mxu0 %v2136
    %2648 = vmatprep.subr.bf16.mxu0 %v2141
    %2649 = vmatpush1.bf16.msra.mxu0 %v2140
    %2650 = vmatprep.subr.bf16.mxu0 %v2145
    %2651 = vmatpush1.bf16.msra.mxu0 %v2144
    %2652 = vmatprep.subr.bf16.mxu0 %v2149
    %2653 = vmatpush1.bf16.msra.mxu0 %v2148
    %2654 = vmatprep.subr.bf16.mxu0 %v2153
    %2655 = vmatpush1.bf16.msra.mxu0 %v2152
    %2656 = vmatprep.subr.bf16.mxu0 %v2157
    %2657 = vmatpush1.bf16.msra.mxu0 %v2156
    %2658 = vmatprep.subr.bf16.mxu0 %v2161
    %2659 = vmatpush1.bf16.msra.mxu0 %v2160
    %2660 = vmatprep.subr.bf16.mxu0 %v2165
    %2661 = vmatpush1.bf16.msra.mxu0 %v2164
    %2662 = vmatprep.subr.bf16.mxu0 %v2169
    %2663 = vmatpush1.bf16.msra.mxu0 %v2168
    %2664 = vmatprep.subr.bf16.mxu0 %v2173
    %2665 = vmatpush1.bf16.msra.mxu0 %v2172
    %2666 = vmatprep.subr.bf16.mxu0 %v2177
    %2667 = vmatpush1.bf16.msra.mxu0 %v2176
    %2668 = vmatprep.subr.bf16.mxu0 %v2181
    %2669 = vmatpush1.bf16.msra.mxu0 %v2180
    %2670 = vmatprep.subr.bf16.mxu0 %v2185
    %2671 = vmatpush1.bf16.msra.mxu0 %v2184
    %2672 = vmatprep.subr.bf16.mxu0 %v2189
    %2673 = vmatpush1.bf16.msra.mxu0 %v2188
    %2674 = vmatprep.subr.bf16.mxu0 %v2193
    %2675 = vmatpush1.bf16.msra.mxu0 %v2192
    %2676 = vmatprep.mubr.bf16.mxu0 %v1079
    %2677 = vmatmul.mubr.bf16.gmra.mrb[0].mxu0 %v1078
    %v2678 = vpop.f32.mrb[0].mxu0
    %v2679 = vadd.f32 %v1347, %v2678
    %v2680 = vpop.f32.mrb[0].mxu0
    %v2681 = vadd.f32 %v1351, %v2680
    %v2682 = vpop.f32.mrb[0].mxu0
    %v2683 = vadd.f32 %v1347, %v2682
    %v2684 = vpop.f32.mrb[0].mxu0
    %v2685 = vadd.f32 %v1351, %v2684
    %2686 = vdwg.mxu0
    %2687 = vmatprep.subr.bf16.mxu0 %v2197
    %2688 = vmatpush1.bf16.msra.mxu0 %v2196
    %2689 = vmatprep.subr.bf16.mxu0 %v2201
    %2690 = vmatpush1.bf16.msra.mxu0 %v2200
    %2691 = vmatprep.subr.bf16.mxu0 %v2205
    %2692 = vmatpush1.bf16.msra.mxu0 %v2204
    %2693 = vmatprep.subr.bf16.mxu0 %v2209
    %2694 = vmatpush1.bf16.msra.mxu0 %v2208
    %2695 = vmatprep.subr.bf16.mxu0 %v2213
    %2696 = vmatpush1.bf16.msra.mxu0 %v2212
    %2697 = vmatprep.subr.bf16.mxu0 %v2217
    %2698 = vmatpush1.bf16.msra.mxu0 %v2216
    %2699 = vmatprep.subr.bf16.mxu0 %v2221
    %2700 = vmatpush1.bf16.msra.mxu0 %v2220
    %2701 = vmatprep.subr.bf16.mxu0 %v2225
    %2702 = vmatpush1.bf16.msra.mxu0 %v2224
    %2703 = vmatprep.subr.bf16.mxu0 %v2229
    %2704 = vmatpush1.bf16.msra.mxu0 %v2228
    %2705 = vmatprep.subr.bf16.mxu0 %v2233
    %2706 = vmatpush1.bf16.msra.mxu0 %v2232
    %2707 = vmatprep.subr.bf16.mxu0 %v2237
    %2708 = vmatpush1.bf16.msra.mxu0 %v2236
    %2709 = vmatprep.subr.bf16.mxu0 %v2241
    %2710 = vmatpush1.bf16.msra.mxu0 %v2240
    %2711 = vmatprep.subr.bf16.mxu0 %v2245
    %2712 = vmatpush1.bf16.msra.mxu0 %v2244
    %2713 = vmatprep.subr.bf16.mxu0 %v2249
    %2714 = vmatpush1.bf16.msra.mxu0 %v2248
    %2715 = vmatprep.subr.bf16.mxu0 %v2253
    %2716 = vmatpush1.bf16.msra.mxu0 %v2252
    %2717 = vmatprep.subr.bf16.mxu0 %v2257
    %2718 = vmatpush1.bf16.msra.mxu0 %v2256
    %2719 = vmatprep.mubr.bf16.mxu0 %v1081
    %2720 = vmatmul.mubr.bf16.gmra.mrb[0].mxu0 %v1080
    %v2721 = vpop.f32.mrb[0].mxu0
    %v2722 = vadd.f32 %v2679, %v2721
    %v2723 = vpop.f32.mrb[0].mxu0
    %v2724 = vadd.f32 %v2681, %v2723
    %v2725 = vpop.f32.mrb[0].mxu0
    %v2726 = vadd.f32 %v2683, %v2725
    %v2727 = vpop.f32.mrb[0].mxu0
    %v2728 = vadd.f32 %v2685, %v2727
    %2729 = vdwg.mxu0
    %2730 = vmatprep.subr.bf16.mxu0 %v2261
    %2731 = vmatpush1.bf16.msra.mxu0 %v2260
    %2732 = vmatprep.subr.bf16.mxu0 %v2265
    %2733 = vmatpush1.bf16.msra.mxu0 %v2264
    %2734 = vmatprep.subr.bf16.mxu0 %v2269
    %2735 = vmatpush1.bf16.msra.mxu0 %v2268
    %2736 = vmatprep.subr.bf16.mxu0 %v2273
    %2737 = vmatpush1.bf16.msra.mxu0 %v2272
    %2738 = vmatprep.subr.bf16.mxu0 %v2277
    %2739 = vmatpush1.bf16.msra.mxu0 %v2276
    %2740 = vmatprep.subr.bf16.mxu0 %v2281
    %2741 = vmatpush1.bf16.msra.mxu0 %v2280
    %2742 = vmatprep.subr.bf16.mxu0 %v2285
    %2743 = vmatpush1.bf16.msra.mxu0 %v2284
    %2744 = vmatprep.subr.bf16.mxu0 %v2289
    %2745 = vmatpush1.bf16.msra.mxu0 %v2288
    %2746 = vmatprep.subr.bf16.mxu0 %v2293
    %2747 = vmatpush1.bf16.msra.mxu0 %v2292
    %2748 = vmatprep.subr.bf16.mxu0 %v2297
    %2749 = vmatpush1.bf16.msra.mxu0 %v2296
    %2750 = vmatprep.subr.bf16.mxu0 %v2301
    %2751 = vmatpush1.bf16.msra.mxu0 %v2300
    %2752 = vmatprep.subr.bf16.mxu0 %v2305
    %2753 = vmatpush1.bf16.msra.mxu0 %v2304
    %2754 = vmatprep.subr.bf16.mxu0 %v2309
    %2755 = vmatpush1.bf16.msra.mxu0 %v2308
    %2756 = vmatprep.subr.bf16.mxu0 %v2313
    %2757 = vmatpush1.bf16.msra.mxu0 %v2312
    %2758 = vmatprep.subr.bf16.mxu0 %v2317
    %2759 = vmatpush1.bf16.msra.mxu0 %v2316
    %2760 = vmatprep.subr.bf16.mxu0 %v2321
    %2761 = vmatpush1.bf16.msra.mxu0 %v2320
    %2762 = vmatprep.mubr.bf16.mxu0 %v1083
    %2763 = vmatmul.mubr.bf16.gmra.mrb[0].mxu0 %v1082
    %v2764 = vpop.f32.mrb[0].mxu0
    %v2765 = vadd.f32 %v2722, %v2764
    %v2766 = vpop.f32.mrb[0].mxu0
    %v2767 = vadd.f32 %v2724, %v2766
    %v2768 = vpop.f32.mrb[0].mxu0
    %v2769 = vadd.f32 %v2726, %v2768
    %v2770 = vpop.f32.mrb[0].mxu0
    %v2771 = vadd.f32 %v2728, %v2770
    %2772 = vdwg.mxu0
    %2773 = vmatprep.subr.bf16.mxu0 %v2325
    %2774 = vmatpush1.bf16.msra.mxu0 %v2324
    %2775 = vmatprep.subr.bf16.mxu0 %v2329
    %2776 = vmatpush1.bf16.msra.mxu0 %v2328
    %2777 = vmatprep.subr.bf16.mxu0 %v2333
    %2778 = vmatpush1.bf16.msra.mxu0 %v2332
    %2779 = vmatprep.subr.bf16.mxu0 %v2337
    %2780 = vmatpush1.bf16.msra.mxu0 %v2336
    %2781 = vmatprep.subr.bf16.mxu0 %v2341
    %2782 = vmatpush1.bf16.msra.mxu0 %v2340
    %2783 = vmatprep.subr.bf16.mxu0 %v2345
    %2784 = vmatpush1.bf16.msra.mxu0 %v2344
    %2785 = vmatprep.subr.bf16.mxu0 %v2349
    %2786 = vmatpush1.bf16.msra.mxu0 %v2348
    %2787 = vmatprep.subr.bf16.mxu0 %v2353
    %2788 = vmatpush1.bf16.msra.mxu0 %v2352
    %2789 = vmatprep.subr.bf16.mxu0 %v2357
    %2790 = vmatpush1.bf16.msra.mxu0 %v2356
    %2791 = vmatprep.subr.bf16.mxu0 %v2361
    %2792 = vmatpush1.bf16.msra.mxu0 %v2360
    %2793 = vmatprep.subr.bf16.mxu0 %v2365
    %2794 = vmatpush1.bf16.msra.mxu0 %v2364
    %2795 = vmatprep.subr.bf16.mxu0 %v2369
    %2796 = vmatpush1.bf16.msra.mxu0 %v2368
    %2797 = vmatprep.subr.bf16.mxu0 %v2373
    %2798 = vmatpush1.bf16.msra.mxu0 %v2372
    %2799 = vmatprep.subr.bf16.mxu0 %v2377
    %2800 = vmatpush1.bf16.msra.mxu0 %v2376
    %2801 = vmatprep.subr.bf16.mxu0 %v2381
    %2802 = vmatpush1.bf16.msra.mxu0 %v2380
    %2803 = vmatprep.subr.bf16.mxu0 %v2385
    %2804 = vmatpush1.bf16.msra.mxu0 %v2384
    %2805 = vmatprep.mubr.bf16.mxu0 %v1085
    %2806 = vmatmul.mubr.bf16.gmra.mrb[0].mxu0 %v1084
    %v2807 = vpop.f32.mrb[0].mxu0
    %v2808 = vadd.f32 %v2765, %v2807
    %v2809 = vpop.f32.mrb[0].mxu0
    %v2810 = vadd.f32 %v2767, %v2809
    %v2811 = vpop.f32.mrb[0].mxu0
    %v2812 = vadd.f32 %v2769, %v2811
    %v2813 = vpop.f32.mrb[0].mxu0
    %v2814 = vadd.f32 %v2771, %v2813
    %2815 = vdwg.mxu0
    %2816 = vmatprep.subr.bf16.mxu0 %v2135
    %2817 = vmatpush1.bf16.msra.mxu0 %v2134
    %2818 = vmatprep.subr.bf16.mxu0 %v2139
    %2819 = vmatpush1.bf16.msra.mxu0 %v2138
    %2820 = vmatprep.subr.bf16.mxu0 %v2143
    %2821 = vmatpush1.bf16.msra.mxu0 %v2142
    %2822 = vmatprep.subr.bf16.mxu0 %v2147
    %2823 = vmatpush1.bf16.msra.mxu0 %v2146
    %2824 = vmatprep.subr.bf16.mxu0 %v2151
    %2825 = vmatpush1.bf16.msra.mxu0 %v2150
    %2826 = vmatprep.subr.bf16.mxu0 %v2155
    %2827 = vmatpush1.bf16.msra.mxu0 %v2154
    %2828 = vmatprep.subr.bf16.mxu0 %v2159
    %2829 = vmatpush1.bf16.msra.mxu0 %v2158
    %2830 = vmatprep.subr.bf16.mxu0 %v2163
    %2831 = vmatpush1.bf16.msra.mxu0 %v2162
    %2832 = vmatprep.subr.bf16.mxu0 %v2167
    %2833 = vmatpush1.bf16.msra.mxu0 %v2166
    %2834 = vmatprep.subr.bf16.mxu0 %v2171
    %2835 = vmatpush1.bf16.msra.mxu0 %v2170
    %2836 = vmatprep.subr.bf16.mxu0 %v2175
    %2837 = vmatpush1.bf16.msra.mxu0 %v2174
    %2838 = vmatprep.subr.bf16.mxu0 %v2179
    %2839 = vmatpush1.bf16.msra.mxu0 %v2178
    %2840 = vmatprep.subr.bf16.mxu0 %v2183
    %2841 = vmatpush1.bf16.msra.mxu0 %v2182
    %2842 = vmatprep.subr.bf16.mxu0 %v2187
    %2843 = vmatpush1.bf16.msra.mxu0 %v2186
    %2844 = vmatprep.subr.bf16.mxu0 %v2191
    %2845 = vmatpush1.bf16.msra.mxu0 %v2190
    %2846 = vmatprep.subr.bf16.mxu0 %v2195
    %2847 = vmatpush1.bf16.msra.mxu0 %v2194
    %2848 = vmatprep.mubr.bf16.mxu0 %v1079
    %2849 = vmatmul.mubr.bf16.gmra.mrb[0].mxu0 %v1078
    %v2850 = vpop.f32.mrb[0].mxu0
    %v2851 = vadd.f32 %v1355, %v2850
    %v2852 = vpop.f32.mrb[0].mxu0
    %v2853 = vadd.f32 %v1359, %v2852
    %v2854 = vpop.f32.mrb[0].mxu0
    %v2855 = vadd.f32 %v1355, %v2854
    %v2856 = vpop.f32.mrb[0].mxu0
    %v2857 = vadd.f32 %v1359, %v2856
    %2858 = vdwg.mxu0
    %2859 = vmatprep.subr.bf16.mxu0 %v2199
    %2860 = vmatpush1.bf16.msra.mxu0 %v2198
    %2861 = vmatprep.subr.bf16.mxu0 %v2203
    %2862 = vmatpush1.bf16.msra.mxu0 %v2202
    %2863 = vmatprep.subr.bf16.mxu0 %v2207
    %2864 = vmatpush1.bf16.msra.mxu0 %v2206
    %2865 = vmatprep.subr.bf16.mxu0 %v2211
    %2866 = vmatpush1.bf16.msra.mxu0 %v2210
    %2867 = vmatprep.subr.bf16.mxu0 %v2215
    %2868 = vmatpush1.bf16.msra.mxu0 %v2214
    %2869 = vmatprep.subr.bf16.mxu0 %v2219
    %2870 = vmatpush1.bf16.msra.mxu0 %v2218
    %2871 = vmatprep.subr.bf16.mxu0 %v2223
    %2872 = vmatpush1.bf16.msra.mxu0 %v2222
    %2873 = vmatprep.subr.bf16.mxu0 %v2227
    %2874 = vmatpush1.bf16.msra.mxu0 %v2226
    %2875 = vmatprep.subr.bf16.mxu0 %v2231
    %2876 = vmatpush1.bf16.msra.mxu0 %v2230
    %2877 = vmatprep.subr.bf16.mxu0 %v2235
    %2878 = vmatpush1.bf16.msra.mxu0 %v2234
    %2879 = vmatprep.subr.bf16.mxu0 %v2239
    %2880 = vmatpush1.bf16.msra.mxu0 %v2238
    %2881 = vmatprep.subr.bf16.mxu0 %v2243
    %2882 = vmatpush1.bf16.msra.mxu0 %v2242
    %2883 = vmatprep.subr.bf16.mxu0 %v2247
    %2884 = vmatpush1.bf16.msra.mxu0 %v2246
    %2885 = vmatprep.subr.bf16.mxu0 %v2251
    %2886 = vmatpush1.bf16.msra.mxu0 %v2250
    %2887 = vmatprep.subr.bf16.mxu0 %v2255
    %2888 = vmatpush1.bf16.msra.mxu0 %v2254
    %2889 = vmatprep.subr.bf16.mxu0 %v2259
    %2890 = vmatpush1.bf16.msra.mxu0 %v2258
    %2891 = vmatprep.mubr.bf16.mxu0 %v1081
    %2892 = vmatmul.mubr.bf16.gmra.mrb[0].mxu0 %v1080
    %v2893 = vpop.f32.mrb[0].mxu0
    %v2894 = vadd.f32 %v2851, %v2893
    %v2895 = vpop.f32.mrb[0].mxu0
    %v2896 = vadd.f32 %v2853, %v2895
    %v2897 = vpop.f32.mrb[0].mxu0
    %v2898 = vadd.f32 %v2855, %v2897
    %v2899 = vpop.f32.mrb[0].mxu0
    %v2900 = vadd.f32 %v2857, %v2899
    %2901 = vdwg.mxu0
    %2902 = vmatprep.subr.bf16.mxu0 %v2263
    %2903 = vmatpush1.bf16.msra.mxu0 %v2262
    %2904 = vmatprep.subr.bf16.mxu0 %v2267
    %2905 = vmatpush1.bf16.msra.mxu0 %v2266
    %2906 = vmatprep.subr.bf16.mxu0 %v2271
    %2907 = vmatpush1.bf16.msra.mxu0 %v2270
    %2908 = vmatprep.subr.bf16.mxu0 %v2275
    %2909 = vmatpush1.bf16.msra.mxu0 %v2274
    %2910 = vmatprep.subr.bf16.mxu0 %v2279
    %2911 = vmatpush1.bf16.msra.mxu0 %v2278
    %2912 = vmatprep.subr.bf16.mxu0 %v2283
    %2913 = vmatpush1.bf16.msra.mxu0 %v2282
    %2914 = vmatprep.subr.bf16.mxu0 %v2287
    %2915 = vmatpush1.bf16.msra.mxu0 %v2286
    %2916 = vmatprep.subr.bf16.mxu0 %v2291
    %2917 = vmatpush1.bf16.msra.mxu0 %v2290
    %2918 = vmatprep.subr.bf16.mxu0 %v2295
    %2919 = vmatpush1.bf16.msra.mxu0 %v2294
    %2920 = vmatprep.subr.bf16.mxu0 %v2299
    %2921 = vmatpush1.bf16.msra.mxu0 %v2298
    %2922 = vmatprep.subr.bf16.mxu0 %v2303
    %2923 = vmatpush1.bf16.msra.mxu0 %v2302
    %2924 = vmatprep.subr.bf16.mxu0 %v2307
    %2925 = vmatpush1.bf16.msra.mxu0 %v2306
    %2926 = vmatprep.subr.bf16.mxu0 %v2311
    %2927 = vmatpush1.bf16.msra.mxu0 %v2310
    %2928 = vmatprep.subr.bf16.mxu0 %v2315
    %2929 = vmatpush1.bf16.msra.mxu0 %v2314
    %2930 = vmatprep.subr.bf16.mxu0 %v2319
    %2931 = vmatpush1.bf16.msra.mxu0 %v2318
    %2932 = vmatprep.subr.bf16.mxu0 %v2323
    %2933 = vmatpush1.bf16.msra.mxu0 %v2322
    %2934 = vmatprep.mubr.bf16.mxu0 %v1083
    %2935 = vmatmul.mubr.bf16.gmra.mrb[0].mxu0 %v1082
    %v2936 = vpop.f32.mrb[0].mxu0
    %v2937 = vadd.f32 %v2894, %v2936
    %v2938 = vpop.f32.mrb[0].mxu0
    %v2939 = vadd.f32 %v2896, %v2938
    %v2940 = vpop.f32.mrb[0].mxu0
    %v2941 = vadd.f32 %v2898, %v2940
    %v2942 = vpop.f32.mrb[0].mxu0
    %v2943 = vadd.f32 %v2900, %v2942
    %2944 = vdwg.mxu0
    %2945 = vmatprep.subr.bf16.mxu0 %v2327
    %2946 = vmatpush1.bf16.msra.mxu0 %v2326
    %2947 = vmatprep.subr.bf16.mxu0 %v2331
    %2948 = vmatpush1.bf16.msra.mxu0 %v2330
    %2949 = vmatprep.subr.bf16.mxu0 %v2335
    %2950 = vmatpush1.bf16.msra.mxu0 %v2334
    %2951 = vmatprep.subr.bf16.mxu0 %v2339
    %2952 = vmatpush1.bf16.msra.mxu0 %v2338
    %2953 = vmatprep.subr.bf16.mxu0 %v2343
    %2954 = vmatpush1.bf16.msra.mxu0 %v2342
    %2955 = vmatprep.subr.bf16.mxu0 %v2347
    %2956 = vmatpush1.bf16.msra.mxu0 %v2346
    %2957 = vmatprep.subr.bf16.mxu0 %v2351
    %2958 = vmatpush1.bf16.msra.mxu0 %v2350
    %2959 = vmatprep.subr.bf16.mxu0 %v2355
    %2960 = vmatpush1.bf16.msra.mxu0 %v2354
    %2961 = vmatprep.subr.bf16.mxu0 %v2359
    %2962 = vmatpush1.bf16.msra.mxu0 %v2358
    %2963 = vmatprep.subr.bf16.mxu0 %v2363
    %2964 = vmatpush1.bf16.msra.mxu0 %v2362
    %2965 = vmatprep.subr.bf16.mxu0 %v2367
    %2966 = vmatpush1.bf16.msra.mxu0 %v2366
    %2967 = vmatprep.subr.bf16.mxu0 %v2371
    %2968 = vmatpush1.bf16.msra.mxu0 %v2370
    %2969 = vmatprep.subr.bf16.mxu0 %v2375
    %2970 = vmatpush1.bf16.msra.mxu0 %v2374
    %2971 = vmatprep.subr.bf16.mxu0 %v2379
    %2972 = vmatpush1.bf16.msra.mxu0 %v2378
    %2973 = vmatprep.subr.bf16.mxu0 %v2383
    %2974 = vmatpush1.bf16.msra.mxu0 %v2382
    %2975 = vmatprep.subr.bf16.mxu0 %v2387
    %2976 = vmatpush1.bf16.msra.mxu0 %v2386
    %2977 = vmatprep.mubr.bf16.mxu0 %v1085
    %2978 = vmatmul.mubr.bf16.gmra.mrb[0].mxu0 %v1084
    %v2979 = vpop.f32.mrb[0].mxu0
    %v2980 = vadd.f32 %v2937, %v2979
    %v2981 = vpop.f32.mrb[0].mxu0
    %v2982 = vadd.f32 %v2939, %v2981
    %v2983 = vpop.f32.mrb[0].mxu0
    %v2984 = vadd.f32 %v2941, %v2983
    %v2985 = vpop.f32.mrb[0].mxu0
    %v2986 = vadd.f32 %v2943, %v2985
    %2987 = vdwg.mxu0
    %v2988 = vmax.f32 %v2808, 0.0
    %v2989 = vmax.f32 %v2810, 0.0
    %v2990 = vmax.f32 %v2980, 0.0
    %v2991 = vmax.f32 %v2982, 0.0
    %v2992 = vmax.f32 %v2812, 0.0
    %v2993 = vmax.f32 %v2814, 0.0
    %v2994 = vmax.f32 %v2984, 0.0
    %v2995 = vmax.f32 %v2986, 0.0
    %v2996 = vpack.c.bf16 %v2992, %v2988
    %v2997 = vpack.c.bf16 %v2993, %v2989
    %v2998 = vpack.c.bf16 %v2994, %v2990
    %v2999 = vpack.c.bf16 %v2995, %v2991
    %v3000 = vld [vmem:[#allocation6] sm:$0xff]
    %v3001 = vld [vmem:[#allocation6 + $0x8] sm:$0xff]
    %v3002 = vld [vmem:[#allocation6 + $0x10] sm:$0xff]
    %v3003 = vld [vmem:[#allocation6 + $0x18] sm:$0xff]
    %v3004 = vld [vmem:[#allocation6 + $0x20] sm:$0xff]
    %v3005 = vld [vmem:[#allocation6 + $0x28] sm:$0xff]
    %v3006 = vld [vmem:[#allocation6 + $0x30] sm:$0xff]
    %v3007 = vld [vmem:[#allocation6 + $0x38] sm:$0xff]
    %v3008 = vld [vmem:[#allocation6 + $0x40] sm:$0xff]
    %v3009 = vld [vmem:[#allocation6 + $0x48] sm:$0xff]
    %v3010 = vld [vmem:[#allocation6 + $0x50] sm:$0xff]
    %v3011 = vld [vmem:[#allocation6 + $0x58] sm:$0xff]
    %v3012 = vld [vmem:[#allocation6 + $0x60] sm:$0xff]
    %v3013 = vld [vmem:[#allocation6 + $0x68] sm:$0xff]
    %v3014 = vld [vmem:[#allocation6 + $0x70] sm:$0xff]
    %v3015 = vld [vmem:[#allocation6 + $0x78] sm:$0xff]
    %v3016 = vld [vmem:[#allocation6 + $0x80] sm:$0xff]
    %v3017 = vld [vmem:[#allocation6 + $0x88] sm:$0xff]
    %v3018 = vld [vmem:[#allocation6 + $0x90] sm:$0xff]
    %v3019 = vld [vmem:[#allocation6 + $0x98] sm:$0xff]
    %v3020 = vld [vmem:[#allocation6 + $0xa0] sm:$0xff]
    %v3021 = vld [vmem:[#allocation6 + $0xa8] sm:$0xff]
    %v3022 = vld [vmem:[#allocation6 + $0xb0] sm:$0xff]
    %v3023 = vld [vmem:[#allocation6 + $0xb8] sm:$0xff]
    %v3024 = vld [vmem:[#allocation6 + $0xc0] sm:$0xff]
    %v3025 = vld [vmem:[#allocation6 + $0xc8] sm:$0xff]
    %v3026 = vld [vmem:[#allocation6 + $0xd0] sm:$0xff]
    %v3027 = vld [vmem:[#allocation6 + $0xd8] sm:$0xff]
    %v3028 = vld [vmem:[#allocation6 + $0xe0] sm:$0xff]
    %v3029 = vld [vmem:[#allocation6 + $0xe8] sm:$0xff]
    %v3030 = vld [vmem:[#allocation6 + $0xf0] sm:$0xff]
    %v3031 = vld [vmem:[#allocation6 + $0xf8] sm:$0xff]
    %v3032 = vld [vmem:[#allocation6 + $0x100] sm:$0xff]
    %v3033 = vld [vmem:[#allocation6 + $0x108] sm:$0xff]
    %v3034 = vld [vmem:[#allocation6 + $0x110] sm:$0xff]
    %v3035 = vld [vmem:[#allocation6 + $0x118] sm:$0xff]
    %v3036 = vld [vmem:[#allocation6 + $0x120] sm:$0xff]
    %v3037 = vld [vmem:[#allocation6 + $0x128] sm:$0xff]
    %v3038 = vld [vmem:[#allocation6 + $0x130] sm:$0xff]
    %v3039 = vld [vmem:[#allocation6 + $0x138] sm:$0xff]
    %v3040 = vld [vmem:[#allocation6 + $0x140] sm:$0xff]
    %v3041 = vld [vmem:[#allocation6 + $0x148] sm:$0xff]
    %v3042 = vld [vmem:[#allocation6 + $0x150] sm:$0xff]
    %v3043 = vld [vmem:[#allocation6 + $0x158] sm:$0xff]
    %v3044 = vld [vmem:[#allocation6 + $0x160] sm:$0xff]
    %v3045 = vld [vmem:[#allocation6 + $0x168] sm:$0xff]
    %v3046 = vld [vmem:[#allocation6 + $0x170] sm:$0xff]
    %v3047 = vld [vmem:[#allocation6 + $0x178] sm:$0xff]
    %v3048 = vld [vmem:[#allocation6 + $0x180] sm:$0xff]
    %v3049 = vld [vmem:[#allocation6 + $0x188] sm:$0xff]
    %v3050 = vld [vmem:[#allocation6 + $0x190] sm:$0xff]
    %v3051 = vld [vmem:[#allocation6 + $0x198] sm:$0xff]
    %v3052 = vld [vmem:[#allocation6 + $0x1a0] sm:$0xff]
    %v3053 = vld [vmem:[#allocation6 + $0x1a8] sm:$0xff]
    %v3054 = vld [vmem:[#allocation6 + $0x1b0] sm:$0xff]
    %v3055 = vld [vmem:[#allocation6 + $0x1b8] sm:$0xff]
    %v3056 = vld [vmem:[#allocation6 + $0x1c0] sm:$0xff]
    %v3057 = vld [vmem:[#allocation6 + $0x1c8] sm:$0xff]
    %v3058 = vld [vmem:[#allocation6 + $0x1d0] sm:$0xff]
    %v3059 = vld [vmem:[#allocation6 + $0x1d8] sm:$0xff]
    %v3060 = vld [vmem:[#allocation6 + $0x1e0] sm:$0xff]
    %v3061 = vld [vmem:[#allocation6 + $0x1e8] sm:$0xff]
    %v3062 = vld [vmem:[#allocation6 + $0x1f0] sm:$0xff]
    %v3063 = vld [vmem:[#allocation6 + $0x1f8] sm:$0xff]
    %v3064 = vld [vmem:[%s6] sm:$0x3]
    %v3066 = vlaneseq
    %v3067 = vshrl.u32 %v3066, 7
    %v3068 = vsub.s32 0, %v3067
    %v3069 = vrot.slane %v3064, %v3068
    %v3070 = vlaneseq
    %v3071 = vshrl.u32 %v3070, 7
    %v3072 = vsub.s32 1, %v3071
    %v3073 = vrot.slane %v3064, %v3072
    %v3140 = vunpack.c.l.b16 %v3000
    %v3141 = vunpack.c.h.b16 %v3000
    %v3142 = vunpack.c.l.b16 %v3001
    %v3143 = vunpack.c.h.b16 %v3001
    %v3144 = vunpack.c.l.b16 %v3002
    %v3145 = vunpack.c.h.b16 %v3002
    %v3146 = vunpack.c.l.b16 %v3003
    %v3147 = vunpack.c.h.b16 %v3003
    %v3148 = vunpack.c.l.b16 %v3004
    %v3149 = vunpack.c.h.b16 %v3004
    %v3150 = vunpack.c.l.b16 %v3005
    %v3151 = vunpack.c.h.b16 %v3005
    %v3152 = vunpack.c.l.b16 %v3006
    %v3153 = vunpack.c.h.b16 %v3006
    %v3154 = vunpack.c.l.b16 %v3007
    %v3155 = vunpack.c.h.b16 %v3007
    %v3156 = vunpack.c.l.b16 %v3008
    %v3157 = vunpack.c.h.b16 %v3008
    %v3158 = vunpack.c.l.b16 %v3009
    %v3159 = vunpack.c.h.b16 %v3009
    %v3160 = vunpack.c.l.b16 %v3010
    %v3161 = vunpack.c.h.b16 %v3010
    %v3162 = vunpack.c.l.b16 %v3011
    %v3163 = vunpack.c.h.b16 %v3011
    %v3164 = vunpack.c.l.b16 %v3012
    %v3165 = vunpack.c.h.b16 %v3012
    %v3166 = vunpack.c.l.b16 %v3013
    %v3167 = vunpack.c.h.b16 %v3013
    %v3168 = vunpack.c.l.b16 %v3014
    %v3169 = vunpack.c.h.b16 %v3014
    %v3170 = vunpack.c.l.b16 %v3015
    %v3171 = vunpack.c.h.b16 %v3015
    %v3172 = vunpack.c.l.b16 %v3016
    %v3173 = vunpack.c.h.b16 %v3016
    %v3174 = vunpack.c.l.b16 %v3017
    %v3175 = vunpack.c.h.b16 %v3017
    %v3176 = vunpack.c.l.b16 %v3018
    %v3177 = vunpack.c.h.b16 %v3018
    %v3178 = vunpack.c.l.b16 %v3019
    %v3179 = vunpack.c.h.b16 %v3019
    %v3180 = vunpack.c.l.b16 %v3020
    %v3181 = vunpack.c.h.b16 %v3020
    %v3182 = vunpack.c.l.b16 %v3021
    %v3183 = vunpack.c.h.b16 %v3021
    %v3184 = vunpack.c.l.b16 %v3022
    %v3185 = vunpack.c.h.b16 %v3022
    %v3186 = vunpack.c.l.b16 %v3023
    %v3187 = vunpack.c.h.b16 %v3023
    %v3188 = vunpack.c.l.b16 %v3024
    %v3189 = vunpack.c.h.b16 %v3024
    %v3190 = vunpack.c.l.b16 %v3025
    %v3191 = vunpack.c.h.b16 %v3025
    %v3192 = vunpack.c.l.b16 %v3026
    %v3193 = vunpack.c.h.b16 %v3026
    %v3194 = vunpack.c.l.b16 %v3027
    %v3195 = vunpack.c.h.b16 %v3027
    %v3196 = vunpack.c.l.b16 %v3028
    %v3197 = vunpack.c.h.b16 %v3028
    %v3198 = vunpack.c.l.b16 %v3029
    %v3199 = vunpack.c.h.b16 %v3029
    %v3200 = vunpack.c.l.b16 %v3030
    %v3201 = vunpack.c.h.b16 %v3030
    %v3202 = vunpack.c.l.b16 %v3031
    %v3203 = vunpack.c.h.b16 %v3031
    %v3204 = vunpack.c.l.b16 %v3032
    %v3205 = vunpack.c.h.b16 %v3032
    %v3206 = vunpack.c.l.b16 %v3033
    %v3207 = vunpack.c.h.b16 %v3033
    %v3208 = vunpack.c.l.b16 %v3034
    %v3209 = vunpack.c.h.b16 %v3034
    %v3210 = vunpack.c.l.b16 %v3035
    %v3211 = vunpack.c.h.b16 %v3035
    %v3212 = vunpack.c.l.b16 %v3036
    %v3213 = vunpack.c.h.b16 %v3036
    %v3214 = vunpack.c.l.b16 %v3037
    %v3215 = vunpack.c.h.b16 %v3037
    %v3216 = vunpack.c.l.b16 %v3038
    %v3217 = vunpack.c.h.b16 %v3038
    %v3218 = vunpack.c.l.b16 %v3039
    %v3219 = vunpack.c.h.b16 %v3039
    %v3220 = vunpack.c.l.b16 %v3040
    %v3221 = vunpack.c.h.b16 %v3040
    %v3222 = vunpack.c.l.b16 %v3041
    %v3223 = vunpack.c.h.b16 %v3041
    %v3224 = vunpack.c.l.b16 %v3042
    %v3225 = vunpack.c.h.b16 %v3042
    %v3226 = vunpack.c.l.b16 %v3043
    %v3227 = vunpack.c.h.b16 %v3043
    %v3228 = vunpack.c.l.b16 %v3044
    %v3229 = vunpack.c.h.b16 %v3044
    %v3230 = vunpack.c.l.b16 %v3045
    %v3231 = vunpack.c.h.b16 %v3045
    %v3232 = vunpack.c.l.b16 %v3046
    %v3233 = vunpack.c.h.b16 %v3046
    %v3234 = vunpack.c.l.b16 %v3047
    %v3235 = vunpack.c.h.b16 %v3047
    %v3236 = vunpack.c.l.b16 %v3048
    %v3237 = vunpack.c.h.b16 %v3048
    %v3238 = vunpack.c.l.b16 %v3049
    %v3239 = vunpack.c.h.b16 %v3049
    %v3240 = vunpack.c.l.b16 %v3050
    %v3241 = vunpack.c.h.b16 %v3050
    %v3242 = vunpack.c.l.b16 %v3051
    %v3243 = vunpack.c.h.b16 %v3051
    %v3244 = vunpack.c.l.b16 %v3052
    %v3245 = vunpack.c.h.b16 %v3052
    %v3246 = vunpack.c.l.b16 %v3053
    %v3247 = vunpack.c.h.b16 %v3053
    %v3248 = vunpack.c.l.b16 %v3054
    %v3249 = vunpack.c.h.b16 %v3054
    %v3250 = vunpack.c.l.b16 %v3055
    %v3251 = vunpack.c.h.b16 %v3055
    %v3252 = vunpack.c.l.b16 %v3056
    %v3253 = vunpack.c.h.b16 %v3056
    %v3254 = vunpack.c.l.b16 %v3057
    %v3255 = vunpack.c.h.b16 %v3057
    %v3256 = vunpack.c.l.b16 %v3058
    %v3257 = vunpack.c.h.b16 %v3058
    %v3258 = vunpack.c.l.b16 %v3059
    %v3259 = vunpack.c.h.b16 %v3059
    %v3260 = vunpack.c.l.b16 %v3060
    %v3261 = vunpack.c.h.b16 %v3060
    %v3262 = vunpack.c.l.b16 %v3061
    %v3263 = vunpack.c.h.b16 %v3061
    %v3264 = vunpack.c.l.b16 %v3062
    %v3265 = vunpack.c.h.b16 %v3062
    %v3266 = vunpack.c.l.b16 %v3063
    %v3267 = vunpack.c.h.b16 %v3063
    %v3268 = vpack.c.b16 %v3142, %v3140
    %v3269 = vpack.c.b16 %v3143, %v3141
    %v3270 = vpack.c.b16 %v3146, %v3144
    %v3271 = vpack.c.b16 %v3147, %v3145
    %v3272 = vpack.c.b16 %v3150, %v3148
    %v3273 = vpack.c.b16 %v3151, %v3149
    %v3274 = vpack.c.b16 %v3154, %v3152
    %v3275 = vpack.c.b16 %v3155, %v3153
    %v3276 = vpack.c.b16 %v3158, %v3156
    %v3277 = vpack.c.b16 %v3159, %v3157
    %v3278 = vpack.c.b16 %v3162, %v3160
    %v3279 = vpack.c.b16 %v3163, %v3161
    %v3280 = vpack.c.b16 %v3166, %v3164
    %v3281 = vpack.c.b16 %v3167, %v3165
    %v3282 = vpack.c.b16 %v3170, %v3168
    %v3283 = vpack.c.b16 %v3171, %v3169
    %v3284 = vpack.c.b16 %v3174, %v3172
    %v3285 = vpack.c.b16 %v3175, %v3173
    %v3286 = vpack.c.b16 %v3178, %v3176
    %v3287 = vpack.c.b16 %v3179, %v3177
    %v3288 = vpack.c.b16 %v3182, %v3180
    %v3289 = vpack.c.b16 %v3183, %v3181
    %v3290 = vpack.c.b16 %v3186, %v3184
    %v3291 = vpack.c.b16 %v3187, %v3185
    %v3292 = vpack.c.b16 %v3190, %v3188
    %v3293 = vpack.c.b16 %v3191, %v3189
    %v3294 = vpack.c.b16 %v3194, %v3192
    %v3295 = vpack.c.b16 %v3195, %v3193
    %v3296 = vpack.c.b16 %v3198, %v3196
    %v3297 = vpack.c.b16 %v3199, %v3197
    %v3298 = vpack.c.b16 %v3202, %v3200
    %v3299 = vpack.c.b16 %v3203, %v3201
    %v3300 = vpack.c.b16 %v3206, %v3204
    %v3301 = vpack.c.b16 %v3207, %v3205
    %v3302 = vpack.c.b16 %v3210, %v3208
    %v3303 = vpack.c.b16 %v3211, %v3209
    %v3304 = vpack.c.b16 %v3214, %v3212
    %v3305 = vpack.c.b16 %v3215, %v3213
    %v3306 = vpack.c.b16 %v3218, %v3216
    %v3307 = vpack.c.b16 %v3219, %v3217
    %v3308 = vpack.c.b16 %v3222, %v3220
    %v3309 = vpack.c.b16 %v3223, %v3221
    %v3310 = vpack.c.b16 %v3226, %v3224
    %v3311 = vpack.c.b16 %v3227, %v3225
    %v3312 = vpack.c.b16 %v3230, %v3228
    %v3313 = vpack.c.b16 %v3231, %v3229
    %v3314 = vpack.c.b16 %v3234, %v3232
    %v3315 = vpack.c.b16 %v3235, %v3233
    %v3316 = vpack.c.b16 %v3238, %v3236
    %v3317 = vpack.c.b16 %v3239, %v3237
    %v3318 = vpack.c.b16 %v3242, %v3240
    %v3319 = vpack.c.b16 %v3243, %v3241
    %v3320 = vpack.c.b16 %v3246, %v3244
    %v3321 = vpack.c.b16 %v3247, %v3245
    %v3322 = vpack.c.b16 %v3250, %v3248
    %v3323 = vpack.c.b16 %v3251, %v3249
    %v3324 = vpack.c.b16 %v3254, %v3252
    %v3325 = vpack.c.b16 %v3255, %v3253
    %v3326 = vpack.c.b16 %v3258, %v3256
    %v3327 = vpack.c.b16 %v3259, %v3257
    %v3328 = vpack.c.b16 %v3262, %v3260
    %v3329 = vpack.c.b16 %v3263, %v3261
    %v3330 = vpack.c.b16 %v3266, %v3264
    %v3331 = vpack.c.b16 %v3267, %v3265
    %3396 = vmatprep.subr.bf16.mxu0 %v3269
    %3397 = vmatpush1.bf16.msra.mxu0 %v3268
    %3398 = vmatprep.subr.bf16.mxu0 %v3271
    %3399 = vmatpush1.bf16.msra.mxu0 %v3270
    %3400 = vmatprep.subr.bf16.mxu0 %v3273
    %3401 = vmatpush1.bf16.msra.mxu0 %v3272
    %3402 = vmatprep.subr.bf16.mxu0 %v3275
    %3403 = vmatpush1.bf16.msra.mxu0 %v3274
    %3404 = vmatprep.subr.bf16.mxu0 %v3277
    %3405 = vmatpush1.bf16.msra.mxu0 %v3276
    %3406 = vmatprep.subr.bf16.mxu0 %v3279
    %3407 = vmatpush1.bf16.msra.mxu0 %v3278
    %3408 = vmatprep.subr.bf16.mxu0 %v3281
    %3409 = vmatpush1.bf16.msra.mxu0 %v3280
    %3410 = vmatprep.subr.bf16.mxu0 %v3283
    %3411 = vmatpush1.bf16.msra.mxu0 %v3282
    %3412 = vmatprep.subr.bf16.mxu0 %v3285
    %3413 = vmatpush1.bf16.msra.mxu0 %v3284
    %3414 = vmatprep.subr.bf16.mxu0 %v3287
    %3415 = vmatpush1.bf16.msra.mxu0 %v3286
    %3416 = vmatprep.subr.bf16.mxu0 %v3289
    %3417 = vmatpush1.bf16.msra.mxu0 %v3288
    %3418 = vmatprep.subr.bf16.mxu0 %v3291
    %3419 = vmatpush1.bf16.msra.mxu0 %v3290
    %3420 = vmatprep.subr.bf16.mxu0 %v3293
    %3421 = vmatpush1.bf16.msra.mxu0 %v3292
    %3422 = vmatprep.subr.bf16.mxu0 %v3295
    %3423 = vmatpush1.bf16.msra.mxu0 %v3294
    %3424 = vmatprep.subr.bf16.mxu0 %v3297
    %3425 = vmatpush1.bf16.msra.mxu0 %v3296
    %3426 = vmatprep.subr.bf16.mxu0 %v3299
    %3427 = vmatpush1.bf16.msra.mxu0 %v3298
    %3428 = vmatprep.mubr.bf16.mxu0 %v2997
    %3429 = vmatmul.mubr.bf16.gmra.mrb[0].mxu0 %v2996
    %v3430 = vpop.f32.mrb[0].mxu0
    %v3431 = vadd.f32 %v3069, %v3430
    %v3432 = vpop.f32.mrb[0].mxu0
    %v3433 = vadd.f32 %v3073, %v3432
    %v3434 = vpop.f32.mrb[0].mxu0
    %v3435 = vadd.f32 %v3069, %v3434
    %v3436 = vpop.f32.mrb[0].mxu0
    %v3437 = vadd.f32 %v3073, %v3436
    %3438 = vdwg.mxu0
    %3439 = vmatprep.subr.bf16.mxu0 %v3301
    %3440 = vmatpush1.bf16.msra.mxu0 %v3300
    %3441 = vmatprep.subr.bf16.mxu0 %v3303
    %3442 = vmatpush1.bf16.msra.mxu0 %v3302
    %3443 = vmatprep.subr.bf16.mxu0 %v3305
    %3444 = vmatpush1.bf16.msra.mxu0 %v3304
    %3445 = vmatprep.subr.bf16.mxu0 %v3307
    %3446 = vmatpush1.bf16.msra.mxu0 %v3306
    %3447 = vmatprep.subr.bf16.mxu0 %v3309
    %3448 = vmatpush1.bf16.msra.mxu0 %v3308
    %3449 = vmatprep.subr.bf16.mxu0 %v3311
    %3450 = vmatpush1.bf16.msra.mxu0 %v3310
    %3451 = vmatprep.subr.bf16.mxu0 %v3313
    %3452 = vmatpush1.bf16.msra.mxu0 %v3312
    %3453 = vmatprep.subr.bf16.mxu0 %v3315
    %3454 = vmatpush1.bf16.msra.mxu0 %v3314
    %3455 = vmatprep.subr.bf16.mxu0 %v3317
    %3456 = vmatpush1.bf16.msra.mxu0 %v3316
    %3457 = vmatprep.subr.bf16.mxu0 %v3319
    %3458 = vmatpush1.bf16.msra.mxu0 %v3318
    %3459 = vmatprep.subr.bf16.mxu0 %v3321
    %3460 = vmatpush1.bf16.msra.mxu0 %v3320
    %3461 = vmatprep.subr.bf16.mxu0 %v3323
    %3462 = vmatpush1.bf16.msra.mxu0 %v3322
    %3463 = vmatprep.subr.bf16.mxu0 %v3325
    %3464 = vmatpush1.bf16.msra.mxu0 %v3324
    %3465 = vmatprep.subr.bf16.mxu0 %v3327
    %3466 = vmatpush1.bf16.msra.mxu0 %v3326
    %3467 = vmatprep.subr.bf16.mxu0 %v3329
    %3468 = vmatpush1.bf16.msra.mxu0 %v3328
    %3469 = vmatprep.subr.bf16.mxu0 %v3331
    %3470 = vmatpush1.bf16.msra.mxu0 %v3330
    %3471 = vmatprep.mubr.bf16.mxu0 %v2999
    %3472 = vmatmul.mubr.bf16.gmra.mrb[0].mxu0 %v2998
    %v3473 = vpop.f32.mrb[0].mxu0
    %v3474 = vadd.f32 %v3431, %v3473
    %v3475 = vpop.f32.mrb[0].mxu0
    %v3476 = vadd.f32 %v3433, %v3475
    %v3477 = vpop.f32.mrb[0].mxu0
    %v3478 = vadd.f32 %v3435, %v3477
    %v3479 = vpop.f32.mrb[0].mxu0
    %v3480 = vadd.f32 %v3437, %v3479
    %3481 = vdwg.mxu0
    %v3482 = vmax.f32 %v3474, 0.0
    %v3483 = vmax.f32 %v3476, 0.0
    %v3484 = vmax.f32 %v3478, 0.0
    %v3485 = vmax.f32 %v3480, 0.0
    %v3486 = vpack.c.bf16 %v3484, %v3482
    %v3487 = vpack.c.bf16 %v3485, %v3483
    %v3488 = vld [vmem:[%s7] sm:$0xf]
    %v3489 = vld [vmem:[%s7 + $0x4] sm:$0xf]
    %v3490 = vld [vmem:[%s7 + $0x8] sm:$0xf]
    %v3491 = vld [vmem:[%s7 + $0xc] sm:$0xf]
    %v3492 = vld [vmem:[%s7 + $0x10] sm:$0xf]
    %v3493 = vld [vmem:[%s7 + $0x14] sm:$0xf]
    %v3494 = vld [vmem:[%s7 + $0x18] sm:$0xf]
    %v3495 = vld [vmem:[%s7 + $0x1c] sm:$0xf]
    %v3496 = vld [vmem:[%s7 + $0x20] sm:$0xf]
    %v3497 = vld [vmem:[%s7 + $0x24] sm:$0xf]
    %v3498 = vld [vmem:[%s7 + $0x28] sm:$0xf]
    %v3499 = vld [vmem:[%s7 + $0x2c] sm:$0xf]
    %v3500 = vld [vmem:[%s7 + $0x30] sm:$0xf]
    %v3501 = vld [vmem:[%s7 + $0x34] sm:$0xf]
    %v3502 = vld [vmem:[%s7 + $0x38] sm:$0xf]
    %v3503 = vld [vmem:[%s7 + $0x3c] sm:$0xf]
    %v3504 = vld [vmem:[%s7 + $0x40] sm:$0xf]
    %v3505 = vld [vmem:[%s7 + $0x44] sm:$0xf]
    %v3506 = vld [vmem:[%s7 + $0x48] sm:$0xf]
    %v3507 = vld [vmem:[%s7 + $0x4c] sm:$0xf]
    %v3508 = vld [vmem:[%s7 + $0x50] sm:$0xf]
    %v3509 = vld [vmem:[%s7 + $0x54] sm:$0xf]
    %v3510 = vld [vmem:[%s7 + $0x58] sm:$0xf]
    %v3511 = vld [vmem:[%s7 + $0x5c] sm:$0xf]
    %v3512 = vld [vmem:[%s7 + $0x60] sm:$0xf]
    %v3513 = vld [vmem:[%s7 + $0x64] sm:$0xf]
    %v3514 = vld [vmem:[%s7 + $0x68] sm:$0xf]
    %v3515 = vld [vmem:[%s7 + $0x6c] sm:$0xf]
    %v3516 = vld [vmem:[%s7 + $0x70] sm:$0xf]
    %v3517 = vld [vmem:[%s7 + $0x74] sm:$0xf]
    %v3518 = vld [vmem:[%s7 + $0x78] sm:$0xf]
    %v3519 = vld [vmem:[%s7 + $0x7c] sm:$0xf]
    %v3520 = vld [vmem:[%s8] sm:$0x1]
    %v3522 = vlaneseq
    %v3523 = vshrl.u32 %v3522, 7
    %v3524 = vsub.s32 0, %v3523
    %v3525 = vrot.slane %v3520, %v3524
    %v3559 = vunpack.c.l.b16 %v3488
    %v3560 = vunpack.c.l.b16 %v3489
    %v3561 = vunpack.c.l.b16 %v3490
    %v3562 = vunpack.c.l.b16 %v3491
    %v3563 = vunpack.c.l.b16 %v3492
    %v3564 = vunpack.c.l.b16 %v3493
    %v3565 = vunpack.c.l.b16 %v3494
    %v3566 = vunpack.c.l.b16 %v3495
    %v3567 = vunpack.c.l.b16 %v3496
    %v3568 = vunpack.c.l.b16 %v3497
    %v3569 = vunpack.c.l.b16 %v3498
    %v3570 = vunpack.c.l.b16 %v3499
    %v3571 = vunpack.c.l.b16 %v3500
    %v3572 = vunpack.c.l.b16 %v3501
    %v3573 = vunpack.c.l.b16 %v3502
    %v3574 = vunpack.c.l.b16 %v3503
    %v3575 = vunpack.c.l.b16 %v3504
    %v3576 = vunpack.c.l.b16 %v3505
    %v3577 = vunpack.c.l.b16 %v3506
    %v3578 = vunpack.c.l.b16 %v3507
    %v3579 = vunpack.c.l.b16 %v3508
    %v3580 = vunpack.c.l.b16 %v3509
    %v3581 = vunpack.c.l.b16 %v3510
    %v3582 = vunpack.c.l.b16 %v3511
    %v3583 = vunpack.c.l.b16 %v3512
    %v3584 = vunpack.c.l.b16 %v3513
    %v3585 = vunpack.c.l.b16 %v3514
    %v3586 = vunpack.c.l.b16 %v3515
    %v3587 = vunpack.c.l.b16 %v3516
    %v3588 = vunpack.c.l.b16 %v3517
    %v3589 = vunpack.c.l.b16 %v3518
    %v3590 = vunpack.c.l.b16 %v3519
    %v3591 = vpack.c.b16 %v3560, %v3559
    %v3592 = vpack.c.b16 %v3562, %v3561
    %v3593 = vpack.c.b16 %v3564, %v3563
    %v3594 = vpack.c.b16 %v3566, %v3565
    %v3595 = vpack.c.b16 %v3568, %v3567
    %v3596 = vpack.c.b16 %v3570, %v3569
    %v3597 = vpack.c.b16 %v3572, %v3571
    %v3598 = vpack.c.b16 %v3574, %v3573
    %v3599 = vpack.c.b16 %v3576, %v3575
    %v3600 = vpack.c.b16 %v3578, %v3577
    %v3601 = vpack.c.b16 %v3580, %v3579
    %v3602 = vpack.c.b16 %v3582, %v3581
    %v3603 = vpack.c.b16 %v3584, %v3583
    %v3604 = vpack.c.b16 %v3586, %v3585
    %v3605 = vpack.c.b16 %v3588, %v3587
    %v3606 = vpack.c.b16 %v3590, %v3589
    %3623 = vmatprep.subr.bf16.mxu0 0
    %3624 = vmatpush1.bf16.msra.mxu0 %v3591
    %3625 = vmatprep.subr.bf16.mxu0 0
    %3626 = vmatpush1.bf16.msra.mxu0 %v3592
    %3627 = vmatprep.subr.bf16.mxu0 0
    %3628 = vmatpush1.bf16.msra.mxu0 %v3593
    %3629 = vmatprep.subr.bf16.mxu0 0
    %3630 = vmatpush1.bf16.msra.mxu0 %v3594
    %3631 = vmatprep.subr.bf16.mxu0 0
    %3632 = vmatpush1.bf16.msra.mxu0 %v3595
    %3633 = vmatprep.subr.bf16.mxu0 0
    %3634 = vmatpush1.bf16.msra.mxu0 %v3596
    %3635 = vmatprep.subr.bf16.mxu0 0
    %3636 = vmatpush1.bf16.msra.mxu0 %v3597
    %3637 = vmatprep.subr.bf16.mxu0 0
    %3638 = vmatpush1.bf16.msra.mxu0 %v3598
    %3639 = vmatprep.subr.bf16.mxu0 0
    %3640 = vmatpush1.bf16.msra.mxu0 %v3599
    %3641 = vmatprep.subr.bf16.mxu0 0
    %3642 = vmatpush1.bf16.msra.mxu0 %v3600
    %3643 = vmatprep.subr.bf16.mxu0 0
    %3644 = vmatpush1.bf16.msra.mxu0 %v3601
    %3645 = vmatprep.subr.bf16.mxu0 0
    %3646 = vmatpush1.bf16.msra.mxu0 %v3602
    %3647 = vmatprep.subr.bf16.mxu0 0
    %3648 = vmatpush1.bf16.msra.mxu0 %v3603
    %3649 = vmatprep.subr.bf16.mxu0 0
    %3650 = vmatpush1.bf16.msra.mxu0 %v3604
    %3651 = vmatprep.subr.bf16.mxu0 0
    %3652 = vmatpush1.bf16.msra.mxu0 %v3605
    %3653 = vmatprep.subr.bf16.mxu0 0
    %3654 = vmatpush1.bf16.msra.mxu0 %v3606
    %3655 = vmatprep.mubr.bf16.mxu0 %v3487
    %3656 = vmatmul.mubr.bf16.gmra.mrb[0].mxu0 %v3486
    %v3657 = vpop.f32.mrb[0].mxu0
    %v3658 = vadd.f32 %v3525, %v3657
    %v3659 = vpop.f32.mrb[0].mxu0
    %v3660 = vpop.f32.mrb[0].mxu0
    %v3661 = vadd.f32 %v3525, %v3660
    %v3662 = vpop.f32.mrb[0].mxu0
    %3663 = vdwg.mxu0
    %v3664 = vmax.f32 %v3658, 0.0
    %v3665 = vmax.f32 %v3661, 0.0
    %v3666 = vpack.c.bf16 %v3665, %v3664
    %v3668 = vunpack.c.l.b16 %v3666
    %v3669 = vunpack.c.h.b16 %v3666
    %v3670 = vpack.c.b16 %v3668, %v3668
    %v3671 = vpack.c.b16 %v3669, %v3669
    %3674 = vst [vmem:[%s9] sm:$0xf] %v3670
    %3675 = vst [vmem:[%s9 + $0x4] sm:$0xf] %v3671
    // Predicated region
    $region50: #{_forward_impl.1} parent=1 // pred_check
      _
    $region51: #{_forward_impl.1} parent=1 // pred_check_branch
      %3677 = sbr.rel (0) target = $region53
    $region52: #{_forward_impl.1} parent=1 // pred_region
      _
    $region53: #{_forward_impl.1} parent=1 // pred_fallthru
      _
    // Predicated region
    $region54: #{_forward_impl.1} parent=1 // pred_check
      _
    $region55: #{_forward_impl.1} parent=1 // pred_check_branch
      %3679 = sbr.rel (0) target = $region57
    $region56: #{_forward_impl.1} parent=1 // pred_region
      _
    $region57: #{_forward_impl.1} parent=1 // pred_fallthru
      _
    %3680 = vsyncpa [#allocation3], 1
    %3681 = vsyncpa [#allocation5], 1

</llo_original>
